<compile_context>
chip_gen: v6e
topology: v6e:2x2x1
jax: 0.10.0
libtpu: 0.0.40
codegen_flags: <defaults>
</compile_context>

<pallas_src>
import functools

import numpy as np

import jax
import jax.numpy as jnp
from jax.experimental import pallas as pl
from jax.experimental.pallas import tpu as pltpu


def _round_up(x, m):
    return (x + m - 1) // m * m


def _pick_vmem_limit():
    # ~3/4 of physical VMEM, capped at 64 MiB (fits v7x's 64 MiB per core and
    # raises the previous fixed 32 MiB on v5e/v6e).  Fallback if unavailable.
    try:
        phys = pltpu.get_tpu_info().vmem_capacity_bytes
        return int(min(phys * 3 // 4, 64 * 1024 * 1024))
    except Exception:
        return 48 * 1024 * 1024


def double_conv_kernel(x_ref, w1_ref, b1_ref, w2_ref, b2_ref, out_ref,
                       *, H, W, BH, Wt, fuse1, fuse2):
    """One (batch, row-band) tile of DoubleConv.

    x_ref  : (H+4, Wxp, Cin_p)        whole padded sample (resident across bands)
    w1_ref : (3, 3*Cin_p, Cout_p)     conv1 weights, BN1 scale folded, dx-fused K
    b1_ref : (1, Cout_p)              folded BN1 bias (f32)
    w2_ref : (3, 3*Cout_p, Cout_p)    conv2 weights, BN2 scale folded, dx-fused K
    b2_ref : (1, Cout_p)              folded BN2 bias (f32)
    out_ref: (BH, W, Cout_p)          this band's output rows
    """
    band = pl.program_id(1)
    r0 = band * BH                    # first output row of this band
    Hs = BH + 2                       # conv1 rows computed (incl. conv2 halo)
    Cin = x_ref.shape[-1]
    Cmid = out_ref.shape[-1]
    cdt = x_ref.dtype                 # storage dtype == MXU input dtype

    def conv3x3(get_patch, w_ref, rows, cols, cin, fuse):
        """3x3 conv as shifted-window matmuls with an f32 accumulator.

        get_patch(dy, dx) -> (rows, cols, cin) slab in the storage dtype.
        fuse=True: the 3 column taps are concatenated on channels (K=3*cin),
        filling the 256-deep MXU on v6e/v7x with 3 matmuls instead of 9.
        """
        acc = None
        for dy in range(3):
            if fuse:
                p = jnp.concatenate([get_patch(dy, dx) for dx in range(3)],
                                    axis=-1).reshape(rows * cols, 3 * cin)
                t = jnp.dot(p, w_ref[dy], preferred_element_type=jnp.float32)
                acc = t if acc is None else acc + t
            else:
                for dx in range(3):
                    p = get_patch(dy, dx).reshape(rows * cols, cin)
                    t = jnp.dot(p, w_ref[dy, dx * cin:(dx + 1) * cin, :],
                                preferred_element_type=jnp.float32)
                    acc = t if acc is None else acc + t
        return acc

    # ---- conv1 (+ folded BN1 scale) over (Hs, Wt): band rows + 1-row halo. ---
    acc1 = conv3x3(lambda dy, dx: x_ref[pl.ds(r0 + dy, Hs), dx:dx + Wt, :],
                   w1_ref, Hs, Wt, Cin, fuse1)
    y1 = jnp.maximum(acc1 + b1_ref[...], 0.0).reshape(Hs, Wt, Cmid)

    # conv2's zero-padding ring: y1 tile (i, j) is image pixel (r0-1+i, j-1).
    # One broadcast select against a narrow (Hs, Wt, 1) mask (only non-trivial
    # at image boundaries / width padding), instead of full-tile int32 compares.
    row = jax.lax.broadcasted_iota(jnp.int32, (Hs, Wt, 1), 0) + (r0 - 1)
    col = jax.lax.broadcasted_iota(jnp.int32, (Hs, Wt, 1), 1) - 1
    valid = (row >= 0) & (row < H) & (col >= 0) & (col < W)
    # Single cast to the MXU dtype; no scratch store/reload of y1.
    y1 = jnp.where(valid, y1, 0.0).astype(cdt)

    # ---- conv2 (+ folded BN2 scale) over this band's (BH, W) output pixels. --
    acc2 = conv3x3(lambda dy, dx: y1[dy:dy + BH, dx:dx + W, :],
                   w2_ref, BH, W, Cmid, fuse2)
    y2 = jnp.maximum(acc2 + b2_ref[...], 0.0).reshape(BH, W, Cmid)
    out_ref[...] = y2.astype(out_ref.dtype)


def double_conv(x_nchw, w1, g1, be1, m1, v1, w2, g2, be2, m2, v2,
                eps=1e-5, band_rows=32, compute_dtype=jnp.float32):
    """Pallas DoubleConv.forward (eval-mode BatchNorm). NCHW in, NCHW out."""
    N, Cin, H, W = x_nchw.shape
    Cout = w1.shape[0]

    sub = 16 if np.dtype(compute_dtype).itemsize == 2 else 8  # sublane tile
    # Channels padded only to a sublane multiple (no 32x lane padding for the
    # UNet stem); real UNet layer widths (64/128/256/...) are untouched.
    Cin_p = _round_up(Cin, 8)
    Cout_p = _round_up(Cout, 8)
    # Fuse the 3 column taps into K=3*C matmuls only when lane-aligned
    # (v6e/v7x 256-deep MXU win; safe unaligned path otherwise / on v5e).
    fuse1 = (Cin_p % 128 == 0)
    fuse2 = (Cout_p % 128 == 0)

    # Band height: largest divisor of H <= band_rows; fall back to the whole
    # image rather than degenerating to tiny bands for awkward H.
    BH = max(d for d in range(1, min(band_rows, H) + 1) if H % d == 0)
    if BH * 4 < min(band_rows, H):
        BH = H
    n_bands = H // BH

    # Tile widths: conv1/y1 width rounded up so in-kernel flattens are
    # layout-preserving; the extra columns read zero padding and are masked.
    Wt = _round_up(W + 2, sub)        # conv1/y1 tile width (incl. conv2 halo)
    Wxp = Wt + 2                      # padded-x width needed by the conv1 taps

    # NCHW -> NHWC, cast to storage dtype, zero-pad rows by 2 and columns/chans
    # as derived above.  Single padded copy; no duplicated halo-band stack.
    x = x_nchw.astype(compute_dtype)
    x = jnp.transpose(x, (0, 2, 3, 1))
    x = jnp.pad(x, ((0, 0), (2, 2), (2, Wxp - W - 2), (0, Cin_p - Cin)))

    # Fold eval-mode BN into per-channel scale/bias; fold the scale into the
    # conv weights so the kernel only does a bias add + ReLU.
    inv1 = g1 / jnp.sqrt(v1 + eps)
    inv2 = g2 / jnp.sqrt(v2 + eps)
    # PyTorch OIHW -> (kh, kw, Cin, Cout), scale along Cout, pad channels,
    # then merge (kw, Cin) into a fused K dimension: (3, 3*Cin_p, Cout_p).
    w1t = jnp.transpose(w1, (2, 3, 1, 0)) * inv1[None, None, None, :]
    w2t = jnp.transpose(w2, (2, 3, 1, 0)) * inv2[None, None, None, :]
    w1t = jnp.pad(w1t, ((0, 0), (0, 0), (0, Cin_p - Cin), (0, Cout_p - Cout)))
    w2t = jnp.pad(w2t, ((0, 0), (0, 0), (0, Cout_p - Cout), (0, Cout_p - Cout)))
    w1f = w1t.reshape(3, 3 * Cin_p, Cout_p).astype(compute_dtype)
    w2f = w2t.reshape(3, 3 * Cout_p, Cout_p).astype(compute_dtype)
    b1 = jnp.pad(be1 - m1 * inv1, (0, Cout_p - Cout)).reshape(1, Cout_p)
    b2 = jnp.pad(be2 - m2 * inv2, (0, Cout_p - Cout)).reshape(1, Cout_p)
    b1 = b1.astype(jnp.float32)       # BN/ReLU math stays f32 (v5e-safe)
    b2 = b2.astype(jnp.float32)

    kernel = functools.partial(double_conv_kernel, H=H, W=W, BH=BH, Wt=Wt,
                               fuse1=fuse1, fuse2=fuse2)
    out = pl.pallas_call(
        kernel,
        # Output written in compute_dtype with minimal channel padding (no
        # 128-lane padded f32 writeback).
        out_shape=jax.ShapeDtypeStruct((N, H, W, Cout_p), compute_dtype),
        grid=(N, n_bands),
        in_specs=[
            # Whole padded sample; block index constant along the band axis,
            # so it is fetched once per sample and stays VMEM-resident.
            pl.BlockSpec((None, H + 4, Wxp, Cin_p), lambda n, b: (n, 0, 0, 0)),
            pl.BlockSpec((3, 3 * Cin_p, Cout_p), lambda n, b: (0, 0, 0)),
            pl.BlockSpec((1, Cout_p), lambda n, b: (0, 0)),
            pl.BlockSpec((3, 3 * Cout_p, Cout_p), lambda n, b: (0, 0, 0)),
            pl.BlockSpec((1, Cout_p), lambda n, b: (0, 0)),
        ],
        out_specs=pl.BlockSpec((None, BH, W, Cout_p), lambda n, b: (n, b, 0, 0)),
        compiler_params=pltpu.CompilerParams(
            dimension_semantics=("parallel", "parallel"),
            vmem_limit_bytes=_pick_vmem_limit(),
        ),
    )(x, w1f, b1, w2f, b2)

    # NOTE: in a real UNet the next layer should consume this NHWC /
    # compute_dtype activation directly; the slice/transpose/cast below only
    # exist to match the PyTorch module's NCHW float interface.
    out = out[..., :Cout]
    return jnp.transpose(out, (0, 3, 1, 2)).astype(x_nchw.dtype)


def ref_double_conv(x, w1, g1, be1, m1, v1, w2, g2, be2, m2, v2, eps=1e-5):
    """Pure-JAX reference (NCHW), matches PyTorch eval-mode semantics."""
    dn = jax.lax.conv_dimension_numbers(x.shape, w1.shape, ('NCHW', 'OIHW', 'NCHW'))

    def bn_relu(y, g, be, m, v):
        y = (y - m[None, :, None, None]) / jnp.sqrt(v[None, :, None, None] + eps)
        y = y * g[None, :, None, None] + be[None, :, None, None]
        return jnp.maximum(y, 0.0)

    y = jax.lax.conv_general_dilated(x, w1, (1, 1), ((1, 1), (1, 1)),
                                     dimension_numbers=dn)
    y = bn_relu(y, g1, be1, m1, v1)
    y = jax.lax.conv_general_dilated(y, w2, (1, 1), ((1, 1), (1, 1)),
                                     dimension_numbers=dn)
    return bn_relu(y, g2, be2, m2, v2)


if __name__ == "__main__":
    N, Cin, Cout, H, W = 2, 4, 8, 16, 16
    key = jax.random.PRNGKey(0)
    ks = jax.random.split(key, 11)

    x = jax.random.normal(ks[0], (N, Cin, H, W), jnp.float32)

    # Conv weights (PyTorch layout OIHW), no bias.
    w1 = 0.1 * jax.random.normal(ks[1], (Cout, Cin, 3, 3), jnp.float32)
    w2 = 0.1 * jax.random.normal(ks[2], (Cout, Cout, 3, 3), jnp.float32)

    # BatchNorm parameters / running stats (deterministic, non-trivial).
    g1 = 1.0 + 0.1 * jax.random.normal(ks[3], (Cout,), jnp.float32)
    be1 = 0.1 * jax.random.normal(ks[4], (Cout,), jnp.float32)
    m1 = 0.1 * jax.random.normal(ks[5], (Cout,), jnp.float32)
    v1 = 1.0 + 0.1 * jax.random.uniform(ks[6], (Cout,), jnp.float32)
    g2 = 1.0 + 0.1 * jax.random.normal(ks[7], (Cout,), jnp.float32)
    be2 = 0.1 * jax.random.normal(ks[8], (Cout,), jnp.float32)
    m2 = 0.1 * jax.random.normal(ks[9], (Cout,), jnp.float32)
    v2 = 1.0 + 0.1 * jax.random.uniform(ks[10], (Cout,), jnp.float32)

    ref = ref_double_conv(x, w1, g1, be1, m1, v1, w2, g2, be2, m2, v2)

    # f32 path, 2 bands of 8 rows: exercises the band/halo indexing and the
    # top/bottom boundary masking; strict check vs the reference.
    out = double_conv(x, w1, g1, be1, m1, v1, w2, g2, be2, m2, v2,
                      band_rows=8, compute_dtype=jnp.float32)
    out = jax.block_until_ready(out)
    assert out.shape == (N, Cout, H, W)
    assert jnp.allclose(out, ref, atol=1e-4, rtol=1e-4), "f32 mismatch (BH=8)"

    # f32 path, 4 bands of 4 rows: exercises interior bands whose top AND
    # bottom halo rows come from neighbouring bands.
    out4 = double_conv(x, w1, g1, be1, m1, v1, w2, g2, be2, m2, v2,
                       band_rows=4, compute_dtype=jnp.float32)
    out4 = jax.block_until_ready(out4)
    assert jnp.allclose(out4, ref, atol=1e-4, rtol=1e-4), "f32 mismatch (BH=4)"

    # bf16 storage/MXU path (default band_rows=32 -> single band here); f32
    # accumulation and f32 BN/ReLU, checked with a bf16-appropriate tolerance.
    out_bf16 = double_conv(x, w1, g1, be1, m1, v1, w2, g2, be2, m2, v2,
                           compute_dtype=jnp.bfloat16)
    out_bf16 = jax.block_until_ready(out_bf16)
    rel_err = float(jnp.max(jnp.abs(out_bf16 - ref)) /
                    (jnp.max(jnp.abs(ref)) + 1e-12))
    assert rel_err < 5e-2, f"bf16 path relative error too high: {rel_err}"

    print("KERNEL_OK")
</pallas_src>

<mosaic_0001>
module attributes {stable_mosaic.version = 11 : i64} {
  func.func @double_conv_kernel(%arg0: i32, %arg1: i32, %arg2: memref<1x20x26x8xf32, #tpu.memory_space<vmem>>, %arg3: memref<3x24x8xf32, #tpu.memory_space<vmem>>, %arg4: memref<1x8xf32, #tpu.memory_space<vmem>>, %arg5: memref<3x24x8xf32, #tpu.memory_space<vmem>>, %arg6: memref<1x8xf32, #tpu.memory_space<vmem>>, %arg7: memref<1x8x16x8xf32, #tpu.memory_space<vmem>>) attributes {dimension_semantics = [#tpu.dimension_semantics<parallel>, #tpu.dimension_semantics<parallel>], iteration_bounds = array<i64: 2, 2>, scalar_prefetch = 0 : i64, scratch_operands = 0 : i64, tpu.core_type = #tpu.core_type<tc>, window_params = [{transform_indices = @transform_0, window_bounds = array<i64: 1, 20, 26, 8>}, {pipeline_mode = #tpu.pipeline_mode<synchronous>, transform_indices = @transform_1, window_bounds = array<i64: 3, 24, 8>}, {pipeline_mode = #tpu.pipeline_mode<synchronous>, transform_indices = @transform_2, window_bounds = array<i64: 1, 8>}, {pipeline_mode = #tpu.pipeline_mode<synchronous>, transform_indices = @transform_3, window_bounds = array<i64: 3, 24, 8>}, {pipeline_mode = #tpu.pipeline_mode<synchronous>, transform_indices = @transform_4, window_bounds = array<i64: 1, 8>}, {transform_indices = @transform_5, window_bounds = array<i64: 1, 8, 16, 8>}]} {
    %c8_i32 = arith.constant 8 : i32
    %0 = arith.muli %arg1, %c8_i32 : i32
    %c0_i32 = arith.constant 0 : i32
    %1 = arith.addi %0, %c0_i32 : i32
    %c0 = arith.constant 0 : index
    %2 = arith.index_cast %1 : i32 to index
    %c0_0 = arith.constant 0 : index
    %c0_1 = arith.constant 0 : index
    %3 = vector.load %arg2[%c0, %2, %c0_0, %c0_1] : memref<1x20x26x8xf32, #tpu.memory_space<vmem>>, vector<1x10x24x8xf32>
    %4 = vector.shape_cast %3 : vector<1x10x24x8xf32> to vector<10x24x8xf32>
    %5 = vector.shape_cast %4 : vector<10x24x8xf32> to vector<240x8xf32>
    %c0_2 = arith.constant 0 : index
    %c0_3 = arith.constant 0 : index
    %c0_4 = arith.constant 0 : index
    %6 = vector.load %arg3[%c0_2, %c0_3, %c0_4] : memref<3x24x8xf32, #tpu.memory_space<vmem>>, vector<1x8x8xf32>
    %7 = vector.shape_cast %6 : vector<1x8x8xf32> to vector<8x8xf32>
    %cst = arith.constant dense<0.000000e+00> : vector<240x8xf32>
    %8 = tpu.matmul %5, %7, %cst {dimension_numbers = #tpu.dot_dimension_numbers<[1], [0], [0], [1], [0, 0, 1, 1], [], []>} : vector<240x8xf32>, vector<8x8xf32>, vector<240x8xf32> -> vector<240x8xf32>
    %c0_i32_5 = arith.constant 0 : i32
    %9 = arith.addi %0, %c0_i32_5 : i32
    %c0_6 = arith.constant 0 : index
    %10 = arith.index_cast %9 : i32 to index
    %c1 = arith.constant 1 : index
    %c0_7 = arith.constant 0 : index
    %11 = vector.load %arg2[%c0_6, %10, %c1, %c0_7] : memref<1x20x26x8xf32, #tpu.memory_space<vmem>>, vector<1x10x24x8xf32>
    %12 = vector.shape_cast %11 : vector<1x10x24x8xf32> to vector<10x24x8xf32>
    %13 = vector.shape_cast %12 : vector<10x24x8xf32> to vector<240x8xf32>
    %c0_8 = arith.constant 0 : index
    %c8 = arith.constant 8 : index
    %c0_9 = arith.constant 0 : index
    %14 = vector.load %arg3[%c0_8, %c8, %c0_9] : memref<3x24x8xf32, #tpu.memory_space<vmem>>, vector<1x8x8xf32>
    %15 = vector.shape_cast %14 : vector<1x8x8xf32> to vector<8x8xf32>
    %cst_10 = arith.constant dense<0.000000e+00> : vector<240x8xf32>
    %16 = tpu.matmul %13, %15, %cst_10 {dimension_numbers = #tpu.dot_dimension_numbers<[1], [0], [0], [1], [0, 0, 1, 1], [], []>} : vector<240x8xf32>, vector<8x8xf32>, vector<240x8xf32> -> vector<240x8xf32>
    %17 = arith.addf %8, %16 : vector<240x8xf32>
    %c0_i32_11 = arith.constant 0 : i32
    %18 = arith.addi %0, %c0_i32_11 : i32
    %c0_12 = arith.constant 0 : index
    %19 = arith.index_cast %18 : i32 to index
    %c2 = arith.constant 2 : index
    %c0_13 = arith.constant 0 : index
    %20 = vector.load %arg2[%c0_12, %19, %c2, %c0_13] : memref<1x20x26x8xf32, #tpu.memory_space<vmem>>, vector<1x10x24x8xf32>
    %21 = vector.shape_cast %20 : vector<1x10x24x8xf32> to vector<10x24x8xf32>
    %22 = vector.shape_cast %21 : vector<10x24x8xf32> to vector<240x8xf32>
    %c0_14 = arith.constant 0 : index
    %c16 = arith.constant 16 : index
    %c0_15 = arith.constant 0 : index
    %23 = vector.load %arg3[%c0_14, %c16, %c0_15] : memref<3x24x8xf32, #tpu.memory_space<vmem>>, vector<1x8x8xf32>
    %24 = vector.shape_cast %23 : vector<1x8x8xf32> to vector<8x8xf32>
    %cst_16 = arith.constant dense<0.000000e+00> : vector<240x8xf32>
    %25 = tpu.matmul %22, %24, %cst_16 {dimension_numbers = #tpu.dot_dimension_numbers<[1], [0], [0], [1], [0, 0, 1, 1], [], []>} : vector<240x8xf32>, vector<8x8xf32>, vector<240x8xf32> -> vector<240x8xf32>
    %26 = arith.addf %17, %25 : vector<240x8xf32>
    %c1_i32 = arith.constant 1 : i32
    %27 = arith.addi %0, %c1_i32 : i32
    %c0_17 = arith.constant 0 : index
    %28 = arith.index_cast %27 : i32 to index
    %c0_18 = arith.constant 0 : index
    %c0_19 = arith.constant 0 : index
    %29 = vector.load %arg2[%c0_17, %28, %c0_18, %c0_19] : memref<1x20x26x8xf32, #tpu.memory_space<vmem>>, vector<1x10x24x8xf32>
    %30 = vector.shape_cast %29 : vector<1x10x24x8xf32> to vector<10x24x8xf32>
    %31 = vector.shape_cast %30 : vector<10x24x8xf32> to vector<240x8xf32>
    %c1_20 = arith.constant 1 : index
    %c0_21 = arith.constant 0 : index
    %c0_22 = arith.constant 0 : index
    %32 = vector.load %arg3[%c1_20, %c0_21, %c0_22] : memref<3x24x8xf32, #tpu.memory_space<vmem>>, vector<1x8x8xf32>
    %33 = vector.shape_cast %32 : vector<1x8x8xf32> to vector<8x8xf32>
    %cst_23 = arith.constant dense<0.000000e+00> : vector<240x8xf32>
    %34 = tpu.matmul %31, %33, %cst_23 {dimension_numbers = #tpu.dot_dimension_numbers<[1], [0], [0], [1], [0, 0, 1, 1], [], []>} : vector<240x8xf32>, vector<8x8xf32>, vector<240x8xf32> -> vector<240x8xf32>
    %35 = arith.addf %26, %34 : vector<240x8xf32>
    %c1_i32_24 = arith.constant 1 : i32
    %36 = arith.addi %0, %c1_i32_24 : i32
    %c0_25 = arith.constant 0 : index
    %37 = arith.index_cast %36 : i32 to index
    %c1_26 = arith.constant 1 : index
    %c0_27 = arith.constant 0 : index
    %38 = vector.load %arg2[%c0_25, %37, %c1_26, %c0_27] : memref<1x20x26x8xf32, #tpu.memory_space<vmem>>, vector<1x10x24x8xf32>
    %39 = vector.shape_cast %38 : vector<1x10x24x8xf32> to vector<10x24x8xf32>
    %40 = vector.shape_cast %39 : vector<10x24x8xf32> to vector<240x8xf32>
    %c1_28 = arith.constant 1 : index
    %c8_29 = arith.constant 8 : index
    %c0_30 = arith.constant 0 : index
    %41 = vector.load %arg3[%c1_28, %c8_29, %c0_30] : memref<3x24x8xf32, #tpu.memory_space<vmem>>, vector<1x8x8xf32>
    %42 = vector.shape_cast %41 : vector<1x8x8xf32> to vector<8x8xf32>
    %cst_31 = arith.constant dense<0.000000e+00> : vector<240x8xf32>
    %43 = tpu.matmul %40, %42, %cst_31 {dimension_numbers = #tpu.dot_dimension_numbers<[1], [0], [0], [1], [0, 0, 1, 1], [], []>} : vector<240x8xf32>, vector<8x8xf32>, vector<240x8xf32> -> vector<240x8xf32>
    %44 = arith.addf %35, %43 : vector<240x8xf32>
    %c1_i32_32 = arith.constant 1 : i32
    %45 = arith.addi %0, %c1_i32_32 : i32
    %c0_33 = arith.constant 0 : index
    %46 = arith.index_cast %45 : i32 to index
    %c2_34 = arith.constant 2 : index
    %c0_35 = arith.constant 0 : index
    %47 = vector.load %arg2[%c0_33, %46, %c2_34, %c0_35] : memref<1x20x26x8xf32, #tpu.memory_space<vmem>>, vector<1x10x24x8xf32>
    %48 = vector.shape_cast %47 : vector<1x10x24x8xf32> to vector<10x24x8xf32>
    %49 = vector.shape_cast %48 : vector<10x24x8xf32> to vector<240x8xf32>
    %c1_36 = arith.constant 1 : index
    %c16_37 = arith.constant 16 : index
    %c0_38 = arith.constant 0 : index
    %50 = vector.load %arg3[%c1_36, %c16_37, %c0_38] : memref<3x24x8xf32, #tpu.memory_space<vmem>>, vector<1x8x8xf32>
    %51 = vector.shape_cast %50 : vector<1x8x8xf32> to vector<8x8xf32>
    %cst_39 = arith.constant dense<0.000000e+00> : vector<240x8xf32>
    %52 = tpu.matmul %49, %51, %cst_39 {dimension_numbers = #tpu.dot_dimension_numbers<[1], [0], [0], [1], [0, 0, 1, 1], [], []>} : vector<240x8xf32>, vector<8x8xf32>, vector<240x8xf32> -> vector<240x8xf32>
    %53 = arith.addf %44, %52 : vector<240x8xf32>
    %c2_i32 = arith.constant 2 : i32
    %54 = arith.addi %0, %c2_i32 : i32
    %c0_40 = arith.constant 0 : index
    %55 = arith.index_cast %54 : i32 to index
    %c0_41 = arith.constant 0 : index
    %c0_42 = arith.constant 0 : index
    %56 = vector.load %arg2[%c0_40, %55, %c0_41, %c0_42] : memref<1x20x26x8xf32, #tpu.memory_space<vmem>>, vector<1x10x24x8xf32>
    %57 = vector.shape_cast %56 : vector<1x10x24x8xf32> to vector<10x24x8xf32>
    %58 = vector.shape_cast %57 : vector<10x24x8xf32> to vector<240x8xf32>
    %c2_43 = arith.constant 2 : index
    %c0_44 = arith.constant 0 : index
    %c0_45 = arith.constant 0 : index
    %59 = vector.load %arg3[%c2_43, %c0_44, %c0_45] : memref<3x24x8xf32, #tpu.memory_space<vmem>>, vector<1x8x8xf32>
    %60 = vector.shape_cast %59 : vector<1x8x8xf32> to vector<8x8xf32>
    %cst_46 = arith.constant dense<0.000000e+00> : vector<240x8xf32>
    %61 = tpu.matmul %58, %60, %cst_46 {dimension_numbers = #tpu.dot_dimension_numbers<[1], [0], [0], [1], [0, 0, 1, 1], [], []>} : vector<240x8xf32>, vector<8x8xf32>, vector<240x8xf32> -> vector<240x8xf32>
    %62 = arith.addf %53, %61 : vector<240x8xf32>
    %c2_i32_47 = arith.constant 2 : i32
    %63 = arith.addi %0, %c2_i32_47 : i32
    %c0_48 = arith.constant 0 : index
    %64 = arith.index_cast %63 : i32 to index
    %c1_49 = arith.constant 1 : index
    %c0_50 = arith.constant 0 : index
    %65 = vector.load %arg2[%c0_48, %64, %c1_49, %c0_50] : memref<1x20x26x8xf32, #tpu.memory_space<vmem>>, vector<1x10x24x8xf32>
    %66 = vector.shape_cast %65 : vector<1x10x24x8xf32> to vector<10x24x8xf32>
    %67 = vector.shape_cast %66 : vector<10x24x8xf32> to vector<240x8xf32>
    %c2_51 = arith.constant 2 : index
    %c8_52 = arith.constant 8 : index
    %c0_53 = arith.constant 0 : index
    %68 = vector.load %arg3[%c2_51, %c8_52, %c0_53] : memref<3x24x8xf32, #tpu.memory_space<vmem>>, vector<1x8x8xf32>
    %69 = vector.shape_cast %68 : vector<1x8x8xf32> to vector<8x8xf32>
    %cst_54 = arith.constant dense<0.000000e+00> : vector<240x8xf32>
    %70 = tpu.matmul %67, %69, %cst_54 {dimension_numbers = #tpu.dot_dimension_numbers<[1], [0], [0], [1], [0, 0, 1, 1], [], []>} : vector<240x8xf32>, vector<8x8xf32>, vector<240x8xf32> -> vector<240x8xf32>
    %71 = arith.addf %62, %70 : vector<240x8xf32>
    %c2_i32_55 = arith.constant 2 : i32
    %72 = arith.addi %0, %c2_i32_55 : i32
    %c0_56 = arith.constant 0 : index
    %73 = arith.index_cast %72 : i32 to index
    %c2_57 = arith.constant 2 : index
    %c0_58 = arith.constant 0 : index
    %74 = vector.load %arg2[%c0_56, %73, %c2_57, %c0_58] : memref<1x20x26x8xf32, #tpu.memory_space<vmem>>, vector<1x10x24x8xf32>
    %75 = vector.shape_cast %74 : vector<1x10x24x8xf32> to vector<10x24x8xf32>
    %76 = vector.shape_cast %75 : vector<10x24x8xf32> to vector<240x8xf32>
    %c2_59 = arith.constant 2 : index
    %c16_60 = arith.constant 16 : index
    %c0_61 = arith.constant 0 : index
    %77 = vector.load %arg3[%c2_59, %c16_60, %c0_61] : memref<3x24x8xf32, #tpu.memory_space<vmem>>, vector<1x8x8xf32>
    %78 = vector.shape_cast %77 : vector<1x8x8xf32> to vector<8x8xf32>
    %cst_62 = arith.constant dense<0.000000e+00> : vector<240x8xf32>
    %79 = tpu.matmul %76, %78, %cst_62 {dimension_numbers = #tpu.dot_dimension_numbers<[1], [0], [0], [1], [0, 0, 1, 1], [], []>} : vector<240x8xf32>, vector<8x8xf32>, vector<240x8xf32> -> vector<240x8xf32>
    %80 = arith.addf %71, %79 : vector<240x8xf32>
    %c0_63 = arith.constant 0 : index
    %c0_64 = arith.constant 0 : index
    %81 = vector.load %arg4[%c0_63, %c0_64] : memref<1x8xf32, #tpu.memory_space<vmem>>, vector<1x8xf32>
    %82 = vector.broadcast %81 : vector<1x8xf32> to vector<240x8xf32>
    %83 = arith.addf %80, %82 : vector<240x8xf32>
    %cst_65 = arith.constant 0.000000e+00 : f32
    %84 = vector.broadcast %cst_65 : f32 to vector<240x8xf32>
    %85 = arith.maximumf %83, %84 : vector<240x8xf32>
    %86 = vector.shape_cast %85 : vector<240x8xf32> to vector<10x24x8xf32>
    %87 = tpu.iota {dimensions = array<i32: 0>} : vector<10x24x1xi32>
    %c1_i32_66 = arith.constant 1 : i32
    %88 = arith.subi %0, %c1_i32_66 : i32
    %89 = vector.broadcast %88 : i32 to vector<10x24x1xi32>
    %90 = arith.addi %87, %89 : vector<10x24x1xi32>
    %91 = tpu.iota {dimensions = array<i32: 1>} : vector<10x24x1xi32>
    %c1_i32_67 = arith.constant 1 : i32
    %92 = vector.broadcast %c1_i32_67 : i32 to vector<10x24x1xi32>
    %93 = arith.subi %91, %92 : vector<10x24x1xi32>
    %c0_i32_68 = arith.constant 0 : i32
    %94 = vector.broadcast %c0_i32_68 : i32 to vector<10x24x1xi32>
    %95 = arith.cmpi sge, %90, %94 : vector<10x24x1xi32>
    %c16_i32 = arith.constant 16 : i32
    %96 = vector.broadcast %c16_i32 : i32 to vector<10x24x1xi32>
    %97 = arith.cmpi slt, %90, %96 : vector<10x24x1xi32>
    %98 = arith.andi %95, %97 : vector<10x24x1xi1>
    %c0_i32_69 = arith.constant 0 : i32
    %99 = vector.broadcast %c0_i32_69 : i32 to vector<10x24x1xi32>
    %100 = arith.cmpi sge, %93, %99 : vector<10x24x1xi32>
    %101 = arith.andi %98, %100 : vector<10x24x1xi1>
    %c16_i32_70 = arith.constant 16 : i32
    %102 = vector.broadcast %c16_i32_70 : i32 to vector<10x24x1xi32>
    %103 = arith.cmpi slt, %93, %102 : vector<10x24x1xi32>
    %104 = arith.andi %101, %103 : vector<10x24x1xi1>
    %cst_71 = arith.constant 0.000000e+00 : f32
    %105 = vector.shape_cast %104 : vector<10x24x1xi1> to vector<10x24x1xi1>
    %106 = vector.broadcast %105 : vector<10x24x1xi1> to vector<10x24x8xi1>
    %107 = vector.broadcast %cst_71 : f32 to vector<10x24x8xf32>
    %108 = arith.select %106, %86, %107 : vector<10x24x8xi1>, vector<10x24x8xf32>
    %109 = vector.extract_strided_slice %108 {offsets = [0, 0, 0], sizes = [8, 16, 8], strides = [1, 1, 1]} : vector<10x24x8xf32> to vector<8x16x8xf32>
    %110 = vector.shape_cast %109 : vector<8x16x8xf32> to vector<128x8xf32>
    %c0_72 = arith.constant 0 : index
    %c0_73 = arith.constant 0 : index
    %c0_74 = arith.constant 0 : index
    %111 = vector.load %arg5[%c0_72, %c0_73, %c0_74] : memref<3x24x8xf32, #tpu.memory_space<vmem>>, vector<1x8x8xf32>
    %112 = vector.shape_cast %111 : vector<1x8x8xf32> to vector<8x8xf32>
    %cst_75 = arith.constant dense<0.000000e+00> : vector<128x8xf32>
    %113 = tpu.matmul %110, %112, %cst_75 {dimension_numbers = #tpu.dot_dimension_numbers<[1], [0], [0], [1], [0, 0, 1, 1], [], []>} : vector<128x8xf32>, vector<8x8xf32>, vector<128x8xf32> -> vector<128x8xf32>
    %114 = vector.extract_strided_slice %108 {offsets = [0, 1, 0], sizes = [8, 16, 8], strides = [1, 1, 1]} : vector<10x24x8xf32> to vector<8x16x8xf32>
    %115 = vector.shape_cast %114 : vector<8x16x8xf32> to vector<128x8xf32>
    %c0_76 = arith.constant 0 : index
    %c8_77 = arith.constant 8 : index
    %c0_78 = arith.constant 0 : index
    %116 = vector.load %arg5[%c0_76, %c8_77, %c0_78] : memref<3x24x8xf32, #tpu.memory_space<vmem>>, vector<1x8x8xf32>
    %117 = vector.shape_cast %116 : vector<1x8x8xf32> to vector<8x8xf32>
    %cst_79 = arith.constant dense<0.000000e+00> : vector<128x8xf32>
    %118 = tpu.matmul %115, %117, %cst_79 {dimension_numbers = #tpu.dot_dimension_numbers<[1], [0], [0], [1], [0, 0, 1, 1], [], []>} : vector<128x8xf32>, vector<8x8xf32>, vector<128x8xf32> -> vector<128x8xf32>
    %119 = arith.addf %113, %118 : vector<128x8xf32>
    %120 = vector.extract_strided_slice %108 {offsets = [0, 2, 0], sizes = [8, 16, 8], strides = [1, 1, 1]} : vector<10x24x8xf32> to vector<8x16x8xf32>
    %121 = vector.shape_cast %120 : vector<8x16x8xf32> to vector<128x8xf32>
    %c0_80 = arith.constant 0 : index
    %c16_81 = arith.constant 16 : index
    %c0_82 = arith.constant 0 : index
    %122 = vector.load %arg5[%c0_80, %c16_81, %c0_82] : memref<3x24x8xf32, #tpu.memory_space<vmem>>, vector<1x8x8xf32>
    %123 = vector.shape_cast %122 : vector<1x8x8xf32> to vector<8x8xf32>
    %cst_83 = arith.constant dense<0.000000e+00> : vector<128x8xf32>
    %124 = tpu.matmul %121, %123, %cst_83 {dimension_numbers = #tpu.dot_dimension_numbers<[1], [0], [0], [1], [0, 0, 1, 1], [], []>} : vector<128x8xf32>, vector<8x8xf32>, vector<128x8xf32> -> vector<128x8xf32>
    %125 = arith.addf %119, %124 : vector<128x8xf32>
    %126 = vector.extract_strided_slice %108 {offsets = [1, 0, 0], sizes = [8, 16, 8], strides = [1, 1, 1]} : vector<10x24x8xf32> to vector<8x16x8xf32>
    %127 = vector.shape_cast %126 : vector<8x16x8xf32> to vector<128x8xf32>
    %c1_84 = arith.constant 1 : index
    %c0_85 = arith.constant 0 : index
    %c0_86 = arith.constant 0 : index
    %128 = vector.load %arg5[%c1_84, %c0_85, %c0_86] : memref<3x24x8xf32, #tpu.memory_space<vmem>>, vector<1x8x8xf32>
    %129 = vector.shape_cast %128 : vector<1x8x8xf32> to vector<8x8xf32>
    %cst_87 = arith.constant dense<0.000000e+00> : vector<128x8xf32>
    %130 = tpu.matmul %127, %129, %cst_87 {dimension_numbers = #tpu.dot_dimension_numbers<[1], [0], [0], [1], [0, 0, 1, 1], [], []>} : vector<128x8xf32>, vector<8x8xf32>, vector<128x8xf32> -> vector<128x8xf32>
    %131 = arith.addf %125, %130 : vector<128x8xf32>
    %132 = vector.extract_strided_slice %108 {offsets = [1, 1, 0], sizes = [8, 16, 8], strides = [1, 1, 1]} : vector<10x24x8xf32> to vector<8x16x8xf32>
    %133 = vector.shape_cast %132 : vector<8x16x8xf32> to vector<128x8xf32>
    %c1_88 = arith.constant 1 : index
    %c8_89 = arith.constant 8 : index
    %c0_90 = arith.constant 0 : index
    %134 = vector.load %arg5[%c1_88, %c8_89, %c0_90] : memref<3x24x8xf32, #tpu.memory_space<vmem>>, vector<1x8x8xf32>
    %135 = vector.shape_cast %134 : vector<1x8x8xf32> to vector<8x8xf32>
    %cst_91 = arith.constant dense<0.000000e+00> : vector<128x8xf32>
    %136 = tpu.matmul %133, %135, %cst_91 {dimension_numbers = #tpu.dot_dimension_numbers<[1], [0], [0], [1], [0, 0, 1, 1], [], []>} : vector<128x8xf32>, vector<8x8xf32>, vector<128x8xf32> -> vector<128x8xf32>
    %137 = arith.addf %131, %136 : vector<128x8xf32>
    %138 = vector.extract_strided_slice %108 {offsets = [1, 2, 0], sizes = [8, 16, 8], strides = [1, 1, 1]} : vector<10x24x8xf32> to vector<8x16x8xf32>
    %139 = vector.shape_cast %138 : vector<8x16x8xf32> to vector<128x8xf32>
    %c1_92 = arith.constant 1 : index
    %c16_93 = arith.constant 16 : index
    %c0_94 = arith.constant 0 : index
    %140 = vector.load %arg5[%c1_92, %c16_93, %c0_94] : memref<3x24x8xf32, #tpu.memory_space<vmem>>, vector<1x8x8xf32>
    %141 = vector.shape_cast %140 : vector<1x8x8xf32> to vector<8x8xf32>
    %cst_95 = arith.constant dense<0.000000e+00> : vector<128x8xf32>
    %142 = tpu.matmul %139, %141, %cst_95 {dimension_numbers = #tpu.dot_dimension_numbers<[1], [0], [0], [1], [0, 0, 1, 1], [], []>} : vector<128x8xf32>, vector<8x8xf32>, vector<128x8xf32> -> vector<128x8xf32>
    %143 = arith.addf %137, %142 : vector<128x8xf32>
    %144 = vector.extract_strided_slice %108 {offsets = [2, 0, 0], sizes = [8, 16, 8], strides = [1, 1, 1]} : vector<10x24x8xf32> to vector<8x16x8xf32>
    %145 = vector.shape_cast %144 : vector<8x16x8xf32> to vector<128x8xf32>
    %c2_96 = arith.constant 2 : index
    %c0_97 = arith.constant 0 : index
    %c0_98 = arith.constant 0 : index
    %146 = vector.load %arg5[%c2_96, %c0_97, %c0_98] : memref<3x24x8xf32, #tpu.memory_space<vmem>>, vector<1x8x8xf32>
    %147 = vector.shape_cast %146 : vector<1x8x8xf32> to vector<8x8xf32>
    %cst_99 = arith.constant dense<0.000000e+00> : vector<128x8xf32>
    %148 = tpu.matmul %145, %147, %cst_99 {dimension_numbers = #tpu.dot_dimension_numbers<[1], [0], [0], [1], [0, 0, 1, 1], [], []>} : vector<128x8xf32>, vector<8x8xf32>, vector<128x8xf32> -> vector<128x8xf32>
    %149 = arith.addf %143, %148 : vector<128x8xf32>
    %150 = vector.extract_strided_slice %108 {offsets = [2, 1, 0], sizes = [8, 16, 8], strides = [1, 1, 1]} : vector<10x24x8xf32> to vector<8x16x8xf32>
    %151 = vector.shape_cast %150 : vector<8x16x8xf32> to vector<128x8xf32>
    %c2_100 = arith.constant 2 : index
    %c8_101 = arith.constant 8 : index
    %c0_102 = arith.constant 0 : index
    %152 = vector.load %arg5[%c2_100, %c8_101, %c0_102] : memref<3x24x8xf32, #tpu.memory_space<vmem>>, vector<1x8x8xf32>
    %153 = vector.shape_cast %152 : vector<1x8x8xf32> to vector<8x8xf32>
    %cst_103 = arith.constant dense<0.000000e+00> : vector<128x8xf32>
    %154 = tpu.matmul %151, %153, %cst_103 {dimension_numbers = #tpu.dot_dimension_numbers<[1], [0], [0], [1], [0, 0, 1, 1], [], []>} : vector<128x8xf32>, vector<8x8xf32>, vector<128x8xf32> -> vector<128x8xf32>
    %155 = arith.addf %149, %154 : vector<128x8xf32>
    %156 = vector.extract_strided_slice %108 {offsets = [2, 2, 0], sizes = [8, 16, 8], strides = [1, 1, 1]} : vector<10x24x8xf32> to vector<8x16x8xf32>
    %157 = vector.shape_cast %156 : vector<8x16x8xf32> to vector<128x8xf32>
    %c2_104 = arith.constant 2 : index
    %c16_105 = arith.constant 16 : index
    %c0_106 = arith.constant 0 : index
    %158 = vector.load %arg5[%c2_104, %c16_105, %c0_106] : memref<3x24x8xf32, #tpu.memory_space<vmem>>, vector<1x8x8xf32>
    %159 = vector.shape_cast %158 : vector<1x8x8xf32> to vector<8x8xf32>
    %cst_107 = arith.constant dense<0.000000e+00> : vector<128x8xf32>
    %160 = tpu.matmul %157, %159, %cst_107 {dimension_numbers = #tpu.dot_dimension_numbers<[1], [0], [0], [1], [0, 0, 1, 1], [], []>} : vector<128x8xf32>, vector<8x8xf32>, vector<128x8xf32> -> vector<128x8xf32>
    %161 = arith.addf %155, %160 : vector<128x8xf32>
    %c0_108 = arith.constant 0 : index
    %c0_109 = arith.constant 0 : index
    %162 = vector.load %arg6[%c0_108, %c0_109] : memref<1x8xf32, #tpu.memory_space<vmem>>, vector<1x8xf32>
    %163 = vector.broadcast %162 : vector<1x8xf32> to vector<128x8xf32>
    %164 = arith.addf %161, %163 : vector<128x8xf32>
    %cst_110 = arith.constant 0.000000e+00 : f32
    %165 = vector.broadcast %cst_110 : f32 to vector<128x8xf32>
    %166 = arith.maximumf %164, %165 : vector<128x8xf32>
    %167 = vector.shape_cast %166 : vector<128x8xf32> to vector<8x16x8xf32>
    %c0_111 = arith.constant 0 : index
    %c0_112 = arith.constant 0 : index
    %c0_113 = arith.constant 0 : index
    %c0_114 = arith.constant 0 : index
    %168 = vector.load %arg7[%c0_111, %c0_112, %c0_113, %c0_114] : memref<1x8x16x8xf32, #tpu.memory_space<vmem>>, vector<1x8x16x8xf32>
    %169 = vector.shape_cast %168 : vector<1x8x16x8xf32> to vector<8x16x8xf32>
    %170 = vector.shape_cast %167 : vector<8x16x8xf32> to vector<1x8x16x8xf32>
    tpu.vector_store %arg7[%c0_111, %c0_112, %c0_113, %c0_114], %170 {strides = array<i32>} : memref<1x8x16x8xf32, #tpu.memory_space<vmem>>, vector<1x8x16x8xf32>,
    return
  }
  func.func @transform_0(%arg0: i32, %arg1: i32) -> (i32, i32, i32, i32) {
    %c0_i32 = arith.constant 0 : i32
    %c0_i32_0 = arith.constant 0 : i32
    %c0_i32_1 = arith.constant 0 : i32
    %c0_i32_2 = arith.constant 0 : i32
    return %arg0, %c0_i32, %c0_i32_0, %c0_i32_1 : i32, i32, i32, i32
  }
  func.func @transform_1(%arg0: i32, %arg1: i32) -> (i32, i32, i32) {
    %c0_i32 = arith.constant 0 : i32
    %c0_i32_0 = arith.constant 0 : i32
    %c0_i32_1 = arith.constant 0 : i32
    %c0_i32_2 = arith.constant 0 : i32
    return %c0_i32, %c0_i32_0, %c0_i32_1 : i32, i32, i32
  }
  func.func @transform_2(%arg0: i32, %arg1: i32) -> (i32, i32) {
    %c0_i32 = arith.constant 0 : i32
    %c0_i32_0 = arith.constant 0 : i32
    %c0_i32_1 = arith.constant 0 : i32
    return %c0_i32, %c0_i32_0 : i32, i32
  }
  func.func @transform_3(%arg0: i32, %arg1: i32) -> (i32, i32, i32) {
    %c0_i32 = arith.constant 0 : i32
    %c0_i32_0 = arith.constant 0 : i32
    %c0_i32_1 = arith.constant 0 : i32
    %c0_i32_2 = arith.constant 0 : i32
    return %c0_i32, %c0_i32_0, %c0_i32_1 : i32, i32, i32
  }
  func.func @transform_4(%arg0: i32, %arg1: i32) -> (i32, i32) {
    %c0_i32 = arith.constant 0 : i32
    %c0_i32_0 = arith.constant 0 : i32
    %c0_i32_1 = arith.constant 0 : i32
    return %c0_i32, %c0_i32_0 : i32, i32
  }
  func.func @transform_5(%arg0: i32, %arg1: i32) -> (i32, i32, i32, i32) {
    %c0_i32 = arith.constant 0 : i32
    %c0_i32_0 = arith.constant 0 : i32
    %c0_i32_1 = arith.constant 0 : i32
    return %arg0, %arg1, %c0_i32, %c0_i32_0 : i32, i32, i32, i32
  }
}

</mosaic_0001>

<llo_original>
// kernel: tpu_custom_call.1
$region0: #{tpu_custom_call.1}
  #allocation0 [shape = 'u32[]', space=smem, size = 0x4, offset = 0x4, fixed_abs, tag = 'smem constant byte address 0x4 - core index']
  #allocation1 [shape = 'u32[144,128]{1,0:T(1,128)}', space=vmem, size = 0x12000, scoped, tag = 'internal scratch']
  %s0 = inlined_call_operand.vmem [shape: f32[2,20,26,8], index: 0, kind: input, shape index: {}]
  %s1 = inlined_call_operand.vmem [shape: f32[3,24,8], index: 1, kind: input, shape index: {}]
  %s2 = inlined_call_operand.vmem [shape: f32[1,8], index: 2, kind: input, shape index: {}]
  %s3 = inlined_call_operand.vmem [shape: f32[3,24,8], index: 3, kind: input, shape index: {}]
  %s4 = inlined_call_operand.vmem [shape: f32[1,8], index: 4, kind: input, shape index: {}]
  %s5 = inlined_call_operand.vmem [shape: f32[2,16,16,8], index: 5, kind: output, shape index: {}]
  %s6 = sld [smem:[#allocation0]]
  $region53: #{tpu_custom_call.1} parent=0
    _
  %s8 = ssub.s32 1, %s6
  %s9 = scalar_select 0, %s8, %s6
  loop: start=0, step=1, limit=6
  $region2: #{tpu_custom_call.1} parent=0 // loop_pre_header
    _
  $region3: #{tpu_custom_call.1} parent=0 // loop_header
    %s11 = sphi 0, %s15
    %p12 = scmp.ge.s32.totalorder %s11, 6
    %s18 = sphi 0, %s30
    %s19 = sphi 0, %s26
    %s20 = sphi 0, %s18
    %s21 = sphi 0, %s19
    %s22 = sphi 0, %s20
    %s23 = sphi 0, %s21
    %s33 = sphi 0, %s35
    %s36 = sphi 0, %s33
    %s37 = sphi 0, %s36
    %s53 = sphi 0, %s37
    %s57 = sphi 0, %s57
    %s59 = sphi 0, %s57
    %s60 = sphi 0, %s59
    %s74 = sphi 0, %s60
    %s78 = sphi 0, %s78
    %s80 = sphi 0, %s78
    %s81 = sphi 0, %s80
    %s95 = sphi 0, %s81
    %s99 = sphi 0, %s99
    %s101 = sphi 0, %s99
    %s102 = sphi 0, %s101
    %s116 = sphi 0, %s102
    %s120 = sphi 0, %s120
    %s122 = sphi 0, %s120
    %s123 = sphi 0, %s122
    %s137 = sphi 0, %s123
    %s145 = sphi 0, %s147
    %s148 = sphi 0, %s145
    %s149 = sphi 0, %s148
    %s165 = sphi 0, %s149
  $region4: #{tpu_custom_call.1} parent=0 // loop_header_branch
    %14 = sbr.rel (%p12) target = $region8
  $region5: #{tpu_custom_call.1} parent=0 // loop_body
    %s16 = ssub.s32 %s11, 1
    %s17 = ssub.s32 %s11, 2
    %s24 = sadd.s32 1, %s19
    %p25 = scmp.ge.s32.totalorder %s24, 2
    %s26 = scalar_select %p25, 0, %s24
    %s27 = sadd.s32 1, %s18
    %s28 = scalar_select %p25, %s27, %s18
    %p29 = scmp.ge.s32.totalorder %s28, 2
    %s30 = scalar_select %p29, 0, %s28
    %s31 = ssub.s32 %s18, %s30
    %p32 = scmp.eq.s32.totalorder %s31, 0
    %s34 = sadd.s32 %s33, 1
    %s35 = scalar_select %p32, %s33, %s34
    %p38 = pneg %p32
    %p39 = scmp.eq.s32.totalorder %s11, 3
    %p40 = por %p38, %p39
    %p41 = scmp.ne.s32.totalorder %s33, %s36
    %p42 = scmp.eq.s32.totalorder %s11, 0
    %p43 = por %p41, %p42
    %p44 = scmp.ne.s32.totalorder %s33, %s36
    %p45 = scmp.eq.s32.totalorder %s16, 3
    %p46 = por %p44, %p45
    %p47 = scmp.ne.s32.totalorder %s36, %s37
    %p48 = scmp.eq.s32.totalorder %s16, 0
    %p49 = por %p47, %p48
    %p50 = scmp.ne.s32.totalorder %s36, %s37
    %p51 = scmp.eq.s32.totalorder %s17, 3
    %p52 = por %p50, %p51
    %p54 = scmp.ne.s32.totalorder %s37, %s53
    %p55 = scmp.eq.s32.totalorder %s17, 0
    %p56 = por %p54, %p55
    %s58 = sadd.s32 %s57, 1
    %p61 = scmp.eq.s32.totalorder %s11, 3
    %p62 = scmp.ne.s32.totalorder %s57, %s59
    %p63 = scmp.eq.s32.totalorder %s11, 0
    %p64 = por %p62, %p63
    %p65 = scmp.ne.s32.totalorder %s57, %s59
    %p66 = scmp.eq.s32.totalorder %s16, 3
    %p67 = por %p65, %p66
    %p68 = scmp.ne.s32.totalorder %s59, %s60
    %p69 = scmp.eq.s32.totalorder %s16, 0
    %p70 = por %p68, %p69
    %p71 = scmp.ne.s32.totalorder %s59, %s60
    %p72 = scmp.eq.s32.totalorder %s17, 3
    %p73 = por %p71, %p72
    %p75 = scmp.ne.s32.totalorder %s60, %s74
    %p76 = scmp.eq.s32.totalorder %s17, 0
    %p77 = por %p75, %p76
    %s79 = sadd.s32 %s78, 1
    %p82 = scmp.eq.s32.totalorder %s11, 3
    %p83 = scmp.ne.s32.totalorder %s78, %s80
    %p84 = scmp.eq.s32.totalorder %s11, 0
    %p85 = por %p83, %p84
    %p86 = scmp.ne.s32.totalorder %s78, %s80
    %p87 = scmp.eq.s32.totalorder %s16, 3
    %p88 = por %p86, %p87
    %p89 = scmp.ne.s32.totalorder %s80, %s81
    %p90 = scmp.eq.s32.totalorder %s16, 0
    %p91 = por %p89, %p90
    %p92 = scmp.ne.s32.totalorder %s80, %s81
    %p93 = scmp.eq.s32.totalorder %s17, 3
    %p94 = por %p92, %p93
    %p96 = scmp.ne.s32.totalorder %s81, %s95
    %p97 = scmp.eq.s32.totalorder %s17, 0
    %p98 = por %p96, %p97
    %s100 = sadd.s32 %s99, 1
    %p103 = scmp.eq.s32.totalorder %s11, 3
    %p104 = scmp.ne.s32.totalorder %s99, %s101
    %p105 = scmp.eq.s32.totalorder %s11, 0
    %p106 = por %p104, %p105
    %p107 = scmp.ne.s32.totalorder %s99, %s101
    %p108 = scmp.eq.s32.totalorder %s16, 3
    %p109 = por %p107, %p108
    %p110 = scmp.ne.s32.totalorder %s101, %s102
    %p111 = scmp.eq.s32.totalorder %s16, 0
    %p112 = por %p110, %p111
    %p113 = scmp.ne.s32.totalorder %s101, %s102
    %p114 = scmp.eq.s32.totalorder %s17, 3
    %p115 = por %p113, %p114
    %p117 = scmp.ne.s32.totalorder %s102, %s116
    %p118 = scmp.eq.s32.totalorder %s17, 0
    %p119 = por %p117, %p118
    %s121 = sadd.s32 %s120, 1
    %p124 = scmp.eq.s32.totalorder %s11, 3
    %p125 = scmp.ne.s32.totalorder %s120, %s122
    %p126 = scmp.eq.s32.totalorder %s11, 0
    %p127 = por %p125, %p126
    %p128 = scmp.ne.s32.totalorder %s120, %s122
    %p129 = scmp.eq.s32.totalorder %s16, 3
    %p130 = por %p128, %p129
    %p131 = scmp.ne.s32.totalorder %s122, %s123
    %p132 = scmp.eq.s32.totalorder %s16, 0
    %p133 = por %p131, %p132
    %p134 = scmp.ne.s32.totalorder %s122, %s123
    %p135 = scmp.eq.s32.totalorder %s17, 3
    %p136 = por %p134, %p135
    %p138 = scmp.ne.s32.totalorder %s123, %s137
    %p139 = scmp.eq.s32.totalorder %s17, 0
    %p140 = por %p138, %p139
    %s141 = ssub.s32 %s18, %s30
    %s142 = ssub.s32 %s19, %s26
    %s143 = sor.u32 %s141, %s142
    %p144 = scmp.eq.s32.totalorder %s143, 0
    %s146 = sadd.s32 %s145, 1
    %s147 = scalar_select %p144, %s145, %s146
    %p150 = pneg %p144
    %p151 = scmp.eq.s32.totalorder %s11, 3
    %p152 = por %p150, %p151
    %p153 = scmp.ne.s32.totalorder %s145, %s148
    %p154 = scmp.eq.s32.totalorder %s11, 0
    %p155 = por %p153, %p154
    %p156 = scmp.ne.s32.totalorder %s145, %s148
    %p157 = scmp.eq.s32.totalorder %s16, 3
    %p158 = por %p156, %p157
    %p159 = scmp.ne.s32.totalorder %s148, %s149
    %p160 = scmp.eq.s32.totalorder %s16, 0
    %p161 = por %p159, %p160
    %p162 = scmp.ne.s32.totalorder %s148, %s149
    %p163 = scmp.eq.s32.totalorder %s17, 3
    %p164 = por %p162, %p163
    %p166 = scmp.ne.s32.totalorder %s149, %s165
    %p167 = scmp.eq.s32.totalorder %s17, 0
    %p168 = por %p166, %p167
    %p169 = scmp.le.s32.totalorder 1, %s11
    %p170 = scmp.lt.s32.totalorder %s11, 5
    %p171 = pnand %p169, %p170
    %p172 = pneg %p171
    // Predicated region
    $region9: #{tpu_custom_call.1} parent=5 // pred_check
      _
    $region10: #{tpu_custom_call.1} parent=5 // pred_check_branch
      %174 = sbr.rel (%p171) target = $region12
    $region11: #{tpu_custom_call.1} parent=5 // pred_region
      %s175 = ssub.s32 %s11, 1
      // Predicated region
      $region13: #{tpu_custom_call.1} parent=11 // pred_check
        %p176 = pneg %p70
      $region14: #{tpu_custom_call.1} parent=11 // pred_check_branch
        %178 = sbr.rel (%p176) target = $region16
      $region15: #{tpu_custom_call.1} parent=11 // pred_region
        _
      $region16: #{tpu_custom_call.1} parent=11 // pred_fallthru
        _
      // Predicated region
      $region17: #{tpu_custom_call.1} parent=11 // pred_check
        %p179 = pneg %p91
      $region18: #{tpu_custom_call.1} parent=11 // pred_check_branch
        %181 = sbr.rel (%p179) target = $region20
      $region19: #{tpu_custom_call.1} parent=11 // pred_region
        _
      $region20: #{tpu_custom_call.1} parent=11 // pred_fallthru
        _
      // Predicated region
      $region21: #{tpu_custom_call.1} parent=11 // pred_check
        %p182 = pneg %p112
      $region22: #{tpu_custom_call.1} parent=11 // pred_check_branch
        %184 = sbr.rel (%p182) target = $region24
      $region23: #{tpu_custom_call.1} parent=11 // pred_region
        _
      $region24: #{tpu_custom_call.1} parent=11 // pred_fallthru
        _
      // Predicated region
      $region25: #{tpu_custom_call.1} parent=11 // pred_check
        %p185 = pneg %p133
      $region26: #{tpu_custom_call.1} parent=11 // pred_check_branch
        %187 = sbr.rel (%p185) target = $region28
      $region27: #{tpu_custom_call.1} parent=11 // pred_region
        _
      $region28: #{tpu_custom_call.1} parent=11 // pred_fallthru
        _
    $region12: #{tpu_custom_call.1} parent=5 // pred_fallthru
      _
    %p188 = scmp.lt.s32.totalorder %s11, 4
    // Predicated region
    $region29: #{tpu_custom_call.1} parent=5 // pred_check
      %p189 = pneg %p188
    $region30: #{tpu_custom_call.1} parent=5 // pred_check_branch
      %191 = sbr.rel (%p189) target = $region32
    $region31: #{tpu_custom_call.1} parent=5 // pred_region
      // Predicated region
      $region33: #{tpu_custom_call.1} parent=31 // pred_check
        %p192 = pneg %p43
      $region34: #{tpu_custom_call.1} parent=31 // pred_check_branch
        %194 = sbr.rel (%p192) target = $region36
      $region35: #{tpu_custom_call.1} parent=31 // pred_region
        %p195 = scmp.lt.s32.totalorder %s18, 1
        %s196 = scalar_select %p195, %s18, 1
        %s197 = smul.addr %s196, 80
        %s198 = smul.addr %s197, 8
        %s199 = scalar_lea.vmem %s0, %s198
      $region36: #{tpu_custom_call.1} parent=31 // pred_fallthru
        _
    $region32: #{tpu_custom_call.1} parent=5 // pred_fallthru
      _
    %p200 = scmp.le.s32.totalorder 1, %s11
    %p201 = scmp.lt.s32.totalorder %s11, 5
    %p202 = pnand %p200, %p201
    %p203 = pneg %p202
    // Predicated region
    $region37: #{tpu_custom_call.1} parent=5 // pred_check
      _
    $region38: #{tpu_custom_call.1} parent=5 // pred_check_branch
      %205 = sbr.rel (%p202) target = $region40
    $region39: #{tpu_custom_call.1} parent=5 // pred_region
      %s206 = ssub.s32 %s11, 1
      %p207 = scmp.lt.s32.totalorder %s20, 1
      %s208 = scalar_select %p207, %s20, 1
      %s209 = smul.addr %s208, 80
      %s210 = smul.addr %s209, 8
      %s211 = scalar_lea.vmem %s0, %s210
      %p212 = pneg %p49
      %p213 = pneg %p46
      %p214 = pneg %p70
      %p215 = pneg %p67
      %p216 = pneg %p91
      %p217 = pneg %p88
      %p218 = pneg %p112
      %p219 = pneg %p109
      %p220 = pneg %p133
      %p221 = pneg %p130
      %p222 = pneg %p161
      %p223 = pneg %p158
      %s224 = smul.u32 8, %s21
      %p225 = scmp.lt.s32.totalorder %s20, 1
      %s226 = scalar_select %p225, %s20, 1
      %p227 = scmp.lt.s32.totalorder %s224, 15
      %s228 = scalar_select %p227, %s224, 15
      %s229 = smul.addr %s228, 2
      %s230 = smul.addr %s226, 32
      %s231 = sadd.s32 %s229, %s230
      %s232 = smul.addr %s231, 8
      %s233 = scalar_lea.vmem %s5, %s232
      %p234 = scmp.lt.s32.totalorder %s20, 1
      %s235 = scalar_select %p234, %s20, 1
      %s236 = smul.addr %s235, 80
      %s237 = smul.addr %s236, 8
      %s238 = scalar_lea.vmem %s0, %s237
      %s239 = smul.u32 8, %s21
      %p240 = scmp.lt.s32.totalorder %s20, 1
      %s241 = scalar_select %p240, %s20, 1
      %p242 = scmp.lt.s32.totalorder %s239, 15
      %s243 = scalar_select %p242, %s239, 15
      %s244 = smul.addr %s243, 2
      %s245 = smul.addr %s241, 32
      %s246 = sadd.s32 %s244, %s245
      %s247 = smul.addr %s246, 8
      %s248 = scalar_lea.vmem %s5, %s247
      %s249 = smul.u32 8, %s21
      %s250 = smul.u32 %s21, 8
      %s251 = smul.u32 %s250, 32
      %s252 = scalar_lea.vmem %s238, %s251
      %v253 = vld [vmem:[%s252] sm:$0xff]
      %v254 = vld [vmem:[%s252 + $0x8] sm:$0xff]
      %v255 = vld [vmem:[%s252 + $0x10] sm:$0xff]
      %v256 = vld [vmem:[%s252 + $0x20] sm:$0xff]
      %v257 = vld [vmem:[%s252 + $0x28] sm:$0xff]
      %v258 = vld [vmem:[%s252 + $0x30] sm:$0xff]
      %v259 = vld [vmem:[%s252 + $0x40] sm:$0xff]
      %v260 = vld [vmem:[%s252 + $0x48] sm:$0xff]
      %v261 = vld [vmem:[%s252 + $0x50] sm:$0xff]
      %v262 = vld [vmem:[%s252 + $0x60] sm:$0xff]
      %v263 = vld [vmem:[%s252 + $0x68] sm:$0xff]
      %v264 = vld [vmem:[%s252 + $0x70] sm:$0xff]
      %v265 = vld [vmem:[%s252 + $0x80] sm:$0xff]
      %v266 = vld [vmem:[%s252 + $0x88] sm:$0xff]
      %v267 = vld [vmem:[%s252 + $0x90] sm:$0xff]
      %v268 = vld [vmem:[%s252 + $0xa0] sm:$0xff]
      %v269 = vld [vmem:[%s252 + $0xa8] sm:$0xff]
      %v270 = vld [vmem:[%s252 + $0xb0] sm:$0xff]
      %v271 = vld [vmem:[%s252 + $0xc0] sm:$0xff]
      %v272 = vld [vmem:[%s252 + $0xc8] sm:$0xff]
      %v273 = vld [vmem:[%s252 + $0xd0] sm:$0xff]
      %v274 = vld [vmem:[%s252 + $0xe0] sm:$0xff]
      %v275 = vld [vmem:[%s252 + $0xe8] sm:$0xff]
      %v276 = vld [vmem:[%s252 + $0xf0] sm:$0xff]
      %v277 = vld [vmem:[%s252 + $0x100] sm:$0xff]
      %v278 = vld [vmem:[%s252 + $0x108] sm:$0xff]
      %v279 = vld [vmem:[%s252 + $0x110] sm:$0xff]
      %v280 = vld [vmem:[%s252 + $0x120] sm:$0xff]
      %v281 = vld [vmem:[%s252 + $0x128] sm:$0xff]
      %v282 = vld [vmem:[%s252 + $0x130] sm:$0xff]
      %v283 = vld [vmem:[%s1] sm:$0xff]
      %v284 = vld [vmem:[%s252 + $0x1] sm:$0xff]
      %v285 = vld [vmem:[%s252 + $0x9] sm:$0xff]
      %v286 = vld [vmem:[%s252 + $0x11] sm:$0xff]
      %v287 = vld [vmem:[%s252 + $0x21] sm:$0xff]
      %v288 = vld [vmem:[%s252 + $0x29] sm:$0xff]
      %v289 = vld [vmem:[%s252 + $0x31] sm:$0xff]
      %v290 = vld [vmem:[%s252 + $0x41] sm:$0xff]
      %v291 = vld [vmem:[%s252 + $0x49] sm:$0xff]
      %v292 = vld [vmem:[%s252 + $0x51] sm:$0xff]
      %v293 = vld [vmem:[%s252 + $0x61] sm:$0xff]
      %v294 = vld [vmem:[%s252 + $0x69] sm:$0xff]
      %v295 = vld [vmem:[%s252 + $0x71] sm:$0xff]
      %v296 = vld [vmem:[%s252 + $0x81] sm:$0xff]
      %v297 = vld [vmem:[%s252 + $0x89] sm:$0xff]
      %v298 = vld [vmem:[%s252 + $0x91] sm:$0xff]
      %v299 = vld [vmem:[%s252 + $0xa1] sm:$0xff]
      %v300 = vld [vmem:[%s252 + $0xa9] sm:$0xff]
      %v301 = vld [vmem:[%s252 + $0xb1] sm:$0xff]
      %v302 = vld [vmem:[%s252 + $0xc1] sm:$0xff]
      %v303 = vld [vmem:[%s252 + $0xc9] sm:$0xff]
      %v304 = vld [vmem:[%s252 + $0xd1] sm:$0xff]
      %v305 = vld [vmem:[%s252 + $0xe1] sm:$0xff]
      %v306 = vld [vmem:[%s252 + $0xe9] sm:$0xff]
      %v307 = vld [vmem:[%s252 + $0xf1] sm:$0xff]
      %v308 = vld [vmem:[%s252 + $0x101] sm:$0xff]
      %v309 = vld [vmem:[%s252 + $0x109] sm:$0xff]
      %v310 = vld [vmem:[%s252 + $0x111] sm:$0xff]
      %v311 = vld [vmem:[%s252 + $0x121] sm:$0xff]
      %v312 = vld [vmem:[%s252 + $0x129] sm:$0xff]
      %v313 = vld [vmem:[%s252 + $0x131] sm:$0xff]
      %v314 = vld [vmem:[%s1 + $0x8] sm:$0xff]
      %vm315 = vcmask 64512
      %v317 = vsel %vm315, %v284, 0
      %v320 = vsel %vm315, %v285, 0
      %v323 = vsel %vm315, %v286, 0
      %v326 = vsel %vm315, %v287, 0
      %v329 = vsel %vm315, %v288, 0
      %v332 = vsel %vm315, %v289, 0
      %v335 = vsel %vm315, %v290, 0
      %v338 = vsel %vm315, %v291, 0
      %v341 = vsel %vm315, %v292, 0
      %v344 = vsel %vm315, %v293, 0
      %v347 = vsel %vm315, %v294, 0
      %v350 = vsel %vm315, %v295, 0
      %v353 = vsel %vm315, %v296, 0
      %v356 = vsel %vm315, %v297, 0
      %v359 = vsel %vm315, %v298, 0
      %v362 = vsel %vm315, %v299, 0
      %v365 = vsel %vm315, %v300, 0
      %v368 = vsel %vm315, %v301, 0
      %v371 = vsel %vm315, %v302, 0
      %v374 = vsel %vm315, %v303, 0
      %v377 = vsel %vm315, %v304, 0
      %v380 = vsel %vm315, %v305, 0
      %v383 = vsel %vm315, %v306, 0
      %v386 = vsel %vm315, %v307, 0
      %v389 = vsel %vm315, %v308, 0
      %v392 = vsel %vm315, %v309, 0
      %v395 = vsel %vm315, %v310, 0
      %v398 = vsel %vm315, %v311, 0
      %v401 = vsel %vm315, %v312, 0
      %v404 = vsel %vm315, %v313, 0
      %406 = vmatprep.subr.mxu0 0.0
      %407 = vmatpush1.msra.mxu0 0.0
      %408 = vmatprep.subr.mxu0 0.0
      %409 = vmatpush1.msra.mxu0 0.0
      %410 = vmatprep.subr.mxu0 0.0
      %411 = vmatpush1.msra.mxu0 0.0
      %412 = vmatprep.subr.mxu0 0.0
      %413 = vmatpush1.msra.mxu0 0.0
      %414 = vmatprep.subr.mxu0 0.0
      %415 = vmatpush1.msra.mxu0 0.0
      %416 = vmatprep.subr.mxu0 0.0
      %417 = vmatpush1.msra.mxu0 0.0
      %418 = vmatprep.subr.mxu0 0.0
      %419 = vmatpush1.msra.mxu0 0.0
      %420 = vmatprep.subr.mxu0 0.0
      %421 = vmatpush1.msra.mxu0 0.0
      %422 = vmatprep.subr.mxu0 0.0
      %423 = vmatpush1.msra.mxu0 0.0
      %424 = vmatprep.subr.mxu0 0.0
      %425 = vmatpush1.msra.mxu0 0.0
      %426 = vmatprep.subr.mxu0 0.0
      %427 = vmatpush1.msra.mxu0 0.0
      %428 = vmatprep.subr.mxu0 0.0
      %429 = vmatpush1.msra.mxu0 0.0
      %430 = vmatprep.subr.mxu0 0.0
      %431 = vmatpush1.msra.mxu0 0.0
      %432 = vmatprep.subr.mxu0 0.0
      %433 = vmatpush1.msra.mxu0 0.0
      %434 = vmatprep.subr.mxu0 0.0
      %435 = vmatpush1.msra.mxu0 0.0
      %436 = vmatprep.subr.mxu0 0.0
      %437 = vmatpush1.msra.mxu0 %v314
      %438 = vmatprep.subr.mxu0 0.0
      %439 = vmatpush2.msra.mxu0 0.0
      %440 = vmatprep.subr.mxu0 0.0
      %441 = vmatpush2.msra.mxu0 0.0
      %442 = vmatprep.subr.mxu0 0.0
      %443 = vmatpush2.msra.mxu0 0.0
      %444 = vmatprep.subr.mxu0 0.0
      %445 = vmatpush2.msra.mxu0 0.0
      %446 = vmatprep.subr.mxu0 0.0
      %447 = vmatpush2.msra.mxu0 0.0
      %448 = vmatprep.subr.mxu0 0.0
      %449 = vmatpush2.msra.mxu0 0.0
      %450 = vmatprep.subr.mxu0 0.0
      %451 = vmatpush2.msra.mxu0 0.0
      %452 = vmatprep.subr.mxu0 0.0
      %453 = vmatpush2.msra.mxu0 0.0
      %454 = vmatprep.subr.mxu0 0.0
      %455 = vmatpush2.msra.mxu0 0.0
      %456 = vmatprep.subr.mxu0 0.0
      %457 = vmatpush2.msra.mxu0 0.0
      %458 = vmatprep.subr.mxu0 0.0
      %459 = vmatpush2.msra.mxu0 0.0
      %460 = vmatprep.subr.mxu0 0.0
      %461 = vmatpush2.msra.mxu0 0.0
      %462 = vmatprep.subr.mxu0 0.0
      %463 = vmatpush2.msra.mxu0 0.0
      %464 = vmatprep.subr.mxu0 0.0
      %465 = vmatpush2.msra.mxu0 0.0
      %466 = vmatprep.subr.mxu0 0.0
      %467 = vmatpush2.msra.mxu0 0.0
      %468 = vmatprep.subr.mxu0 0.0
      %469 = vmatpush2.msra.mxu0 0.0
      %470 = vmatprep.mubr.f32.mxu0 0.0
      %471 = vmatmul.mubr.f32.gmra.mxu0 %v317
      %v472 = vpop.f32.mrf.mxu0
      %v473 = vadd.f32 0.0, %v472
      %v474 = vpop.f32.mrf.mxu0
      %475 = vmatprep.mubr.f32.mxu0 0.0
      %476 = vmatmul.mubr.f32.gmra.mxu0 %v320
      %v477 = vpop.f32.mrf.mxu0
      %v478 = vadd.f32 0.0, %v477
      %v479 = vpop.f32.mrf.mxu0
      %480 = vmatprep.mubr.f32.mxu0 0.0
      %481 = vmatmul.mubr.f32.gmra.mxu0 %v323
      %v482 = vpop.f32.mrf.mxu0
      %v483 = vadd.f32 0.0, %v482
      %v484 = vpop.f32.mrf.mxu0
      %485 = vmatprep.mubr.f32.mxu0 0.0
      %486 = vmatmul.mubr.f32.gmra.mxu0 %v326
      %v487 = vpop.f32.mrf.mxu0
      %v488 = vadd.f32 0.0, %v487
      %v489 = vpop.f32.mrf.mxu0
      %490 = vmatprep.mubr.f32.mxu0 0.0
      %491 = vmatmul.mubr.f32.gmra.mxu0 %v329
      %v492 = vpop.f32.mrf.mxu0
      %v493 = vadd.f32 0.0, %v492
      %v494 = vpop.f32.mrf.mxu0
      %495 = vmatprep.mubr.f32.mxu0 0.0
      %496 = vmatmul.mubr.f32.gmra.mxu0 %v332
      %v497 = vpop.f32.mrf.mxu0
      %v498 = vadd.f32 0.0, %v497
      %v499 = vpop.f32.mrf.mxu0
      %500 = vmatprep.mubr.f32.mxu0 0.0
      %501 = vmatmul.mubr.f32.gmra.mxu0 %v335
      %v502 = vpop.f32.mrf.mxu0
      %v503 = vadd.f32 0.0, %v502
      %v504 = vpop.f32.mrf.mxu0
      %505 = vmatprep.mubr.f32.mxu0 0.0
      %506 = vmatmul.mubr.f32.gmra.mxu0 %v338
      %v507 = vpop.f32.mrf.mxu0
      %v508 = vadd.f32 0.0, %v507
      %v509 = vpop.f32.mrf.mxu0
      %510 = vmatprep.mubr.f32.mxu0 0.0
      %511 = vmatmul.mubr.f32.gmra.mxu0 %v341
      %v512 = vpop.f32.mrf.mxu0
      %v513 = vadd.f32 0.0, %v512
      %v514 = vpop.f32.mrf.mxu0
      %515 = vmatprep.mubr.f32.mxu0 0.0
      %516 = vmatmul.mubr.f32.gmra.mxu0 %v344
      %v517 = vpop.f32.mrf.mxu0
      %v518 = vadd.f32 0.0, %v517
      %v519 = vpop.f32.mrf.mxu0
      %520 = vmatprep.mubr.f32.mxu0 0.0
      %521 = vmatmul.mubr.f32.gmra.mxu0 %v347
      %v522 = vpop.f32.mrf.mxu0
      %v523 = vadd.f32 0.0, %v522
      %v524 = vpop.f32.mrf.mxu0
      %525 = vmatprep.mubr.f32.mxu0 0.0
      %526 = vmatmul.mubr.f32.gmra.mxu0 %v350
      %v527 = vpop.f32.mrf.mxu0
      %v528 = vadd.f32 0.0, %v527
      %v529 = vpop.f32.mrf.mxu0
      %530 = vmatprep.mubr.f32.mxu0 0.0
      %531 = vmatmul.mubr.f32.gmra.mxu0 %v353
      %v532 = vpop.f32.mrf.mxu0
      %v533 = vadd.f32 0.0, %v532
      %v534 = vpop.f32.mrf.mxu0
      %535 = vmatprep.mubr.f32.mxu0 0.0
      %536 = vmatmul.mubr.f32.gmra.mxu0 %v356
      %v537 = vpop.f32.mrf.mxu0
      %v538 = vadd.f32 0.0, %v537
      %v539 = vpop.f32.mrf.mxu0
      %540 = vmatprep.mubr.f32.mxu0 0.0
      %541 = vmatmul.mubr.f32.gmra.mxu0 %v359
      %v542 = vpop.f32.mrf.mxu0
      %v543 = vadd.f32 0.0, %v542
      %v544 = vpop.f32.mrf.mxu0
      %545 = vmatprep.mubr.f32.mxu0 0.0
      %546 = vmatmul.mubr.f32.gmra.mxu0 %v362
      %v547 = vpop.f32.mrf.mxu0
      %v548 = vadd.f32 0.0, %v547
      %v549 = vpop.f32.mrf.mxu0
      %550 = vmatprep.mubr.f32.mxu0 0.0
      %551 = vmatmul.mubr.f32.gmra.mxu0 %v365
      %v552 = vpop.f32.mrf.mxu0
      %v553 = vadd.f32 0.0, %v552
      %v554 = vpop.f32.mrf.mxu0
      %555 = vmatprep.mubr.f32.mxu0 0.0
      %556 = vmatmul.mubr.f32.gmra.mxu0 %v368
      %v557 = vpop.f32.mrf.mxu0
      %v558 = vadd.f32 0.0, %v557
      %v559 = vpop.f32.mrf.mxu0
      %560 = vmatprep.mubr.f32.mxu0 0.0
      %561 = vmatmul.mubr.f32.gmra.mxu0 %v371
      %v562 = vpop.f32.mrf.mxu0
      %v563 = vadd.f32 0.0, %v562
      %v564 = vpop.f32.mrf.mxu0
      %565 = vmatprep.mubr.f32.mxu0 0.0
      %566 = vmatmul.mubr.f32.gmra.mxu0 %v374
      %v567 = vpop.f32.mrf.mxu0
      %v568 = vadd.f32 0.0, %v567
      %v569 = vpop.f32.mrf.mxu0
      %570 = vmatprep.mubr.f32.mxu0 0.0
      %571 = vmatmul.mubr.f32.gmra.mxu0 %v377
      %v572 = vpop.f32.mrf.mxu0
      %v573 = vadd.f32 0.0, %v572
      %v574 = vpop.f32.mrf.mxu0
      %575 = vmatprep.mubr.f32.mxu0 0.0
      %576 = vmatmul.mubr.f32.gmra.mxu0 %v380
      %v577 = vpop.f32.mrf.mxu0
      %v578 = vadd.f32 0.0, %v577
      %v579 = vpop.f32.mrf.mxu0
      %580 = vmatprep.mubr.f32.mxu0 0.0
      %581 = vmatmul.mubr.f32.gmra.mxu0 %v383
      %v582 = vpop.f32.mrf.mxu0
      %v583 = vadd.f32 0.0, %v582
      %v584 = vpop.f32.mrf.mxu0
      %585 = vmatprep.mubr.f32.mxu0 0.0
      %586 = vmatmul.mubr.f32.gmra.mxu0 %v386
      %v587 = vpop.f32.mrf.mxu0
      %v588 = vadd.f32 0.0, %v587
      %v589 = vpop.f32.mrf.mxu0
      %590 = vmatprep.mubr.f32.mxu0 0.0
      %591 = vmatmul.mubr.f32.gmra.mxu0 %v389
      %v592 = vpop.f32.mrf.mxu0
      %v593 = vadd.f32 0.0, %v592
      %v594 = vpop.f32.mrf.mxu0
      %595 = vmatprep.mubr.f32.mxu0 0.0
      %596 = vmatmul.mubr.f32.gmra.mxu0 %v392
      %v597 = vpop.f32.mrf.mxu0
      %v598 = vadd.f32 0.0, %v597
      %v599 = vpop.f32.mrf.mxu0
      %600 = vmatprep.mubr.f32.mxu0 0.0
      %601 = vmatmul.mubr.f32.gmra.mxu0 %v395
      %v602 = vpop.f32.mrf.mxu0
      %v603 = vadd.f32 0.0, %v602
      %v604 = vpop.f32.mrf.mxu0
      %605 = vmatprep.mubr.f32.mxu0 0.0
      %606 = vmatmul.mubr.f32.gmra.mxu0 %v398
      %v607 = vpop.f32.mrf.mxu0
      %v608 = vadd.f32 0.0, %v607
      %v609 = vpop.f32.mrf.mxu0
      %610 = vmatprep.mubr.f32.mxu0 0.0
      %611 = vmatmul.mubr.f32.gmra.mxu0 %v401
      %v612 = vpop.f32.mrf.mxu0
      %v613 = vadd.f32 0.0, %v612
      %v614 = vpop.f32.mrf.mxu0
      %615 = vmatprep.mubr.f32.mxu0 0.0
      %616 = vmatmul.mubr.f32.gmra.mxu0 %v404
      %v617 = vpop.f32.mrf.mxu0
      %v618 = vadd.f32 0.0, %v617
      %v619 = vpop.f32.mrf.mxu0
      %620 = vdwg.mxu0
      %v622 = vsel %vm315, %v253, 0
      %v625 = vsel %vm315, %v254, 0
      %v628 = vsel %vm315, %v255, 0
      %v631 = vsel %vm315, %v256, 0
      %v634 = vsel %vm315, %v257, 0
      %v637 = vsel %vm315, %v258, 0
      %v640 = vsel %vm315, %v259, 0
      %v643 = vsel %vm315, %v260, 0
      %v646 = vsel %vm315, %v261, 0
      %v649 = vsel %vm315, %v262, 0
      %v652 = vsel %vm315, %v263, 0
      %v655 = vsel %vm315, %v264, 0
      %v658 = vsel %vm315, %v265, 0
      %v661 = vsel %vm315, %v266, 0
      %v664 = vsel %vm315, %v267, 0
      %v667 = vsel %vm315, %v268, 0
      %v670 = vsel %vm315, %v269, 0
      %v673 = vsel %vm315, %v270, 0
      %v676 = vsel %vm315, %v271, 0
      %v679 = vsel %vm315, %v272, 0
      %v682 = vsel %vm315, %v273, 0
      %v685 = vsel %vm315, %v274, 0
      %v688 = vsel %vm315, %v275, 0
      %v691 = vsel %vm315, %v276, 0
      %v694 = vsel %vm315, %v277, 0
      %v697 = vsel %vm315, %v278, 0
      %v700 = vsel %vm315, %v279, 0
      %v703 = vsel %vm315, %v280, 0
      %v706 = vsel %vm315, %v281, 0
      %v709 = vsel %vm315, %v282, 0
      %711 = vmatprep.subr.mxu0 0.0
      %712 = vmatpush1.msra.mxu0 0.0
      %713 = vmatprep.subr.mxu0 0.0
      %714 = vmatpush1.msra.mxu0 0.0
      %715 = vmatprep.subr.mxu0 0.0
      %716 = vmatpush1.msra.mxu0 0.0
      %717 = vmatprep.subr.mxu0 0.0
      %718 = vmatpush1.msra.mxu0 0.0
      %719 = vmatprep.subr.mxu0 0.0
      %720 = vmatpush1.msra.mxu0 0.0
      %721 = vmatprep.subr.mxu0 0.0
      %722 = vmatpush1.msra.mxu0 0.0
      %723 = vmatprep.subr.mxu0 0.0
      %724 = vmatpush1.msra.mxu0 0.0
      %725 = vmatprep.subr.mxu0 0.0
      %726 = vmatpush1.msra.mxu0 0.0
      %727 = vmatprep.subr.mxu0 0.0
      %728 = vmatpush1.msra.mxu0 0.0
      %729 = vmatprep.subr.mxu0 0.0
      %730 = vmatpush1.msra.mxu0 0.0
      %731 = vmatprep.subr.mxu0 0.0
      %732 = vmatpush1.msra.mxu0 0.0
      %733 = vmatprep.subr.mxu0 0.0
      %734 = vmatpush1.msra.mxu0 0.0
      %735 = vmatprep.subr.mxu0 0.0
      %736 = vmatpush1.msra.mxu0 0.0
      %737 = vmatprep.subr.mxu0 0.0
      %738 = vmatpush1.msra.mxu0 0.0
      %739 = vmatprep.subr.mxu0 0.0
      %740 = vmatpush1.msra.mxu0 0.0
      %741 = vmatprep.subr.mxu0 0.0
      %742 = vmatpush1.msra.mxu0 %v283
      %743 = vmatprep.subr.mxu0 0.0
      %744 = vmatpush2.msra.mxu0 0.0
      %745 = vmatprep.subr.mxu0 0.0
      %746 = vmatpush2.msra.mxu0 0.0
      %747 = vmatprep.subr.mxu0 0.0
      %748 = vmatpush2.msra.mxu0 0.0
      %749 = vmatprep.subr.mxu0 0.0
      %750 = vmatpush2.msra.mxu0 0.0
      %751 = vmatprep.subr.mxu0 0.0
      %752 = vmatpush2.msra.mxu0 0.0
      %753 = vmatprep.subr.mxu0 0.0
      %754 = vmatpush2.msra.mxu0 0.0
      %755 = vmatprep.subr.mxu0 0.0
      %756 = vmatpush2.msra.mxu0 0.0
      %757 = vmatprep.subr.mxu0 0.0
      %758 = vmatpush2.msra.mxu0 0.0
      %759 = vmatprep.subr.mxu0 0.0
      %760 = vmatpush2.msra.mxu0 0.0
      %761 = vmatprep.subr.mxu0 0.0
      %762 = vmatpush2.msra.mxu0 0.0
      %763 = vmatprep.subr.mxu0 0.0
      %764 = vmatpush2.msra.mxu0 0.0
      %765 = vmatprep.subr.mxu0 0.0
      %766 = vmatpush2.msra.mxu0 0.0
      %767 = vmatprep.subr.mxu0 0.0
      %768 = vmatpush2.msra.mxu0 0.0
      %769 = vmatprep.subr.mxu0 0.0
      %770 = vmatpush2.msra.mxu0 0.0
      %771 = vmatprep.subr.mxu0 0.0
      %772 = vmatpush2.msra.mxu0 0.0
      %773 = vmatprep.subr.mxu0 0.0
      %774 = vmatpush2.msra.mxu0 0.0
      %775 = vmatprep.mubr.f32.mxu0 0.0
      %776 = vmatmul.mubr.f32.gmra.mxu0 %v622
      %v777 = vpop.f32.mrf.mxu0
      %v778 = vadd.f32 %v473, %v777
      %v779 = vpop.f32.mrf.mxu0
      %780 = vmatprep.mubr.f32.mxu0 0.0
      %781 = vmatmul.mubr.f32.gmra.mxu0 %v625
      %v782 = vpop.f32.mrf.mxu0
      %v783 = vadd.f32 %v478, %v782
      %v784 = vpop.f32.mrf.mxu0
      %785 = vmatprep.mubr.f32.mxu0 0.0
      %786 = vmatmul.mubr.f32.gmra.mxu0 %v628
      %v787 = vpop.f32.mrf.mxu0
      %v788 = vadd.f32 %v483, %v787
      %v789 = vpop.f32.mrf.mxu0
      %790 = vmatprep.mubr.f32.mxu0 0.0
      %791 = vmatmul.mubr.f32.gmra.mxu0 %v631
      %v792 = vpop.f32.mrf.mxu0
      %v793 = vadd.f32 %v488, %v792
      %v794 = vpop.f32.mrf.mxu0
      %795 = vmatprep.mubr.f32.mxu0 0.0
      %796 = vmatmul.mubr.f32.gmra.mxu0 %v634
      %v797 = vpop.f32.mrf.mxu0
      %v798 = vadd.f32 %v493, %v797
      %v799 = vpop.f32.mrf.mxu0
      %800 = vmatprep.mubr.f32.mxu0 0.0
      %801 = vmatmul.mubr.f32.gmra.mxu0 %v637
      %v802 = vpop.f32.mrf.mxu0
      %v803 = vadd.f32 %v498, %v802
      %v804 = vpop.f32.mrf.mxu0
      %805 = vmatprep.mubr.f32.mxu0 0.0
      %806 = vmatmul.mubr.f32.gmra.mxu0 %v640
      %v807 = vpop.f32.mrf.mxu0
      %v808 = vadd.f32 %v503, %v807
      %v809 = vpop.f32.mrf.mxu0
      %810 = vmatprep.mubr.f32.mxu0 0.0
      %811 = vmatmul.mubr.f32.gmra.mxu0 %v643
      %v812 = vpop.f32.mrf.mxu0
      %v813 = vadd.f32 %v508, %v812
      %v814 = vpop.f32.mrf.mxu0
      %815 = vmatprep.mubr.f32.mxu0 0.0
      %816 = vmatmul.mubr.f32.gmra.mxu0 %v646
      %v817 = vpop.f32.mrf.mxu0
      %v818 = vadd.f32 %v513, %v817
      %v819 = vpop.f32.mrf.mxu0
      %820 = vmatprep.mubr.f32.mxu0 0.0
      %821 = vmatmul.mubr.f32.gmra.mxu0 %v649
      %v822 = vpop.f32.mrf.mxu0
      %v823 = vadd.f32 %v518, %v822
      %v824 = vpop.f32.mrf.mxu0
      %825 = vmatprep.mubr.f32.mxu0 0.0
      %826 = vmatmul.mubr.f32.gmra.mxu0 %v652
      %v827 = vpop.f32.mrf.mxu0
      %v828 = vadd.f32 %v523, %v827
      %v829 = vpop.f32.mrf.mxu0
      %830 = vmatprep.mubr.f32.mxu0 0.0
      %831 = vmatmul.mubr.f32.gmra.mxu0 %v655
      %v832 = vpop.f32.mrf.mxu0
      %v833 = vadd.f32 %v528, %v832
      %v834 = vpop.f32.mrf.mxu0
      %835 = vmatprep.mubr.f32.mxu0 0.0
      %836 = vmatmul.mubr.f32.gmra.mxu0 %v658
      %v837 = vpop.f32.mrf.mxu0
      %v838 = vadd.f32 %v533, %v837
      %v839 = vpop.f32.mrf.mxu0
      %840 = vmatprep.mubr.f32.mxu0 0.0
      %841 = vmatmul.mubr.f32.gmra.mxu0 %v661
      %v842 = vpop.f32.mrf.mxu0
      %v843 = vadd.f32 %v538, %v842
      %v844 = vpop.f32.mrf.mxu0
      %845 = vmatprep.mubr.f32.mxu0 0.0
      %846 = vmatmul.mubr.f32.gmra.mxu0 %v664
      %v847 = vpop.f32.mrf.mxu0
      %v848 = vadd.f32 %v543, %v847
      %v849 = vpop.f32.mrf.mxu0
      %850 = vmatprep.mubr.f32.mxu0 0.0
      %851 = vmatmul.mubr.f32.gmra.mxu0 %v667
      %v852 = vpop.f32.mrf.mxu0
      %v853 = vadd.f32 %v548, %v852
      %v854 = vpop.f32.mrf.mxu0
      %855 = vmatprep.mubr.f32.mxu0 0.0
      %856 = vmatmul.mubr.f32.gmra.mxu0 %v670
      %v857 = vpop.f32.mrf.mxu0
      %v858 = vadd.f32 %v553, %v857
      %v859 = vpop.f32.mrf.mxu0
      %860 = vmatprep.mubr.f32.mxu0 0.0
      %861 = vmatmul.mubr.f32.gmra.mxu0 %v673
      %v862 = vpop.f32.mrf.mxu0
      %v863 = vadd.f32 %v558, %v862
      %v864 = vpop.f32.mrf.mxu0
      %865 = vmatprep.mubr.f32.mxu0 0.0
      %866 = vmatmul.mubr.f32.gmra.mxu0 %v676
      %v867 = vpop.f32.mrf.mxu0
      %v868 = vadd.f32 %v563, %v867
      %v869 = vpop.f32.mrf.mxu0
      %870 = vmatprep.mubr.f32.mxu0 0.0
      %871 = vmatmul.mubr.f32.gmra.mxu0 %v679
      %v872 = vpop.f32.mrf.mxu0
      %v873 = vadd.f32 %v568, %v872
      %v874 = vpop.f32.mrf.mxu0
      %875 = vmatprep.mubr.f32.mxu0 0.0
      %876 = vmatmul.mubr.f32.gmra.mxu0 %v682
      %v877 = vpop.f32.mrf.mxu0
      %v878 = vadd.f32 %v573, %v877
      %v879 = vpop.f32.mrf.mxu0
      %880 = vmatprep.mubr.f32.mxu0 0.0
      %881 = vmatmul.mubr.f32.gmra.mxu0 %v685
      %v882 = vpop.f32.mrf.mxu0
      %v883 = vadd.f32 %v578, %v882
      %v884 = vpop.f32.mrf.mxu0
      %885 = vmatprep.mubr.f32.mxu0 0.0
      %886 = vmatmul.mubr.f32.gmra.mxu0 %v688
      %v887 = vpop.f32.mrf.mxu0
      %v888 = vadd.f32 %v583, %v887
      %v889 = vpop.f32.mrf.mxu0
      %890 = vmatprep.mubr.f32.mxu0 0.0
      %891 = vmatmul.mubr.f32.gmra.mxu0 %v691
      %v892 = vpop.f32.mrf.mxu0
      %v893 = vadd.f32 %v588, %v892
      %v894 = vpop.f32.mrf.mxu0
      %895 = vmatprep.mubr.f32.mxu0 0.0
      %896 = vmatmul.mubr.f32.gmra.mxu0 %v694
      %v897 = vpop.f32.mrf.mxu0
      %v898 = vadd.f32 %v593, %v897
      %v899 = vpop.f32.mrf.mxu0
      %900 = vmatprep.mubr.f32.mxu0 0.0
      %901 = vmatmul.mubr.f32.gmra.mxu0 %v697
      %v902 = vpop.f32.mrf.mxu0
      %v903 = vadd.f32 %v598, %v902
      %v904 = vpop.f32.mrf.mxu0
      %905 = vmatprep.mubr.f32.mxu0 0.0
      %906 = vmatmul.mubr.f32.gmra.mxu0 %v700
      %v907 = vpop.f32.mrf.mxu0
      %v908 = vadd.f32 %v603, %v907
      %v909 = vpop.f32.mrf.mxu0
      %910 = vmatprep.mubr.f32.mxu0 0.0
      %911 = vmatmul.mubr.f32.gmra.mxu0 %v703
      %v912 = vpop.f32.mrf.mxu0
      %v913 = vadd.f32 %v608, %v912
      %v914 = vpop.f32.mrf.mxu0
      %915 = vmatprep.mubr.f32.mxu0 0.0
      %916 = vmatmul.mubr.f32.gmra.mxu0 %v706
      %v917 = vpop.f32.mrf.mxu0
      %v918 = vadd.f32 %v613, %v917
      %v919 = vpop.f32.mrf.mxu0
      %920 = vmatprep.mubr.f32.mxu0 0.0
      %921 = vmatmul.mubr.f32.gmra.mxu0 %v709
      %v922 = vpop.f32.mrf.mxu0
      %v923 = vadd.f32 %v618, %v922
      %v924 = vpop.f32.mrf.mxu0
      %925 = vdwg.mxu0
      %v926 = vld [vmem:[%s252 + $0x2] sm:$0xff]
      %v927 = vld [vmem:[%s252 + $0xa] sm:$0xff]
      %v928 = vld [vmem:[%s252 + $0x12] sm:$0xff]
      %v929 = vld [vmem:[%s252 + $0x22] sm:$0xff]
      %v930 = vld [vmem:[%s252 + $0x2a] sm:$0xff]
      %v931 = vld [vmem:[%s252 + $0x32] sm:$0xff]
      %v932 = vld [vmem:[%s252 + $0x42] sm:$0xff]
      %v933 = vld [vmem:[%s252 + $0x4a] sm:$0xff]
      %v934 = vld [vmem:[%s252 + $0x52] sm:$0xff]
      %v935 = vld [vmem:[%s252 + $0x62] sm:$0xff]
      %v936 = vld [vmem:[%s252 + $0x6a] sm:$0xff]
      %v937 = vld [vmem:[%s252 + $0x72] sm:$0xff]
      %v938 = vld [vmem:[%s252 + $0x82] sm:$0xff]
      %v939 = vld [vmem:[%s252 + $0x8a] sm:$0xff]
      %v940 = vld [vmem:[%s252 + $0x92] sm:$0xff]
      %v941 = vld [vmem:[%s252 + $0xa2] sm:$0xff]
      %v942 = vld [vmem:[%s252 + $0xaa] sm:$0xff]
      %v943 = vld [vmem:[%s252 + $0xb2] sm:$0xff]
      %v944 = vld [vmem:[%s252 + $0xc2] sm:$0xff]
      %v945 = vld [vmem:[%s252 + $0xca] sm:$0xff]
      %v946 = vld [vmem:[%s252 + $0xd2] sm:$0xff]
      %v947 = vld [vmem:[%s252 + $0xe2] sm:$0xff]
      %v948 = vld [vmem:[%s252 + $0xea] sm:$0xff]
      %v949 = vld [vmem:[%s252 + $0xf2] sm:$0xff]
      %v950 = vld [vmem:[%s252 + $0x102] sm:$0xff]
      %v951 = vld [vmem:[%s252 + $0x10a] sm:$0xff]
      %v952 = vld [vmem:[%s252 + $0x112] sm:$0xff]
      %v953 = vld [vmem:[%s252 + $0x122] sm:$0xff]
      %v954 = vld [vmem:[%s252 + $0x12a] sm:$0xff]
      %v955 = vld [vmem:[%s252 + $0x132] sm:$0xff]
      %v956 = vld [vmem:[%s1 + $0x10] sm:$0xff]
      %v958 = vsel %vm315, %v926, 0
      %v961 = vsel %vm315, %v927, 0
      %v964 = vsel %vm315, %v928, 0
      %v967 = vsel %vm315, %v929, 0
      %v970 = vsel %vm315, %v930, 0
      %v973 = vsel %vm315, %v931, 0
      %v976 = vsel %vm315, %v932, 0
      %v979 = vsel %vm315, %v933, 0
      %v982 = vsel %vm315, %v934, 0
      %v985 = vsel %vm315, %v935, 0
      %v988 = vsel %vm315, %v936, 0
      %v991 = vsel %vm315, %v937, 0
      %v994 = vsel %vm315, %v938, 0
      %v997 = vsel %vm315, %v939, 0
      %v1000 = vsel %vm315, %v940, 0
      %v1003 = vsel %vm315, %v941, 0
      %v1006 = vsel %vm315, %v942, 0
      %v1009 = vsel %vm315, %v943, 0
      %v1012 = vsel %vm315, %v944, 0
      %v1015 = vsel %vm315, %v945, 0
      %v1018 = vsel %vm315, %v946, 0
      %v1021 = vsel %vm315, %v947, 0
      %v1024 = vsel %vm315, %v948, 0
      %v1027 = vsel %vm315, %v949, 0
      %v1030 = vsel %vm315, %v950, 0
      %v1033 = vsel %vm315, %v951, 0
      %v1036 = vsel %vm315, %v952, 0
      %v1039 = vsel %vm315, %v953, 0
      %v1042 = vsel %vm315, %v954, 0
      %v1045 = vsel %vm315, %v955, 0
      %1047 = vmatprep.subr.mxu0 0.0
      %1048 = vmatpush1.msra.mxu0 0.0
      %1049 = vmatprep.subr.mxu0 0.0
      %1050 = vmatpush1.msra.mxu0 0.0
      %1051 = vmatprep.subr.mxu0 0.0
      %1052 = vmatpush1.msra.mxu0 0.0
      %1053 = vmatprep.subr.mxu0 0.0
      %1054 = vmatpush1.msra.mxu0 0.0
      %1055 = vmatprep.subr.mxu0 0.0
      %1056 = vmatpush1.msra.mxu0 0.0
      %1057 = vmatprep.subr.mxu0 0.0
      %1058 = vmatpush1.msra.mxu0 0.0
      %1059 = vmatprep.subr.mxu0 0.0
      %1060 = vmatpush1.msra.mxu0 0.0
      %1061 = vmatprep.subr.mxu0 0.0
      %1062 = vmatpush1.msra.mxu0 0.0
      %1063 = vmatprep.subr.mxu0 0.0
      %1064 = vmatpush1.msra.mxu0 0.0
      %1065 = vmatprep.subr.mxu0 0.0
      %1066 = vmatpush1.msra.mxu0 0.0
      %1067 = vmatprep.subr.mxu0 0.0
      %1068 = vmatpush1.msra.mxu0 0.0
      %1069 = vmatprep.subr.mxu0 0.0
      %1070 = vmatpush1.msra.mxu0 0.0
      %1071 = vmatprep.subr.mxu0 0.0
      %1072 = vmatpush1.msra.mxu0 0.0
      %1073 = vmatprep.subr.mxu0 0.0
      %1074 = vmatpush1.msra.mxu0 0.0
      %1075 = vmatprep.subr.mxu0 0.0
      %1076 = vmatpush1.msra.mxu0 0.0
      %1077 = vmatprep.subr.mxu0 0.0
      %1078 = vmatpush1.msra.mxu0 %v956
      %1079 = vmatprep.subr.mxu0 0.0
      %1080 = vmatpush2.msra.mxu0 0.0
      %1081 = vmatprep.subr.mxu0 0.0
      %1082 = vmatpush2.msra.mxu0 0.0
      %1083 = vmatprep.subr.mxu0 0.0
      %1084 = vmatpush2.msra.mxu0 0.0
      %1085 = vmatprep.subr.mxu0 0.0
      %1086 = vmatpush2.msra.mxu0 0.0
      %1087 = vmatprep.subr.mxu0 0.0
      %1088 = vmatpush2.msra.mxu0 0.0
      %1089 = vmatprep.subr.mxu0 0.0
      %1090 = vmatpush2.msra.mxu0 0.0
      %1091 = vmatprep.subr.mxu0 0.0
      %1092 = vmatpush2.msra.mxu0 0.0
      %1093 = vmatprep.subr.mxu0 0.0
      %1094 = vmatpush2.msra.mxu0 0.0
      %1095 = vmatprep.subr.mxu0 0.0
      %1096 = vmatpush2.msra.mxu0 0.0
      %1097 = vmatprep.subr.mxu0 0.0
      %1098 = vmatpush2.msra.mxu0 0.0
      %1099 = vmatprep.subr.mxu0 0.0
      %1100 = vmatpush2.msra.mxu0 0.0
      %1101 = vmatprep.subr.mxu0 0.0
      %1102 = vmatpush2.msra.mxu0 0.0
      %1103 = vmatprep.subr.mxu0 0.0
      %1104 = vmatpush2.msra.mxu0 0.0
      %1105 = vmatprep.subr.mxu0 0.0
      %1106 = vmatpush2.msra.mxu0 0.0
      %1107 = vmatprep.subr.mxu0 0.0
      %1108 = vmatpush2.msra.mxu0 0.0
      %1109 = vmatprep.subr.mxu0 0.0
      %1110 = vmatpush2.msra.mxu0 0.0
      %1111 = vmatprep.mubr.f32.mxu0 0.0
      %1112 = vmatmul.mubr.f32.gmra.mxu0 %v958
      %v1113 = vpop.f32.mrf.mxu0
      %v1114 = vadd.f32 0.0, %v1113
      %v1115 = vpop.f32.mrf.mxu0
      %1116 = vmatprep.mubr.f32.mxu0 0.0
      %1117 = vmatmul.mubr.f32.gmra.mxu0 %v961
      %v1118 = vpop.f32.mrf.mxu0
      %v1119 = vadd.f32 0.0, %v1118
      %v1120 = vpop.f32.mrf.mxu0
      %1121 = vmatprep.mubr.f32.mxu0 0.0
      %1122 = vmatmul.mubr.f32.gmra.mxu0 %v964
      %v1123 = vpop.f32.mrf.mxu0
      %v1124 = vadd.f32 0.0, %v1123
      %v1125 = vpop.f32.mrf.mxu0
      %1126 = vmatprep.mubr.f32.mxu0 0.0
      %1127 = vmatmul.mubr.f32.gmra.mxu0 %v967
      %v1128 = vpop.f32.mrf.mxu0
      %v1129 = vadd.f32 0.0, %v1128
      %v1130 = vpop.f32.mrf.mxu0
      %1131 = vmatprep.mubr.f32.mxu0 0.0
      %1132 = vmatmul.mubr.f32.gmra.mxu0 %v970
      %v1133 = vpop.f32.mrf.mxu0
      %v1134 = vadd.f32 0.0, %v1133
      %v1135 = vpop.f32.mrf.mxu0
      %1136 = vmatprep.mubr.f32.mxu0 0.0
      %1137 = vmatmul.mubr.f32.gmra.mxu0 %v973
      %v1138 = vpop.f32.mrf.mxu0
      %v1139 = vadd.f32 0.0, %v1138
      %v1140 = vpop.f32.mrf.mxu0
      %1141 = vmatprep.mubr.f32.mxu0 0.0
      %1142 = vmatmul.mubr.f32.gmra.mxu0 %v976
      %v1143 = vpop.f32.mrf.mxu0
      %v1144 = vadd.f32 0.0, %v1143
      %v1145 = vpop.f32.mrf.mxu0
      %1146 = vmatprep.mubr.f32.mxu0 0.0
      %1147 = vmatmul.mubr.f32.gmra.mxu0 %v979
      %v1148 = vpop.f32.mrf.mxu0
      %v1149 = vadd.f32 0.0, %v1148
      %v1150 = vpop.f32.mrf.mxu0
      %1151 = vmatprep.mubr.f32.mxu0 0.0
      %1152 = vmatmul.mubr.f32.gmra.mxu0 %v982
      %v1153 = vpop.f32.mrf.mxu0
      %v1154 = vadd.f32 0.0, %v1153
      %v1155 = vpop.f32.mrf.mxu0
      %1156 = vmatprep.mubr.f32.mxu0 0.0
      %1157 = vmatmul.mubr.f32.gmra.mxu0 %v985
      %v1158 = vpop.f32.mrf.mxu0
      %v1159 = vadd.f32 0.0, %v1158
      %v1160 = vpop.f32.mrf.mxu0
      %1161 = vmatprep.mubr.f32.mxu0 0.0
      %1162 = vmatmul.mubr.f32.gmra.mxu0 %v988
      %v1163 = vpop.f32.mrf.mxu0
      %v1164 = vadd.f32 0.0, %v1163
      %v1165 = vpop.f32.mrf.mxu0
      %1166 = vmatprep.mubr.f32.mxu0 0.0
      %1167 = vmatmul.mubr.f32.gmra.mxu0 %v991
      %v1168 = vpop.f32.mrf.mxu0
      %v1169 = vadd.f32 0.0, %v1168
      %v1170 = vpop.f32.mrf.mxu0
      %1171 = vmatprep.mubr.f32.mxu0 0.0
      %1172 = vmatmul.mubr.f32.gmra.mxu0 %v994
      %v1173 = vpop.f32.mrf.mxu0
      %v1174 = vadd.f32 0.0, %v1173
      %v1175 = vpop.f32.mrf.mxu0
      %1176 = vmatprep.mubr.f32.mxu0 0.0
      %1177 = vmatmul.mubr.f32.gmra.mxu0 %v997
      %v1178 = vpop.f32.mrf.mxu0
      %v1179 = vadd.f32 0.0, %v1178
      %v1180 = vpop.f32.mrf.mxu0
      %1181 = vmatprep.mubr.f32.mxu0 0.0
      %1182 = vmatmul.mubr.f32.gmra.mxu0 %v1000
      %v1183 = vpop.f32.mrf.mxu0
      %v1184 = vadd.f32 0.0, %v1183
      %v1185 = vpop.f32.mrf.mxu0
      %1186 = vmatprep.mubr.f32.mxu0 0.0
      %1187 = vmatmul.mubr.f32.gmra.mxu0 %v1003
      %v1188 = vpop.f32.mrf.mxu0
      %v1189 = vadd.f32 0.0, %v1188
      %v1190 = vpop.f32.mrf.mxu0
      %1191 = vmatprep.mubr.f32.mxu0 0.0
      %1192 = vmatmul.mubr.f32.gmra.mxu0 %v1006
      %v1193 = vpop.f32.mrf.mxu0
      %v1194 = vadd.f32 0.0, %v1193
      %v1195 = vpop.f32.mrf.mxu0
      %1196 = vmatprep.mubr.f32.mxu0 0.0
      %1197 = vmatmul.mubr.f32.gmra.mxu0 %v1009
      %v1198 = vpop.f32.mrf.mxu0
      %v1199 = vadd.f32 0.0, %v1198
      %v1200 = vpop.f32.mrf.mxu0
      %1201 = vmatprep.mubr.f32.mxu0 0.0
      %1202 = vmatmul.mubr.f32.gmra.mxu0 %v1012
      %v1203 = vpop.f32.mrf.mxu0
      %v1204 = vadd.f32 0.0, %v1203
      %v1205 = vpop.f32.mrf.mxu0
      %1206 = vmatprep.mubr.f32.mxu0 0.0
      %1207 = vmatmul.mubr.f32.gmra.mxu0 %v1015
      %v1208 = vpop.f32.mrf.mxu0
      %v1209 = vadd.f32 0.0, %v1208
      %v1210 = vpop.f32.mrf.mxu0
      %1211 = vmatprep.mubr.f32.mxu0 0.0
      %1212 = vmatmul.mubr.f32.gmra.mxu0 %v1018
      %v1213 = vpop.f32.mrf.mxu0
      %v1214 = vadd.f32 0.0, %v1213
      %v1215 = vpop.f32.mrf.mxu0
      %1216 = vmatprep.mubr.f32.mxu0 0.0
      %1217 = vmatmul.mubr.f32.gmra.mxu0 %v1021
      %v1218 = vpop.f32.mrf.mxu0
      %v1219 = vadd.f32 0.0, %v1218
      %v1220 = vpop.f32.mrf.mxu0
      %1221 = vmatprep.mubr.f32.mxu0 0.0
      %1222 = vmatmul.mubr.f32.gmra.mxu0 %v1024
      %v1223 = vpop.f32.mrf.mxu0
      %v1224 = vadd.f32 0.0, %v1223
      %v1225 = vpop.f32.mrf.mxu0
      %1226 = vmatprep.mubr.f32.mxu0 0.0
      %1227 = vmatmul.mubr.f32.gmra.mxu0 %v1027
      %v1228 = vpop.f32.mrf.mxu0
      %v1229 = vadd.f32 0.0, %v1228
      %v1230 = vpop.f32.mrf.mxu0
      %1231 = vmatprep.mubr.f32.mxu0 0.0
      %1232 = vmatmul.mubr.f32.gmra.mxu0 %v1030
      %v1233 = vpop.f32.mrf.mxu0
      %v1234 = vadd.f32 0.0, %v1233
      %v1235 = vpop.f32.mrf.mxu0
      %1236 = vmatprep.mubr.f32.mxu0 0.0
      %1237 = vmatmul.mubr.f32.gmra.mxu0 %v1033
      %v1238 = vpop.f32.mrf.mxu0
      %v1239 = vadd.f32 0.0, %v1238
      %v1240 = vpop.f32.mrf.mxu0
      %1241 = vmatprep.mubr.f32.mxu0 0.0
      %1242 = vmatmul.mubr.f32.gmra.mxu0 %v1036
      %v1243 = vpop.f32.mrf.mxu0
      %v1244 = vadd.f32 0.0, %v1243
      %v1245 = vpop.f32.mrf.mxu0
      %1246 = vmatprep.mubr.f32.mxu0 0.0
      %1247 = vmatmul.mubr.f32.gmra.mxu0 %v1039
      %v1248 = vpop.f32.mrf.mxu0
      %v1249 = vadd.f32 0.0, %v1248
      %v1250 = vpop.f32.mrf.mxu0
      %1251 = vmatprep.mubr.f32.mxu0 0.0
      %1252 = vmatmul.mubr.f32.gmra.mxu0 %v1042
      %v1253 = vpop.f32.mrf.mxu0
      %v1254 = vadd.f32 0.0, %v1253
      %v1255 = vpop.f32.mrf.mxu0
      %1256 = vmatprep.mubr.f32.mxu0 0.0
      %1257 = vmatmul.mubr.f32.gmra.mxu0 %v1045
      %v1258 = vpop.f32.mrf.mxu0
      %v1259 = vadd.f32 0.0, %v1258
      %v1260 = vpop.f32.mrf.mxu0
      %1261 = vdwg.mxu0
      %v1262 = vadd.f32 %v778, %v1114
      %v1263 = vadd.f32 %v783, %v1119
      %v1264 = vadd.f32 %v788, %v1124
      %v1265 = vadd.f32 %v793, %v1129
      %v1266 = vadd.f32 %v798, %v1134
      %v1267 = vadd.f32 %v803, %v1139
      %v1268 = vadd.f32 %v808, %v1144
      %v1269 = vadd.f32 %v813, %v1149
      %v1270 = vadd.f32 %v818, %v1154
      %v1271 = vadd.f32 %v823, %v1159
      %v1272 = vadd.f32 %v828, %v1164
      %v1273 = vadd.f32 %v833, %v1169
      %v1274 = vadd.f32 %v838, %v1174
      %v1275 = vadd.f32 %v843, %v1179
      %v1276 = vadd.f32 %v848, %v1184
      %v1277 = vadd.f32 %v853, %v1189
      %v1278 = vadd.f32 %v858, %v1194
      %v1279 = vadd.f32 %v863, %v1199
      %v1280 = vadd.f32 %v868, %v1204
      %v1281 = vadd.f32 %v873, %v1209
      %v1282 = vadd.f32 %v878, %v1214
      %v1283 = vadd.f32 %v883, %v1219
      %v1284 = vadd.f32 %v888, %v1224
      %v1285 = vadd.f32 %v893, %v1229
      %v1286 = vadd.f32 %v898, %v1234
      %v1287 = vadd.f32 %v903, %v1239
      %v1288 = vadd.f32 %v908, %v1244
      %v1289 = vadd.f32 %v913, %v1249
      %v1290 = vadd.f32 %v918, %v1254
      %v1291 = vadd.f32 %v923, %v1259
      %s1292 = sadd.s32 %s250, 1
      %s1293 = smul.u32 %s1292, 32
      %s1294 = scalar_lea.vmem %s238, %s1293
      %v1295 = vld [vmem:[%s1294] sm:$0xff]
      %v1296 = vld [vmem:[%s1294 + $0x8] sm:$0xff]
      %v1297 = vld [vmem:[%s1294 + $0x10] sm:$0xff]
      %v1298 = vld [vmem:[%s1294 + $0x20] sm:$0xff]
      %v1299 = vld [vmem:[%s1294 + $0x28] sm:$0xff]
      %v1300 = vld [vmem:[%s1294 + $0x30] sm:$0xff]
      %v1301 = vld [vmem:[%s1294 + $0x40] sm:$0xff]
      %v1302 = vld [vmem:[%s1294 + $0x48] sm:$0xff]
      %v1303 = vld [vmem:[%s1294 + $0x50] sm:$0xff]
      %v1304 = vld [vmem:[%s1294 + $0x60] sm:$0xff]
      %v1305 = vld [vmem:[%s1294 + $0x68] sm:$0xff]
      %v1306 = vld [vmem:[%s1294 + $0x70] sm:$0xff]
      %v1307 = vld [vmem:[%s1294 + $0x80] sm:$0xff]
      %v1308 = vld [vmem:[%s1294 + $0x88] sm:$0xff]
      %v1309 = vld [vmem:[%s1294 + $0x90] sm:$0xff]
      %v1310 = vld [vmem:[%s1294 + $0xa0] sm:$0xff]
      %v1311 = vld [vmem:[%s1294 + $0xa8] sm:$0xff]
      %v1312 = vld [vmem:[%s1294 + $0xb0] sm:$0xff]
      %v1313 = vld [vmem:[%s1294 + $0xc0] sm:$0xff]
      %v1314 = vld [vmem:[%s1294 + $0xc8] sm:$0xff]
      %v1315 = vld [vmem:[%s1294 + $0xd0] sm:$0xff]
      %v1316 = vld [vmem:[%s1294 + $0xe0] sm:$0xff]
      %v1317 = vld [vmem:[%s1294 + $0xe8] sm:$0xff]
      %v1318 = vld [vmem:[%s1294 + $0xf0] sm:$0xff]
      %v1319 = vld [vmem:[%s1294 + $0x100] sm:$0xff]
      %v1320 = vld [vmem:[%s1294 + $0x108] sm:$0xff]
      %v1321 = vld [vmem:[%s1294 + $0x110] sm:$0xff]
      %v1322 = vld [vmem:[%s1294 + $0x120] sm:$0xff]
      %v1323 = vld [vmem:[%s1294 + $0x128] sm:$0xff]
      %v1324 = vld [vmem:[%s1294 + $0x130] sm:$0xff]
      %s1325 = scalar_lea.vmem %s1, 24
      %v1326 = vld [vmem:[%s1325] sm:$0xff]
      %v1328 = vsel %vm315, %v1295, 0
      %v1331 = vsel %vm315, %v1296, 0
      %v1334 = vsel %vm315, %v1297, 0
      %v1337 = vsel %vm315, %v1298, 0
      %v1340 = vsel %vm315, %v1299, 0
      %v1343 = vsel %vm315, %v1300, 0
      %v1346 = vsel %vm315, %v1301, 0
      %v1349 = vsel %vm315, %v1302, 0
      %v1352 = vsel %vm315, %v1303, 0
      %v1355 = vsel %vm315, %v1304, 0
      %v1358 = vsel %vm315, %v1305, 0
      %v1361 = vsel %vm315, %v1306, 0
      %v1364 = vsel %vm315, %v1307, 0
      %v1367 = vsel %vm315, %v1308, 0
      %v1370 = vsel %vm315, %v1309, 0
      %v1373 = vsel %vm315, %v1310, 0
      %v1376 = vsel %vm315, %v1311, 0
      %v1379 = vsel %vm315, %v1312, 0
      %v1382 = vsel %vm315, %v1313, 0
      %v1385 = vsel %vm315, %v1314, 0
      %v1388 = vsel %vm315, %v1315, 0
      %v1391 = vsel %vm315, %v1316, 0
      %v1394 = vsel %vm315, %v1317, 0
      %v1397 = vsel %vm315, %v1318, 0
      %v1400 = vsel %vm315, %v1319, 0
      %v1403 = vsel %vm315, %v1320, 0
      %v1406 = vsel %vm315, %v1321, 0
      %v1409 = vsel %vm315, %v1322, 0
      %v1412 = vsel %vm315, %v1323, 0
      %v1415 = vsel %vm315, %v1324, 0
      %1417 = vmatprep.subr.mxu0 0.0
      %1418 = vmatpush1.msra.mxu0 0.0
      %1419 = vmatprep.subr.mxu0 0.0
      %1420 = vmatpush1.msra.mxu0 0.0
      %1421 = vmatprep.subr.mxu0 0.0
      %1422 = vmatpush1.msra.mxu0 0.0
      %1423 = vmatprep.subr.mxu0 0.0
      %1424 = vmatpush1.msra.mxu0 0.0
      %1425 = vmatprep.subr.mxu0 0.0
      %1426 = vmatpush1.msra.mxu0 0.0
      %1427 = vmatprep.subr.mxu0 0.0
      %1428 = vmatpush1.msra.mxu0 0.0
      %1429 = vmatprep.subr.mxu0 0.0
      %1430 = vmatpush1.msra.mxu0 0.0
      %1431 = vmatprep.subr.mxu0 0.0
      %1432 = vmatpush1.msra.mxu0 0.0
      %1433 = vmatprep.subr.mxu0 0.0
      %1434 = vmatpush1.msra.mxu0 0.0
      %1435 = vmatprep.subr.mxu0 0.0
      %1436 = vmatpush1.msra.mxu0 0.0
      %1437 = vmatprep.subr.mxu0 0.0
      %1438 = vmatpush1.msra.mxu0 0.0
      %1439 = vmatprep.subr.mxu0 0.0
      %1440 = vmatpush1.msra.mxu0 0.0
      %1441 = vmatprep.subr.mxu0 0.0
      %1442 = vmatpush1.msra.mxu0 0.0
      %1443 = vmatprep.subr.mxu0 0.0
      %1444 = vmatpush1.msra.mxu0 0.0
      %1445 = vmatprep.subr.mxu0 0.0
      %1446 = vmatpush1.msra.mxu0 0.0
      %1447 = vmatprep.subr.mxu0 0.0
      %1448 = vmatpush1.msra.mxu0 %v1326
      %1449 = vmatprep.subr.mxu0 0.0
      %1450 = vmatpush2.msra.mxu0 0.0
      %1451 = vmatprep.subr.mxu0 0.0
      %1452 = vmatpush2.msra.mxu0 0.0
      %1453 = vmatprep.subr.mxu0 0.0
      %1454 = vmatpush2.msra.mxu0 0.0
      %1455 = vmatprep.subr.mxu0 0.0
      %1456 = vmatpush2.msra.mxu0 0.0
      %1457 = vmatprep.subr.mxu0 0.0
      %1458 = vmatpush2.msra.mxu0 0.0
      %1459 = vmatprep.subr.mxu0 0.0
      %1460 = vmatpush2.msra.mxu0 0.0
      %1461 = vmatprep.subr.mxu0 0.0
      %1462 = vmatpush2.msra.mxu0 0.0
      %1463 = vmatprep.subr.mxu0 0.0
      %1464 = vmatpush2.msra.mxu0 0.0
      %1465 = vmatprep.subr.mxu0 0.0
      %1466 = vmatpush2.msra.mxu0 0.0
      %1467 = vmatprep.subr.mxu0 0.0
      %1468 = vmatpush2.msra.mxu0 0.0
      %1469 = vmatprep.subr.mxu0 0.0
      %1470 = vmatpush2.msra.mxu0 0.0
      %1471 = vmatprep.subr.mxu0 0.0
      %1472 = vmatpush2.msra.mxu0 0.0
      %1473 = vmatprep.subr.mxu0 0.0
      %1474 = vmatpush2.msra.mxu0 0.0
      %1475 = vmatprep.subr.mxu0 0.0
      %1476 = vmatpush2.msra.mxu0 0.0
      %1477 = vmatprep.subr.mxu0 0.0
      %1478 = vmatpush2.msra.mxu0 0.0
      %1479 = vmatprep.subr.mxu0 0.0
      %1480 = vmatpush2.msra.mxu0 0.0
      %1481 = vmatprep.mubr.f32.mxu0 0.0
      %1482 = vmatmul.mubr.f32.gmra.mxu0 %v1328
      %v1483 = vpop.f32.mrf.mxu0
      %v1484 = vadd.f32 0.0, %v1483
      %v1485 = vpop.f32.mrf.mxu0
      %1486 = vmatprep.mubr.f32.mxu0 0.0
      %1487 = vmatmul.mubr.f32.gmra.mxu0 %v1331
      %v1488 = vpop.f32.mrf.mxu0
      %v1489 = vadd.f32 0.0, %v1488
      %v1490 = vpop.f32.mrf.mxu0
      %1491 = vmatprep.mubr.f32.mxu0 0.0
      %1492 = vmatmul.mubr.f32.gmra.mxu0 %v1334
      %v1493 = vpop.f32.mrf.mxu0
      %v1494 = vadd.f32 0.0, %v1493
      %v1495 = vpop.f32.mrf.mxu0
      %1496 = vmatprep.mubr.f32.mxu0 0.0
      %1497 = vmatmul.mubr.f32.gmra.mxu0 %v1337
      %v1498 = vpop.f32.mrf.mxu0
      %v1499 = vadd.f32 0.0, %v1498
      %v1500 = vpop.f32.mrf.mxu0
      %1501 = vmatprep.mubr.f32.mxu0 0.0
      %1502 = vmatmul.mubr.f32.gmra.mxu0 %v1340
      %v1503 = vpop.f32.mrf.mxu0
      %v1504 = vadd.f32 0.0, %v1503
      %v1505 = vpop.f32.mrf.mxu0
      %1506 = vmatprep.mubr.f32.mxu0 0.0
      %1507 = vmatmul.mubr.f32.gmra.mxu0 %v1343
      %v1508 = vpop.f32.mrf.mxu0
      %v1509 = vadd.f32 0.0, %v1508
      %v1510 = vpop.f32.mrf.mxu0
      %1511 = vmatprep.mubr.f32.mxu0 0.0
      %1512 = vmatmul.mubr.f32.gmra.mxu0 %v1346
      %v1513 = vpop.f32.mrf.mxu0
      %v1514 = vadd.f32 0.0, %v1513
      %v1515 = vpop.f32.mrf.mxu0
      %1516 = vmatprep.mubr.f32.mxu0 0.0
      %1517 = vmatmul.mubr.f32.gmra.mxu0 %v1349
      %v1518 = vpop.f32.mrf.mxu0
      %v1519 = vadd.f32 0.0, %v1518
      %v1520 = vpop.f32.mrf.mxu0
      %1521 = vmatprep.mubr.f32.mxu0 0.0
      %1522 = vmatmul.mubr.f32.gmra.mxu0 %v1352
      %v1523 = vpop.f32.mrf.mxu0
      %v1524 = vadd.f32 0.0, %v1523
      %v1525 = vpop.f32.mrf.mxu0
      %1526 = vmatprep.mubr.f32.mxu0 0.0
      %1527 = vmatmul.mubr.f32.gmra.mxu0 %v1355
      %v1528 = vpop.f32.mrf.mxu0
      %v1529 = vadd.f32 0.0, %v1528
      %v1530 = vpop.f32.mrf.mxu0
      %1531 = vmatprep.mubr.f32.mxu0 0.0
      %1532 = vmatmul.mubr.f32.gmra.mxu0 %v1358
      %v1533 = vpop.f32.mrf.mxu0
      %v1534 = vadd.f32 0.0, %v1533
      %v1535 = vpop.f32.mrf.mxu0
      %1536 = vmatprep.mubr.f32.mxu0 0.0
      %1537 = vmatmul.mubr.f32.gmra.mxu0 %v1361
      %v1538 = vpop.f32.mrf.mxu0
      %v1539 = vadd.f32 0.0, %v1538
      %v1540 = vpop.f32.mrf.mxu0
      %1541 = vmatprep.mubr.f32.mxu0 0.0
      %1542 = vmatmul.mubr.f32.gmra.mxu0 %v1364
      %v1543 = vpop.f32.mrf.mxu0
      %v1544 = vadd.f32 0.0, %v1543
      %v1545 = vpop.f32.mrf.mxu0
      %1546 = vmatprep.mubr.f32.mxu0 0.0
      %1547 = vmatmul.mubr.f32.gmra.mxu0 %v1367
      %v1548 = vpop.f32.mrf.mxu0
      %v1549 = vadd.f32 0.0, %v1548
      %v1550 = vpop.f32.mrf.mxu0
      %1551 = vmatprep.mubr.f32.mxu0 0.0
      %1552 = vmatmul.mubr.f32.gmra.mxu0 %v1370
      %v1553 = vpop.f32.mrf.mxu0
      %v1554 = vadd.f32 0.0, %v1553
      %v1555 = vpop.f32.mrf.mxu0
      %1556 = vmatprep.mubr.f32.mxu0 0.0
      %1557 = vmatmul.mubr.f32.gmra.mxu0 %v1373
      %v1558 = vpop.f32.mrf.mxu0
      %v1559 = vadd.f32 0.0, %v1558
      %v1560 = vpop.f32.mrf.mxu0
      %1561 = vmatprep.mubr.f32.mxu0 0.0
      %1562 = vmatmul.mubr.f32.gmra.mxu0 %v1376
      %v1563 = vpop.f32.mrf.mxu0
      %v1564 = vadd.f32 0.0, %v1563
      %v1565 = vpop.f32.mrf.mxu0
      %1566 = vmatprep.mubr.f32.mxu0 0.0
      %1567 = vmatmul.mubr.f32.gmra.mxu0 %v1379
      %v1568 = vpop.f32.mrf.mxu0
      %v1569 = vadd.f32 0.0, %v1568
      %v1570 = vpop.f32.mrf.mxu0
      %1571 = vmatprep.mubr.f32.mxu0 0.0
      %1572 = vmatmul.mubr.f32.gmra.mxu0 %v1382
      %v1573 = vpop.f32.mrf.mxu0
      %v1574 = vadd.f32 0.0, %v1573
      %v1575 = vpop.f32.mrf.mxu0
      %1576 = vmatprep.mubr.f32.mxu0 0.0
      %1577 = vmatmul.mubr.f32.gmra.mxu0 %v1385
      %v1578 = vpop.f32.mrf.mxu0
      %v1579 = vadd.f32 0.0, %v1578
      %v1580 = vpop.f32.mrf.mxu0
      %1581 = vmatprep.mubr.f32.mxu0 0.0
      %1582 = vmatmul.mubr.f32.gmra.mxu0 %v1388
      %v1583 = vpop.f32.mrf.mxu0
      %v1584 = vadd.f32 0.0, %v1583
      %v1585 = vpop.f32.mrf.mxu0
      %1586 = vmatprep.mubr.f32.mxu0 0.0
      %1587 = vmatmul.mubr.f32.gmra.mxu0 %v1391
      %v1588 = vpop.f32.mrf.mxu0
      %v1589 = vadd.f32 0.0, %v1588
      %v1590 = vpop.f32.mrf.mxu0
      %1591 = vmatprep.mubr.f32.mxu0 0.0
      %1592 = vmatmul.mubr.f32.gmra.mxu0 %v1394
      %v1593 = vpop.f32.mrf.mxu0
      %v1594 = vadd.f32 0.0, %v1593
      %v1595 = vpop.f32.mrf.mxu0
      %1596 = vmatprep.mubr.f32.mxu0 0.0
      %1597 = vmatmul.mubr.f32.gmra.mxu0 %v1397
      %v1598 = vpop.f32.mrf.mxu0
      %v1599 = vadd.f32 0.0, %v1598
      %v1600 = vpop.f32.mrf.mxu0
      %1601 = vmatprep.mubr.f32.mxu0 0.0
      %1602 = vmatmul.mubr.f32.gmra.mxu0 %v1400
      %v1603 = vpop.f32.mrf.mxu0
      %v1604 = vadd.f32 0.0, %v1603
      %v1605 = vpop.f32.mrf.mxu0
      %1606 = vmatprep.mubr.f32.mxu0 0.0
      %1607 = vmatmul.mubr.f32.gmra.mxu0 %v1403
      %v1608 = vpop.f32.mrf.mxu0
      %v1609 = vadd.f32 0.0, %v1608
      %v1610 = vpop.f32.mrf.mxu0
      %1611 = vmatprep.mubr.f32.mxu0 0.0
      %1612 = vmatmul.mubr.f32.gmra.mxu0 %v1406
      %v1613 = vpop.f32.mrf.mxu0
      %v1614 = vadd.f32 0.0, %v1613
      %v1615 = vpop.f32.mrf.mxu0
      %1616 = vmatprep.mubr.f32.mxu0 0.0
      %1617 = vmatmul.mubr.f32.gmra.mxu0 %v1409
      %v1618 = vpop.f32.mrf.mxu0
      %v1619 = vadd.f32 0.0, %v1618
      %v1620 = vpop.f32.mrf.mxu0
      %1621 = vmatprep.mubr.f32.mxu0 0.0
      %1622 = vmatmul.mubr.f32.gmra.mxu0 %v1412
      %v1623 = vpop.f32.mrf.mxu0
      %v1624 = vadd.f32 0.0, %v1623
      %v1625 = vpop.f32.mrf.mxu0
      %1626 = vmatprep.mubr.f32.mxu0 0.0
      %1627 = vmatmul.mubr.f32.gmra.mxu0 %v1415
      %v1628 = vpop.f32.mrf.mxu0
      %v1629 = vadd.f32 0.0, %v1628
      %v1630 = vpop.f32.mrf.mxu0
      %1631 = vdwg.mxu0
      %v1632 = vadd.f32 %v1262, %v1484
      %v1633 = vadd.f32 %v1263, %v1489
      %v1634 = vadd.f32 %v1264, %v1494
      %v1635 = vadd.f32 %v1265, %v1499
      %v1636 = vadd.f32 %v1266, %v1504
      %v1637 = vadd.f32 %v1267, %v1509
      %v1638 = vadd.f32 %v1268, %v1514
      %v1639 = vadd.f32 %v1269, %v1519
      %v1640 = vadd.f32 %v1270, %v1524
      %v1641 = vadd.f32 %v1271, %v1529
      %v1642 = vadd.f32 %v1272, %v1534
      %v1643 = vadd.f32 %v1273, %v1539
      %v1644 = vadd.f32 %v1274, %v1544
      %v1645 = vadd.f32 %v1275, %v1549
      %v1646 = vadd.f32 %v1276, %v1554
      %v1647 = vadd.f32 %v1277, %v1559
      %v1648 = vadd.f32 %v1278, %v1564
      %v1649 = vadd.f32 %v1279, %v1569
      %v1650 = vadd.f32 %v1280, %v1574
      %v1651 = vadd.f32 %v1281, %v1579
      %v1652 = vadd.f32 %v1282, %v1584
      %v1653 = vadd.f32 %v1283, %v1589
      %v1654 = vadd.f32 %v1284, %v1594
      %v1655 = vadd.f32 %v1285, %v1599
      %v1656 = vadd.f32 %v1286, %v1604
      %v1657 = vadd.f32 %v1287, %v1609
      %v1658 = vadd.f32 %v1288, %v1614
      %v1659 = vadd.f32 %v1289, %v1619
      %v1660 = vadd.f32 %v1290, %v1624
      %v1661 = vadd.f32 %v1291, %v1629
      %v1662 = vld [vmem:[%s1294 + $0x1] sm:$0xff]
      %v1663 = vld [vmem:[%s1294 + $0x9] sm:$0xff]
      %v1664 = vld [vmem:[%s1294 + $0x11] sm:$0xff]
      %v1665 = vld [vmem:[%s1294 + $0x21] sm:$0xff]
      %v1666 = vld [vmem:[%s1294 + $0x29] sm:$0xff]
      %v1667 = vld [vmem:[%s1294 + $0x31] sm:$0xff]
      %v1668 = vld [vmem:[%s1294 + $0x41] sm:$0xff]
      %v1669 = vld [vmem:[%s1294 + $0x49] sm:$0xff]
      %v1670 = vld [vmem:[%s1294 + $0x51] sm:$0xff]
      %v1671 = vld [vmem:[%s1294 + $0x61] sm:$0xff]
      %v1672 = vld [vmem:[%s1294 + $0x69] sm:$0xff]
      %v1673 = vld [vmem:[%s1294 + $0x71] sm:$0xff]
      %v1674 = vld [vmem:[%s1294 + $0x81] sm:$0xff]
      %v1675 = vld [vmem:[%s1294 + $0x89] sm:$0xff]
      %v1676 = vld [vmem:[%s1294 + $0x91] sm:$0xff]
      %v1677 = vld [vmem:[%s1294 + $0xa1] sm:$0xff]
      %v1678 = vld [vmem:[%s1294 + $0xa9] sm:$0xff]
      %v1679 = vld [vmem:[%s1294 + $0xb1] sm:$0xff]
      %v1680 = vld [vmem:[%s1294 + $0xc1] sm:$0xff]
      %v1681 = vld [vmem:[%s1294 + $0xc9] sm:$0xff]
      %v1682 = vld [vmem:[%s1294 + $0xd1] sm:$0xff]
      %v1683 = vld [vmem:[%s1294 + $0xe1] sm:$0xff]
      %v1684 = vld [vmem:[%s1294 + $0xe9] sm:$0xff]
      %v1685 = vld [vmem:[%s1294 + $0xf1] sm:$0xff]
      %v1686 = vld [vmem:[%s1294 + $0x101] sm:$0xff]
      %v1687 = vld [vmem:[%s1294 + $0x109] sm:$0xff]
      %v1688 = vld [vmem:[%s1294 + $0x111] sm:$0xff]
      %v1689 = vld [vmem:[%s1294 + $0x121] sm:$0xff]
      %v1690 = vld [vmem:[%s1294 + $0x129] sm:$0xff]
      %v1691 = vld [vmem:[%s1294 + $0x131] sm:$0xff]
      %v1692 = vld [vmem:[%s1325 + $0x8] sm:$0xff]
      %v1694 = vsel %vm315, %v1662, 0
      %v1697 = vsel %vm315, %v1663, 0
      %v1700 = vsel %vm315, %v1664, 0
      %v1703 = vsel %vm315, %v1665, 0
      %v1706 = vsel %vm315, %v1666, 0
      %v1709 = vsel %vm315, %v1667, 0
      %v1712 = vsel %vm315, %v1668, 0
      %v1715 = vsel %vm315, %v1669, 0
      %v1718 = vsel %vm315, %v1670, 0
      %v1721 = vsel %vm315, %v1671, 0
      %v1724 = vsel %vm315, %v1672, 0
      %v1727 = vsel %vm315, %v1673, 0
      %v1730 = vsel %vm315, %v1674, 0
      %v1733 = vsel %vm315, %v1675, 0
      %v1736 = vsel %vm315, %v1676, 0
      %v1739 = vsel %vm315, %v1677, 0
      %v1742 = vsel %vm315, %v1678, 0
      %v1745 = vsel %vm315, %v1679, 0
      %v1748 = vsel %vm315, %v1680, 0
      %v1751 = vsel %vm315, %v1681, 0
      %v1754 = vsel %vm315, %v1682, 0
      %v1757 = vsel %vm315, %v1683, 0
      %v1760 = vsel %vm315, %v1684, 0
      %v1763 = vsel %vm315, %v1685, 0
      %v1766 = vsel %vm315, %v1686, 0
      %v1769 = vsel %vm315, %v1687, 0
      %v1772 = vsel %vm315, %v1688, 0
      %v1775 = vsel %vm315, %v1689, 0
      %v1778 = vsel %vm315, %v1690, 0
      %v1781 = vsel %vm315, %v1691, 0
      %1783 = vmatprep.subr.mxu0 0.0
      %1784 = vmatpush1.msra.mxu0 0.0
      %1785 = vmatprep.subr.mxu0 0.0
      %1786 = vmatpush1.msra.mxu0 0.0
      %1787 = vmatprep.subr.mxu0 0.0
      %1788 = vmatpush1.msra.mxu0 0.0
      %1789 = vmatprep.subr.mxu0 0.0
      %1790 = vmatpush1.msra.mxu0 0.0
      %1791 = vmatprep.subr.mxu0 0.0
      %1792 = vmatpush1.msra.mxu0 0.0
      %1793 = vmatprep.subr.mxu0 0.0
      %1794 = vmatpush1.msra.mxu0 0.0
      %1795 = vmatprep.subr.mxu0 0.0
      %1796 = vmatpush1.msra.mxu0 0.0
      %1797 = vmatprep.subr.mxu0 0.0
      %1798 = vmatpush1.msra.mxu0 0.0
      %1799 = vmatprep.subr.mxu0 0.0
      %1800 = vmatpush1.msra.mxu0 0.0
      %1801 = vmatprep.subr.mxu0 0.0
      %1802 = vmatpush1.msra.mxu0 0.0
      %1803 = vmatprep.subr.mxu0 0.0
      %1804 = vmatpush1.msra.mxu0 0.0
      %1805 = vmatprep.subr.mxu0 0.0
      %1806 = vmatpush1.msra.mxu0 0.0
      %1807 = vmatprep.subr.mxu0 0.0
      %1808 = vmatpush1.msra.mxu0 0.0
      %1809 = vmatprep.subr.mxu0 0.0
      %1810 = vmatpush1.msra.mxu0 0.0
      %1811 = vmatprep.subr.mxu0 0.0
      %1812 = vmatpush1.msra.mxu0 0.0
      %1813 = vmatprep.subr.mxu0 0.0
      %1814 = vmatpush1.msra.mxu0 %v1692
      %1815 = vmatprep.subr.mxu0 0.0
      %1816 = vmatpush2.msra.mxu0 0.0
      %1817 = vmatprep.subr.mxu0 0.0
      %1818 = vmatpush2.msra.mxu0 0.0
      %1819 = vmatprep.subr.mxu0 0.0
      %1820 = vmatpush2.msra.mxu0 0.0
      %1821 = vmatprep.subr.mxu0 0.0
      %1822 = vmatpush2.msra.mxu0 0.0
      %1823 = vmatprep.subr.mxu0 0.0
      %1824 = vmatpush2.msra.mxu0 0.0
      %1825 = vmatprep.subr.mxu0 0.0
      %1826 = vmatpush2.msra.mxu0 0.0
      %1827 = vmatprep.subr.mxu0 0.0
      %1828 = vmatpush2.msra.mxu0 0.0
      %1829 = vmatprep.subr.mxu0 0.0
      %1830 = vmatpush2.msra.mxu0 0.0
      %1831 = vmatprep.subr.mxu0 0.0
      %1832 = vmatpush2.msra.mxu0 0.0
      %1833 = vmatprep.subr.mxu0 0.0
      %1834 = vmatpush2.msra.mxu0 0.0
      %1835 = vmatprep.subr.mxu0 0.0
      %1836 = vmatpush2.msra.mxu0 0.0
      %1837 = vmatprep.subr.mxu0 0.0
      %1838 = vmatpush2.msra.mxu0 0.0
      %1839 = vmatprep.subr.mxu0 0.0
      %1840 = vmatpush2.msra.mxu0 0.0
      %1841 = vmatprep.subr.mxu0 0.0
      %1842 = vmatpush2.msra.mxu0 0.0
      %1843 = vmatprep.subr.mxu0 0.0
      %1844 = vmatpush2.msra.mxu0 0.0
      %1845 = vmatprep.subr.mxu0 0.0
      %1846 = vmatpush2.msra.mxu0 0.0
      %1847 = vmatprep.mubr.f32.mxu0 0.0
      %1848 = vmatmul.mubr.f32.gmra.mxu0 %v1694
      %v1849 = vpop.f32.mrf.mxu0
      %v1850 = vadd.f32 0.0, %v1849
      %v1851 = vpop.f32.mrf.mxu0
      %1852 = vmatprep.mubr.f32.mxu0 0.0
      %1853 = vmatmul.mubr.f32.gmra.mxu0 %v1697
      %v1854 = vpop.f32.mrf.mxu0
      %v1855 = vadd.f32 0.0, %v1854
      %v1856 = vpop.f32.mrf.mxu0
      %1857 = vmatprep.mubr.f32.mxu0 0.0
      %1858 = vmatmul.mubr.f32.gmra.mxu0 %v1700
      %v1859 = vpop.f32.mrf.mxu0
      %v1860 = vadd.f32 0.0, %v1859
      %v1861 = vpop.f32.mrf.mxu0
      %1862 = vmatprep.mubr.f32.mxu0 0.0
      %1863 = vmatmul.mubr.f32.gmra.mxu0 %v1703
      %v1864 = vpop.f32.mrf.mxu0
      %v1865 = vadd.f32 0.0, %v1864
      %v1866 = vpop.f32.mrf.mxu0
      %1867 = vmatprep.mubr.f32.mxu0 0.0
      %1868 = vmatmul.mubr.f32.gmra.mxu0 %v1706
      %v1869 = vpop.f32.mrf.mxu0
      %v1870 = vadd.f32 0.0, %v1869
      %v1871 = vpop.f32.mrf.mxu0
      %1872 = vmatprep.mubr.f32.mxu0 0.0
      %1873 = vmatmul.mubr.f32.gmra.mxu0 %v1709
      %v1874 = vpop.f32.mrf.mxu0
      %v1875 = vadd.f32 0.0, %v1874
      %v1876 = vpop.f32.mrf.mxu0
      %1877 = vmatprep.mubr.f32.mxu0 0.0
      %1878 = vmatmul.mubr.f32.gmra.mxu0 %v1712
      %v1879 = vpop.f32.mrf.mxu0
      %v1880 = vadd.f32 0.0, %v1879
      %v1881 = vpop.f32.mrf.mxu0
      %1882 = vmatprep.mubr.f32.mxu0 0.0
      %1883 = vmatmul.mubr.f32.gmra.mxu0 %v1715
      %v1884 = vpop.f32.mrf.mxu0
      %v1885 = vadd.f32 0.0, %v1884
      %v1886 = vpop.f32.mrf.mxu0
      %1887 = vmatprep.mubr.f32.mxu0 0.0
      %1888 = vmatmul.mubr.f32.gmra.mxu0 %v1718
      %v1889 = vpop.f32.mrf.mxu0
      %v1890 = vadd.f32 0.0, %v1889
      %v1891 = vpop.f32.mrf.mxu0
      %1892 = vmatprep.mubr.f32.mxu0 0.0
      %1893 = vmatmul.mubr.f32.gmra.mxu0 %v1721
      %v1894 = vpop.f32.mrf.mxu0
      %v1895 = vadd.f32 0.0, %v1894
      %v1896 = vpop.f32.mrf.mxu0
      %1897 = vmatprep.mubr.f32.mxu0 0.0
      %1898 = vmatmul.mubr.f32.gmra.mxu0 %v1724
      %v1899 = vpop.f32.mrf.mxu0
      %v1900 = vadd.f32 0.0, %v1899
      %v1901 = vpop.f32.mrf.mxu0
      %1902 = vmatprep.mubr.f32.mxu0 0.0
      %1903 = vmatmul.mubr.f32.gmra.mxu0 %v1727
      %v1904 = vpop.f32.mrf.mxu0
      %v1905 = vadd.f32 0.0, %v1904
      %v1906 = vpop.f32.mrf.mxu0
      %1907 = vmatprep.mubr.f32.mxu0 0.0
      %1908 = vmatmul.mubr.f32.gmra.mxu0 %v1730
      %v1909 = vpop.f32.mrf.mxu0
      %v1910 = vadd.f32 0.0, %v1909
      %v1911 = vpop.f32.mrf.mxu0
      %1912 = vmatprep.mubr.f32.mxu0 0.0
      %1913 = vmatmul.mubr.f32.gmra.mxu0 %v1733
      %v1914 = vpop.f32.mrf.mxu0
      %v1915 = vadd.f32 0.0, %v1914
      %v1916 = vpop.f32.mrf.mxu0
      %1917 = vmatprep.mubr.f32.mxu0 0.0
      %1918 = vmatmul.mubr.f32.gmra.mxu0 %v1736
      %v1919 = vpop.f32.mrf.mxu0
      %v1920 = vadd.f32 0.0, %v1919
      %v1921 = vpop.f32.mrf.mxu0
      %1922 = vmatprep.mubr.f32.mxu0 0.0
      %1923 = vmatmul.mubr.f32.gmra.mxu0 %v1739
      %v1924 = vpop.f32.mrf.mxu0
      %v1925 = vadd.f32 0.0, %v1924
      %v1926 = vpop.f32.mrf.mxu0
      %1927 = vmatprep.mubr.f32.mxu0 0.0
      %1928 = vmatmul.mubr.f32.gmra.mxu0 %v1742
      %v1929 = vpop.f32.mrf.mxu0
      %v1930 = vadd.f32 0.0, %v1929
      %v1931 = vpop.f32.mrf.mxu0
      %1932 = vmatprep.mubr.f32.mxu0 0.0
      %1933 = vmatmul.mubr.f32.gmra.mxu0 %v1745
      %v1934 = vpop.f32.mrf.mxu0
      %v1935 = vadd.f32 0.0, %v1934
      %v1936 = vpop.f32.mrf.mxu0
      %1937 = vmatprep.mubr.f32.mxu0 0.0
      %1938 = vmatmul.mubr.f32.gmra.mxu0 %v1748
      %v1939 = vpop.f32.mrf.mxu0
      %v1940 = vadd.f32 0.0, %v1939
      %v1941 = vpop.f32.mrf.mxu0
      %1942 = vmatprep.mubr.f32.mxu0 0.0
      %1943 = vmatmul.mubr.f32.gmra.mxu0 %v1751
      %v1944 = vpop.f32.mrf.mxu0
      %v1945 = vadd.f32 0.0, %v1944
      %v1946 = vpop.f32.mrf.mxu0
      %1947 = vmatprep.mubr.f32.mxu0 0.0
      %1948 = vmatmul.mubr.f32.gmra.mxu0 %v1754
      %v1949 = vpop.f32.mrf.mxu0
      %v1950 = vadd.f32 0.0, %v1949
      %v1951 = vpop.f32.mrf.mxu0
      %1952 = vmatprep.mubr.f32.mxu0 0.0
      %1953 = vmatmul.mubr.f32.gmra.mxu0 %v1757
      %v1954 = vpop.f32.mrf.mxu0
      %v1955 = vadd.f32 0.0, %v1954
      %v1956 = vpop.f32.mrf.mxu0
      %1957 = vmatprep.mubr.f32.mxu0 0.0
      %1958 = vmatmul.mubr.f32.gmra.mxu0 %v1760
      %v1959 = vpop.f32.mrf.mxu0
      %v1960 = vadd.f32 0.0, %v1959
      %v1961 = vpop.f32.mrf.mxu0
      %1962 = vmatprep.mubr.f32.mxu0 0.0
      %1963 = vmatmul.mubr.f32.gmra.mxu0 %v1763
      %v1964 = vpop.f32.mrf.mxu0
      %v1965 = vadd.f32 0.0, %v1964
      %v1966 = vpop.f32.mrf.mxu0
      %1967 = vmatprep.mubr.f32.mxu0 0.0
      %1968 = vmatmul.mubr.f32.gmra.mxu0 %v1766
      %v1969 = vpop.f32.mrf.mxu0
      %v1970 = vadd.f32 0.0, %v1969
      %v1971 = vpop.f32.mrf.mxu0
      %1972 = vmatprep.mubr.f32.mxu0 0.0
      %1973 = vmatmul.mubr.f32.gmra.mxu0 %v1769
      %v1974 = vpop.f32.mrf.mxu0
      %v1975 = vadd.f32 0.0, %v1974
      %v1976 = vpop.f32.mrf.mxu0
      %1977 = vmatprep.mubr.f32.mxu0 0.0
      %1978 = vmatmul.mubr.f32.gmra.mxu0 %v1772
      %v1979 = vpop.f32.mrf.mxu0
      %v1980 = vadd.f32 0.0, %v1979
      %v1981 = vpop.f32.mrf.mxu0
      %1982 = vmatprep.mubr.f32.mxu0 0.0
      %1983 = vmatmul.mubr.f32.gmra.mxu0 %v1775
      %v1984 = vpop.f32.mrf.mxu0
      %v1985 = vadd.f32 0.0, %v1984
      %v1986 = vpop.f32.mrf.mxu0
      %1987 = vmatprep.mubr.f32.mxu0 0.0
      %1988 = vmatmul.mubr.f32.gmra.mxu0 %v1778
      %v1989 = vpop.f32.mrf.mxu0
      %v1990 = vadd.f32 0.0, %v1989
      %v1991 = vpop.f32.mrf.mxu0
      %1992 = vmatprep.mubr.f32.mxu0 0.0
      %1993 = vmatmul.mubr.f32.gmra.mxu0 %v1781
      %v1994 = vpop.f32.mrf.mxu0
      %v1995 = vadd.f32 0.0, %v1994
      %v1996 = vpop.f32.mrf.mxu0
      %1997 = vdwg.mxu0
      %v1998 = vadd.f32 %v1632, %v1850
      %v1999 = vadd.f32 %v1633, %v1855
      %v2000 = vadd.f32 %v1634, %v1860
      %v2001 = vadd.f32 %v1635, %v1865
      %v2002 = vadd.f32 %v1636, %v1870
      %v2003 = vadd.f32 %v1637, %v1875
      %v2004 = vadd.f32 %v1638, %v1880
      %v2005 = vadd.f32 %v1639, %v1885
      %v2006 = vadd.f32 %v1640, %v1890
      %v2007 = vadd.f32 %v1641, %v1895
      %v2008 = vadd.f32 %v1642, %v1900
      %v2009 = vadd.f32 %v1643, %v1905
      %v2010 = vadd.f32 %v1644, %v1910
      %v2011 = vadd.f32 %v1645, %v1915
      %v2012 = vadd.f32 %v1646, %v1920
      %v2013 = vadd.f32 %v1647, %v1925
      %v2014 = vadd.f32 %v1648, %v1930
      %v2015 = vadd.f32 %v1649, %v1935
      %v2016 = vadd.f32 %v1650, %v1940
      %v2017 = vadd.f32 %v1651, %v1945
      %v2018 = vadd.f32 %v1652, %v1950
      %v2019 = vadd.f32 %v1653, %v1955
      %v2020 = vadd.f32 %v1654, %v1960
      %v2021 = vadd.f32 %v1655, %v1965
      %v2022 = vadd.f32 %v1656, %v1970
      %v2023 = vadd.f32 %v1657, %v1975
      %v2024 = vadd.f32 %v1658, %v1980
      %v2025 = vadd.f32 %v1659, %v1985
      %v2026 = vadd.f32 %v1660, %v1990
      %v2027 = vadd.f32 %v1661, %v1995
      %v2028 = vld [vmem:[%s1294 + $0x2] sm:$0xff]
      %v2029 = vld [vmem:[%s1294 + $0xa] sm:$0xff]
      %v2030 = vld [vmem:[%s1294 + $0x12] sm:$0xff]
      %v2031 = vld [vmem:[%s1294 + $0x22] sm:$0xff]
      %v2032 = vld [vmem:[%s1294 + $0x2a] sm:$0xff]
      %v2033 = vld [vmem:[%s1294 + $0x32] sm:$0xff]
      %v2034 = vld [vmem:[%s1294 + $0x42] sm:$0xff]
      %v2035 = vld [vmem:[%s1294 + $0x4a] sm:$0xff]
      %v2036 = vld [vmem:[%s1294 + $0x52] sm:$0xff]
      %v2037 = vld [vmem:[%s1294 + $0x62] sm:$0xff]
      %v2038 = vld [vmem:[%s1294 + $0x6a] sm:$0xff]
      %v2039 = vld [vmem:[%s1294 + $0x72] sm:$0xff]
      %v2040 = vld [vmem:[%s1294 + $0x82] sm:$0xff]
      %v2041 = vld [vmem:[%s1294 + $0x8a] sm:$0xff]
      %v2042 = vld [vmem:[%s1294 + $0x92] sm:$0xff]
      %v2043 = vld [vmem:[%s1294 + $0xa2] sm:$0xff]
      %v2044 = vld [vmem:[%s1294 + $0xaa] sm:$0xff]
      %v2045 = vld [vmem:[%s1294 + $0xb2] sm:$0xff]
      %v2046 = vld [vmem:[%s1294 + $0xc2] sm:$0xff]
      %v2047 = vld [vmem:[%s1294 + $0xca] sm:$0xff]
      %v2048 = vld [vmem:[%s1294 + $0xd2] sm:$0xff]
      %v2049 = vld [vmem:[%s1294 + $0xe2] sm:$0xff]
      %v2050 = vld [vmem:[%s1294 + $0xea] sm:$0xff]
      %v2051 = vld [vmem:[%s1294 + $0xf2] sm:$0xff]
      %v2052 = vld [vmem:[%s1294 + $0x102] sm:$0xff]
      %v2053 = vld [vmem:[%s1294 + $0x10a] sm:$0xff]
      %v2054 = vld [vmem:[%s1294 + $0x112] sm:$0xff]
      %v2055 = vld [vmem:[%s1294 + $0x122] sm:$0xff]
      %v2056 = vld [vmem:[%s1294 + $0x12a] sm:$0xff]
      %v2057 = vld [vmem:[%s1294 + $0x132] sm:$0xff]
      %v2058 = vld [vmem:[%s1325 + $0x10] sm:$0xff]
      %v2060 = vsel %vm315, %v2028, 0
      %v2063 = vsel %vm315, %v2029, 0
      %v2066 = vsel %vm315, %v2030, 0
      %v2069 = vsel %vm315, %v2031, 0
      %v2072 = vsel %vm315, %v2032, 0
      %v2075 = vsel %vm315, %v2033, 0
      %v2078 = vsel %vm315, %v2034, 0
      %v2081 = vsel %vm315, %v2035, 0
      %v2084 = vsel %vm315, %v2036, 0
      %v2087 = vsel %vm315, %v2037, 0
      %v2090 = vsel %vm315, %v2038, 0
      %v2093 = vsel %vm315, %v2039, 0
      %v2096 = vsel %vm315, %v2040, 0
      %v2099 = vsel %vm315, %v2041, 0
      %v2102 = vsel %vm315, %v2042, 0
      %v2105 = vsel %vm315, %v2043, 0
      %v2108 = vsel %vm315, %v2044, 0
      %v2111 = vsel %vm315, %v2045, 0
      %v2114 = vsel %vm315, %v2046, 0
      %v2117 = vsel %vm315, %v2047, 0
      %v2120 = vsel %vm315, %v2048, 0
      %v2123 = vsel %vm315, %v2049, 0
      %v2126 = vsel %vm315, %v2050, 0
      %v2129 = vsel %vm315, %v2051, 0
      %v2132 = vsel %vm315, %v2052, 0
      %v2135 = vsel %vm315, %v2053, 0
      %v2138 = vsel %vm315, %v2054, 0
      %v2141 = vsel %vm315, %v2055, 0
      %v2144 = vsel %vm315, %v2056, 0
      %v2147 = vsel %vm315, %v2057, 0
      %2149 = vmatprep.subr.mxu0 0.0
      %2150 = vmatpush1.msra.mxu0 0.0
      %2151 = vmatprep.subr.mxu0 0.0
      %2152 = vmatpush1.msra.mxu0 0.0
      %2153 = vmatprep.subr.mxu0 0.0
      %2154 = vmatpush1.msra.mxu0 0.0
      %2155 = vmatprep.subr.mxu0 0.0
      %2156 = vmatpush1.msra.mxu0 0.0
      %2157 = vmatprep.subr.mxu0 0.0
      %2158 = vmatpush1.msra.mxu0 0.0
      %2159 = vmatprep.subr.mxu0 0.0
      %2160 = vmatpush1.msra.mxu0 0.0
      %2161 = vmatprep.subr.mxu0 0.0
      %2162 = vmatpush1.msra.mxu0 0.0
      %2163 = vmatprep.subr.mxu0 0.0
      %2164 = vmatpush1.msra.mxu0 0.0
      %2165 = vmatprep.subr.mxu0 0.0
      %2166 = vmatpush1.msra.mxu0 0.0
      %2167 = vmatprep.subr.mxu0 0.0
      %2168 = vmatpush1.msra.mxu0 0.0
      %2169 = vmatprep.subr.mxu0 0.0
      %2170 = vmatpush1.msra.mxu0 0.0
      %2171 = vmatprep.subr.mxu0 0.0
      %2172 = vmatpush1.msra.mxu0 0.0
      %2173 = vmatprep.subr.mxu0 0.0
      %2174 = vmatpush1.msra.mxu0 0.0
      %2175 = vmatprep.subr.mxu0 0.0
      %2176 = vmatpush1.msra.mxu0 0.0
      %2177 = vmatprep.subr.mxu0 0.0
      %2178 = vmatpush1.msra.mxu0 0.0
      %2179 = vmatprep.subr.mxu0 0.0
      %2180 = vmatpush1.msra.mxu0 %v2058
      %2181 = vmatprep.subr.mxu0 0.0
      %2182 = vmatpush2.msra.mxu0 0.0
      %2183 = vmatprep.subr.mxu0 0.0
      %2184 = vmatpush2.msra.mxu0 0.0
      %2185 = vmatprep.subr.mxu0 0.0
      %2186 = vmatpush2.msra.mxu0 0.0
      %2187 = vmatprep.subr.mxu0 0.0
      %2188 = vmatpush2.msra.mxu0 0.0
      %2189 = vmatprep.subr.mxu0 0.0
      %2190 = vmatpush2.msra.mxu0 0.0
      %2191 = vmatprep.subr.mxu0 0.0
      %2192 = vmatpush2.msra.mxu0 0.0
      %2193 = vmatprep.subr.mxu0 0.0
      %2194 = vmatpush2.msra.mxu0 0.0
      %2195 = vmatprep.subr.mxu0 0.0
      %2196 = vmatpush2.msra.mxu0 0.0
      %2197 = vmatprep.subr.mxu0 0.0
      %2198 = vmatpush2.msra.mxu0 0.0
      %2199 = vmatprep.subr.mxu0 0.0
      %2200 = vmatpush2.msra.mxu0 0.0
      %2201 = vmatprep.subr.mxu0 0.0
      %2202 = vmatpush2.msra.mxu0 0.0
      %2203 = vmatprep.subr.mxu0 0.0
      %2204 = vmatpush2.msra.mxu0 0.0
      %2205 = vmatprep.subr.mxu0 0.0
      %2206 = vmatpush2.msra.mxu0 0.0
      %2207 = vmatprep.subr.mxu0 0.0
      %2208 = vmatpush2.msra.mxu0 0.0
      %2209 = vmatprep.subr.mxu0 0.0
      %2210 = vmatpush2.msra.mxu0 0.0
      %2211 = vmatprep.subr.mxu0 0.0
      %2212 = vmatpush2.msra.mxu0 0.0
      %2213 = vmatprep.mubr.f32.mxu0 0.0
      %2214 = vmatmul.mubr.f32.gmra.mxu0 %v2060
      %v2215 = vpop.f32.mrf.mxu0
      %v2216 = vadd.f32 0.0, %v2215
      %v2217 = vpop.f32.mrf.mxu0
      %2218 = vmatprep.mubr.f32.mxu0 0.0
      %2219 = vmatmul.mubr.f32.gmra.mxu0 %v2063
      %v2220 = vpop.f32.mrf.mxu0
      %v2221 = vadd.f32 0.0, %v2220
      %v2222 = vpop.f32.mrf.mxu0
      %2223 = vmatprep.mubr.f32.mxu0 0.0
      %2224 = vmatmul.mubr.f32.gmra.mxu0 %v2066
      %v2225 = vpop.f32.mrf.mxu0
      %v2226 = vadd.f32 0.0, %v2225
      %v2227 = vpop.f32.mrf.mxu0
      %2228 = vmatprep.mubr.f32.mxu0 0.0
      %2229 = vmatmul.mubr.f32.gmra.mxu0 %v2069
      %v2230 = vpop.f32.mrf.mxu0
      %v2231 = vadd.f32 0.0, %v2230
      %v2232 = vpop.f32.mrf.mxu0
      %2233 = vmatprep.mubr.f32.mxu0 0.0
      %2234 = vmatmul.mubr.f32.gmra.mxu0 %v2072
      %v2235 = vpop.f32.mrf.mxu0
      %v2236 = vadd.f32 0.0, %v2235
      %v2237 = vpop.f32.mrf.mxu0
      %2238 = vmatprep.mubr.f32.mxu0 0.0
      %2239 = vmatmul.mubr.f32.gmra.mxu0 %v2075
      %v2240 = vpop.f32.mrf.mxu0
      %v2241 = vadd.f32 0.0, %v2240
      %v2242 = vpop.f32.mrf.mxu0
      %2243 = vmatprep.mubr.f32.mxu0 0.0
      %2244 = vmatmul.mubr.f32.gmra.mxu0 %v2078
      %v2245 = vpop.f32.mrf.mxu0
      %v2246 = vadd.f32 0.0, %v2245
      %v2247 = vpop.f32.mrf.mxu0
      %2248 = vmatprep.mubr.f32.mxu0 0.0
      %2249 = vmatmul.mubr.f32.gmra.mxu0 %v2081
      %v2250 = vpop.f32.mrf.mxu0
      %v2251 = vadd.f32 0.0, %v2250
      %v2252 = vpop.f32.mrf.mxu0
      %2253 = vmatprep.mubr.f32.mxu0 0.0
      %2254 = vmatmul.mubr.f32.gmra.mxu0 %v2084
      %v2255 = vpop.f32.mrf.mxu0
      %v2256 = vadd.f32 0.0, %v2255
      %v2257 = vpop.f32.mrf.mxu0
      %2258 = vmatprep.mubr.f32.mxu0 0.0
      %2259 = vmatmul.mubr.f32.gmra.mxu0 %v2087
      %v2260 = vpop.f32.mrf.mxu0
      %v2261 = vadd.f32 0.0, %v2260
      %v2262 = vpop.f32.mrf.mxu0
      %2263 = vmatprep.mubr.f32.mxu0 0.0
      %2264 = vmatmul.mubr.f32.gmra.mxu0 %v2090
      %v2265 = vpop.f32.mrf.mxu0
      %v2266 = vadd.f32 0.0, %v2265
      %v2267 = vpop.f32.mrf.mxu0
      %2268 = vmatprep.mubr.f32.mxu0 0.0
      %2269 = vmatmul.mubr.f32.gmra.mxu0 %v2093
      %v2270 = vpop.f32.mrf.mxu0
      %v2271 = vadd.f32 0.0, %v2270
      %v2272 = vpop.f32.mrf.mxu0
      %2273 = vmatprep.mubr.f32.mxu0 0.0
      %2274 = vmatmul.mubr.f32.gmra.mxu0 %v2096
      %v2275 = vpop.f32.mrf.mxu0
      %v2276 = vadd.f32 0.0, %v2275
      %v2277 = vpop.f32.mrf.mxu0
      %2278 = vmatprep.mubr.f32.mxu0 0.0
      %2279 = vmatmul.mubr.f32.gmra.mxu0 %v2099
      %v2280 = vpop.f32.mrf.mxu0
      %v2281 = vadd.f32 0.0, %v2280
      %v2282 = vpop.f32.mrf.mxu0
      %2283 = vmatprep.mubr.f32.mxu0 0.0
      %2284 = vmatmul.mubr.f32.gmra.mxu0 %v2102
      %v2285 = vpop.f32.mrf.mxu0
      %v2286 = vadd.f32 0.0, %v2285
      %v2287 = vpop.f32.mrf.mxu0
      %2288 = vmatprep.mubr.f32.mxu0 0.0
      %2289 = vmatmul.mubr.f32.gmra.mxu0 %v2105
      %v2290 = vpop.f32.mrf.mxu0
      %v2291 = vadd.f32 0.0, %v2290
      %v2292 = vpop.f32.mrf.mxu0
      %2293 = vmatprep.mubr.f32.mxu0 0.0
      %2294 = vmatmul.mubr.f32.gmra.mxu0 %v2108
      %v2295 = vpop.f32.mrf.mxu0
      %v2296 = vadd.f32 0.0, %v2295
      %v2297 = vpop.f32.mrf.mxu0
      %2298 = vmatprep.mubr.f32.mxu0 0.0
      %2299 = vmatmul.mubr.f32.gmra.mxu0 %v2111
      %v2300 = vpop.f32.mrf.mxu0
      %v2301 = vadd.f32 0.0, %v2300
      %v2302 = vpop.f32.mrf.mxu0
      %2303 = vmatprep.mubr.f32.mxu0 0.0
      %2304 = vmatmul.mubr.f32.gmra.mxu0 %v2114
      %v2305 = vpop.f32.mrf.mxu0
      %v2306 = vadd.f32 0.0, %v2305
      %v2307 = vpop.f32.mrf.mxu0
      %2308 = vmatprep.mubr.f32.mxu0 0.0
      %2309 = vmatmul.mubr.f32.gmra.mxu0 %v2117
      %v2310 = vpop.f32.mrf.mxu0
      %v2311 = vadd.f32 0.0, %v2310
      %v2312 = vpop.f32.mrf.mxu0
      %2313 = vmatprep.mubr.f32.mxu0 0.0
      %2314 = vmatmul.mubr.f32.gmra.mxu0 %v2120
      %v2315 = vpop.f32.mrf.mxu0
      %v2316 = vadd.f32 0.0, %v2315
      %v2317 = vpop.f32.mrf.mxu0
      %2318 = vmatprep.mubr.f32.mxu0 0.0
      %2319 = vmatmul.mubr.f32.gmra.mxu0 %v2123
      %v2320 = vpop.f32.mrf.mxu0
      %v2321 = vadd.f32 0.0, %v2320
      %v2322 = vpop.f32.mrf.mxu0
      %2323 = vmatprep.mubr.f32.mxu0 0.0
      %2324 = vmatmul.mubr.f32.gmra.mxu0 %v2126
      %v2325 = vpop.f32.mrf.mxu0
      %v2326 = vadd.f32 0.0, %v2325
      %v2327 = vpop.f32.mrf.mxu0
      %2328 = vmatprep.mubr.f32.mxu0 0.0
      %2329 = vmatmul.mubr.f32.gmra.mxu0 %v2129
      %v2330 = vpop.f32.mrf.mxu0
      %v2331 = vadd.f32 0.0, %v2330
      %v2332 = vpop.f32.mrf.mxu0
      %2333 = vmatprep.mubr.f32.mxu0 0.0
      %2334 = vmatmul.mubr.f32.gmra.mxu0 %v2132
      %v2335 = vpop.f32.mrf.mxu0
      %v2336 = vadd.f32 0.0, %v2335
      %v2337 = vpop.f32.mrf.mxu0
      %2338 = vmatprep.mubr.f32.mxu0 0.0
      %2339 = vmatmul.mubr.f32.gmra.mxu0 %v2135
      %v2340 = vpop.f32.mrf.mxu0
      %v2341 = vadd.f32 0.0, %v2340
      %v2342 = vpop.f32.mrf.mxu0
      %2343 = vmatprep.mubr.f32.mxu0 0.0
      %2344 = vmatmul.mubr.f32.gmra.mxu0 %v2138
      %v2345 = vpop.f32.mrf.mxu0
      %v2346 = vadd.f32 0.0, %v2345
      %v2347 = vpop.f32.mrf.mxu0
      %2348 = vmatprep.mubr.f32.mxu0 0.0
      %2349 = vmatmul.mubr.f32.gmra.mxu0 %v2141
      %v2350 = vpop.f32.mrf.mxu0
      %v2351 = vadd.f32 0.0, %v2350
      %v2352 = vpop.f32.mrf.mxu0
      %2353 = vmatprep.mubr.f32.mxu0 0.0
      %2354 = vmatmul.mubr.f32.gmra.mxu0 %v2144
      %v2355 = vpop.f32.mrf.mxu0
      %v2356 = vadd.f32 0.0, %v2355
      %v2357 = vpop.f32.mrf.mxu0
      %2358 = vmatprep.mubr.f32.mxu0 0.0
      %2359 = vmatmul.mubr.f32.gmra.mxu0 %v2147
      %v2360 = vpop.f32.mrf.mxu0
      %v2361 = vadd.f32 0.0, %v2360
      %v2362 = vpop.f32.mrf.mxu0
      %2363 = vdwg.mxu0
      %v2364 = vadd.f32 %v1998, %v2216
      %v2365 = vadd.f32 %v1999, %v2221
      %v2366 = vadd.f32 %v2000, %v2226
      %v2367 = vadd.f32 %v2001, %v2231
      %v2368 = vadd.f32 %v2002, %v2236
      %v2369 = vadd.f32 %v2003, %v2241
      %v2370 = vadd.f32 %v2004, %v2246
      %v2371 = vadd.f32 %v2005, %v2251
      %v2372 = vadd.f32 %v2006, %v2256
      %v2373 = vadd.f32 %v2007, %v2261
      %v2374 = vadd.f32 %v2008, %v2266
      %v2375 = vadd.f32 %v2009, %v2271
      %v2376 = vadd.f32 %v2010, %v2276
      %v2377 = vadd.f32 %v2011, %v2281
      %v2378 = vadd.f32 %v2012, %v2286
      %v2379 = vadd.f32 %v2013, %v2291
      %v2380 = vadd.f32 %v2014, %v2296
      %v2381 = vadd.f32 %v2015, %v2301
      %v2382 = vadd.f32 %v2016, %v2306
      %v2383 = vadd.f32 %v2017, %v2311
      %v2384 = vadd.f32 %v2018, %v2316
      %v2385 = vadd.f32 %v2019, %v2321
      %v2386 = vadd.f32 %v2020, %v2326
      %v2387 = vadd.f32 %v2021, %v2331
      %v2388 = vadd.f32 %v2022, %v2336
      %v2389 = vadd.f32 %v2023, %v2341
      %v2390 = vadd.f32 %v2024, %v2346
      %v2391 = vadd.f32 %v2025, %v2351
      %v2392 = vadd.f32 %v2026, %v2356
      %v2393 = vadd.f32 %v2027, %v2361
      %s2394 = sadd.s32 %s250, 2
      %s2395 = smul.u32 %s2394, 32
      %s2396 = scalar_lea.vmem %s238, %s2395
      %v2397 = vld [vmem:[%s2396] sm:$0xff]
      %v2398 = vld [vmem:[%s2396 + $0x8] sm:$0xff]
      %v2399 = vld [vmem:[%s2396 + $0x10] sm:$0xff]
      %v2400 = vld [vmem:[%s2396 + $0x20] sm:$0xff]
      %v2401 = vld [vmem:[%s2396 + $0x28] sm:$0xff]
      %v2402 = vld [vmem:[%s2396 + $0x30] sm:$0xff]
      %v2403 = vld [vmem:[%s2396 + $0x40] sm:$0xff]
      %v2404 = vld [vmem:[%s2396 + $0x48] sm:$0xff]
      %v2405 = vld [vmem:[%s2396 + $0x50] sm:$0xff]
      %v2406 = vld [vmem:[%s2396 + $0x60] sm:$0xff]
      %v2407 = vld [vmem:[%s2396 + $0x68] sm:$0xff]
      %v2408 = vld [vmem:[%s2396 + $0x70] sm:$0xff]
      %v2409 = vld [vmem:[%s2396 + $0x80] sm:$0xff]
      %v2410 = vld [vmem:[%s2396 + $0x88] sm:$0xff]
      %v2411 = vld [vmem:[%s2396 + $0x90] sm:$0xff]
      %v2412 = vld [vmem:[%s2396 + $0xa0] sm:$0xff]
      %v2413 = vld [vmem:[%s2396 + $0xa8] sm:$0xff]
      %v2414 = vld [vmem:[%s2396 + $0xb0] sm:$0xff]
      %v2415 = vld [vmem:[%s2396 + $0xc0] sm:$0xff]
      %v2416 = vld [vmem:[%s2396 + $0xc8] sm:$0xff]
      %v2417 = vld [vmem:[%s2396 + $0xd0] sm:$0xff]
      %v2418 = vld [vmem:[%s2396 + $0xe0] sm:$0xff]
      %v2419 = vld [vmem:[%s2396 + $0xe8] sm:$0xff]
      %v2420 = vld [vmem:[%s2396 + $0xf0] sm:$0xff]
      %v2421 = vld [vmem:[%s2396 + $0x100] sm:$0xff]
      %v2422 = vld [vmem:[%s2396 + $0x108] sm:$0xff]
      %v2423 = vld [vmem:[%s2396 + $0x110] sm:$0xff]
      %v2424 = vld [vmem:[%s2396 + $0x120] sm:$0xff]
      %v2425 = vld [vmem:[%s2396 + $0x128] sm:$0xff]
      %v2426 = vld [vmem:[%s2396 + $0x130] sm:$0xff]
      %s2427 = scalar_lea.vmem %s1, 48
      %v2428 = vld [vmem:[%s2427] sm:$0xff]
      %v2430 = vsel %vm315, %v2397, 0
      %v2433 = vsel %vm315, %v2398, 0
      %v2436 = vsel %vm315, %v2399, 0
      %v2439 = vsel %vm315, %v2400, 0
      %v2442 = vsel %vm315, %v2401, 0
      %v2445 = vsel %vm315, %v2402, 0
      %v2448 = vsel %vm315, %v2403, 0
      %v2451 = vsel %vm315, %v2404, 0
      %v2454 = vsel %vm315, %v2405, 0
      %v2457 = vsel %vm315, %v2406, 0
      %v2460 = vsel %vm315, %v2407, 0
      %v2463 = vsel %vm315, %v2408, 0
      %v2466 = vsel %vm315, %v2409, 0
      %v2469 = vsel %vm315, %v2410, 0
      %v2472 = vsel %vm315, %v2411, 0
      %v2475 = vsel %vm315, %v2412, 0
      %v2478 = vsel %vm315, %v2413, 0
      %v2481 = vsel %vm315, %v2414, 0
      %v2484 = vsel %vm315, %v2415, 0
      %v2487 = vsel %vm315, %v2416, 0
      %v2490 = vsel %vm315, %v2417, 0
      %v2493 = vsel %vm315, %v2418, 0
      %v2496 = vsel %vm315, %v2419, 0
      %v2499 = vsel %vm315, %v2420, 0
      %v2502 = vsel %vm315, %v2421, 0
      %v2505 = vsel %vm315, %v2422, 0
      %v2508 = vsel %vm315, %v2423, 0
      %v2511 = vsel %vm315, %v2424, 0
      %v2514 = vsel %vm315, %v2425, 0
      %v2517 = vsel %vm315, %v2426, 0
      %2519 = vmatprep.subr.mxu0 0.0
      %2520 = vmatpush1.msra.mxu0 0.0
      %2521 = vmatprep.subr.mxu0 0.0
      %2522 = vmatpush1.msra.mxu0 0.0
      %2523 = vmatprep.subr.mxu0 0.0
      %2524 = vmatpush1.msra.mxu0 0.0
      %2525 = vmatprep.subr.mxu0 0.0
      %2526 = vmatpush1.msra.mxu0 0.0
      %2527 = vmatprep.subr.mxu0 0.0
      %2528 = vmatpush1.msra.mxu0 0.0
      %2529 = vmatprep.subr.mxu0 0.0
      %2530 = vmatpush1.msra.mxu0 0.0
      %2531 = vmatprep.subr.mxu0 0.0
      %2532 = vmatpush1.msra.mxu0 0.0
      %2533 = vmatprep.subr.mxu0 0.0
      %2534 = vmatpush1.msra.mxu0 0.0
      %2535 = vmatprep.subr.mxu0 0.0
      %2536 = vmatpush1.msra.mxu0 0.0
      %2537 = vmatprep.subr.mxu0 0.0
      %2538 = vmatpush1.msra.mxu0 0.0
      %2539 = vmatprep.subr.mxu0 0.0
      %2540 = vmatpush1.msra.mxu0 0.0
      %2541 = vmatprep.subr.mxu0 0.0
      %2542 = vmatpush1.msra.mxu0 0.0
      %2543 = vmatprep.subr.mxu0 0.0
      %2544 = vmatpush1.msra.mxu0 0.0
      %2545 = vmatprep.subr.mxu0 0.0
      %2546 = vmatpush1.msra.mxu0 0.0
      %2547 = vmatprep.subr.mxu0 0.0
      %2548 = vmatpush1.msra.mxu0 0.0
      %2549 = vmatprep.subr.mxu0 0.0
      %2550 = vmatpush1.msra.mxu0 %v2428
      %2551 = vmatprep.subr.mxu0 0.0
      %2552 = vmatpush2.msra.mxu0 0.0
      %2553 = vmatprep.subr.mxu0 0.0
      %2554 = vmatpush2.msra.mxu0 0.0
      %2555 = vmatprep.subr.mxu0 0.0
      %2556 = vmatpush2.msra.mxu0 0.0
      %2557 = vmatprep.subr.mxu0 0.0
      %2558 = vmatpush2.msra.mxu0 0.0
      %2559 = vmatprep.subr.mxu0 0.0
      %2560 = vmatpush2.msra.mxu0 0.0
      %2561 = vmatprep.subr.mxu0 0.0
      %2562 = vmatpush2.msra.mxu0 0.0
      %2563 = vmatprep.subr.mxu0 0.0
      %2564 = vmatpush2.msra.mxu0 0.0
      %2565 = vmatprep.subr.mxu0 0.0
      %2566 = vmatpush2.msra.mxu0 0.0
      %2567 = vmatprep.subr.mxu0 0.0
      %2568 = vmatpush2.msra.mxu0 0.0
      %2569 = vmatprep.subr.mxu0 0.0
      %2570 = vmatpush2.msra.mxu0 0.0
      %2571 = vmatprep.subr.mxu0 0.0
      %2572 = vmatpush2.msra.mxu0 0.0
      %2573 = vmatprep.subr.mxu0 0.0
      %2574 = vmatpush2.msra.mxu0 0.0
      %2575 = vmatprep.subr.mxu0 0.0
      %2576 = vmatpush2.msra.mxu0 0.0
      %2577 = vmatprep.subr.mxu0 0.0
      %2578 = vmatpush2.msra.mxu0 0.0
      %2579 = vmatprep.subr.mxu0 0.0
      %2580 = vmatpush2.msra.mxu0 0.0
      %2581 = vmatprep.subr.mxu0 0.0
      %2582 = vmatpush2.msra.mxu0 0.0
      %2583 = vmatprep.mubr.f32.mxu0 0.0
      %2584 = vmatmul.mubr.f32.gmra.mxu0 %v2430
      %v2585 = vpop.f32.mrf.mxu0
      %v2586 = vadd.f32 0.0, %v2585
      %v2587 = vpop.f32.mrf.mxu0
      %2588 = vmatprep.mubr.f32.mxu0 0.0
      %2589 = vmatmul.mubr.f32.gmra.mxu0 %v2433
      %v2590 = vpop.f32.mrf.mxu0
      %v2591 = vadd.f32 0.0, %v2590
      %v2592 = vpop.f32.mrf.mxu0
      %2593 = vmatprep.mubr.f32.mxu0 0.0
      %2594 = vmatmul.mubr.f32.gmra.mxu0 %v2436
      %v2595 = vpop.f32.mrf.mxu0
      %v2596 = vadd.f32 0.0, %v2595
      %v2597 = vpop.f32.mrf.mxu0
      %2598 = vmatprep.mubr.f32.mxu0 0.0
      %2599 = vmatmul.mubr.f32.gmra.mxu0 %v2439
      %v2600 = vpop.f32.mrf.mxu0
      %v2601 = vadd.f32 0.0, %v2600
      %v2602 = vpop.f32.mrf.mxu0
      %2603 = vmatprep.mubr.f32.mxu0 0.0
      %2604 = vmatmul.mubr.f32.gmra.mxu0 %v2442
      %v2605 = vpop.f32.mrf.mxu0
      %v2606 = vadd.f32 0.0, %v2605
      %v2607 = vpop.f32.mrf.mxu0
      %2608 = vmatprep.mubr.f32.mxu0 0.0
      %2609 = vmatmul.mubr.f32.gmra.mxu0 %v2445
      %v2610 = vpop.f32.mrf.mxu0
      %v2611 = vadd.f32 0.0, %v2610
      %v2612 = vpop.f32.mrf.mxu0
      %2613 = vmatprep.mubr.f32.mxu0 0.0
      %2614 = vmatmul.mubr.f32.gmra.mxu0 %v2448
      %v2615 = vpop.f32.mrf.mxu0
      %v2616 = vadd.f32 0.0, %v2615
      %v2617 = vpop.f32.mrf.mxu0
      %2618 = vmatprep.mubr.f32.mxu0 0.0
      %2619 = vmatmul.mubr.f32.gmra.mxu0 %v2451
      %v2620 = vpop.f32.mrf.mxu0
      %v2621 = vadd.f32 0.0, %v2620
      %v2622 = vpop.f32.mrf.mxu0
      %2623 = vmatprep.mubr.f32.mxu0 0.0
      %2624 = vmatmul.mubr.f32.gmra.mxu0 %v2454
      %v2625 = vpop.f32.mrf.mxu0
      %v2626 = vadd.f32 0.0, %v2625
      %v2627 = vpop.f32.mrf.mxu0
      %2628 = vmatprep.mubr.f32.mxu0 0.0
      %2629 = vmatmul.mubr.f32.gmra.mxu0 %v2457
      %v2630 = vpop.f32.mrf.mxu0
      %v2631 = vadd.f32 0.0, %v2630
      %v2632 = vpop.f32.mrf.mxu0
      %2633 = vmatprep.mubr.f32.mxu0 0.0
      %2634 = vmatmul.mubr.f32.gmra.mxu0 %v2460
      %v2635 = vpop.f32.mrf.mxu0
      %v2636 = vadd.f32 0.0, %v2635
      %v2637 = vpop.f32.mrf.mxu0
      %2638 = vmatprep.mubr.f32.mxu0 0.0
      %2639 = vmatmul.mubr.f32.gmra.mxu0 %v2463
      %v2640 = vpop.f32.mrf.mxu0
      %v2641 = vadd.f32 0.0, %v2640
      %v2642 = vpop.f32.mrf.mxu0
      %2643 = vmatprep.mubr.f32.mxu0 0.0
      %2644 = vmatmul.mubr.f32.gmra.mxu0 %v2466
      %v2645 = vpop.f32.mrf.mxu0
      %v2646 = vadd.f32 0.0, %v2645
      %v2647 = vpop.f32.mrf.mxu0
      %2648 = vmatprep.mubr.f32.mxu0 0.0
      %2649 = vmatmul.mubr.f32.gmra.mxu0 %v2469
      %v2650 = vpop.f32.mrf.mxu0
      %v2651 = vadd.f32 0.0, %v2650
      %v2652 = vpop.f32.mrf.mxu0
      %2653 = vmatprep.mubr.f32.mxu0 0.0
      %2654 = vmatmul.mubr.f32.gmra.mxu0 %v2472
      %v2655 = vpop.f32.mrf.mxu0
      %v2656 = vadd.f32 0.0, %v2655
      %v2657 = vpop.f32.mrf.mxu0
      %2658 = vmatprep.mubr.f32.mxu0 0.0
      %2659 = vmatmul.mubr.f32.gmra.mxu0 %v2475
      %v2660 = vpop.f32.mrf.mxu0
      %v2661 = vadd.f32 0.0, %v2660
      %v2662 = vpop.f32.mrf.mxu0
      %2663 = vmatprep.mubr.f32.mxu0 0.0
      %2664 = vmatmul.mubr.f32.gmra.mxu0 %v2478
      %v2665 = vpop.f32.mrf.mxu0
      %v2666 = vadd.f32 0.0, %v2665
      %v2667 = vpop.f32.mrf.mxu0
      %2668 = vmatprep.mubr.f32.mxu0 0.0
      %2669 = vmatmul.mubr.f32.gmra.mxu0 %v2481
      %v2670 = vpop.f32.mrf.mxu0
      %v2671 = vadd.f32 0.0, %v2670
      %v2672 = vpop.f32.mrf.mxu0
      %2673 = vmatprep.mubr.f32.mxu0 0.0
      %2674 = vmatmul.mubr.f32.gmra.mxu0 %v2484
      %v2675 = vpop.f32.mrf.mxu0
      %v2676 = vadd.f32 0.0, %v2675
      %v2677 = vpop.f32.mrf.mxu0
      %2678 = vmatprep.mubr.f32.mxu0 0.0
      %2679 = vmatmul.mubr.f32.gmra.mxu0 %v2487
      %v2680 = vpop.f32.mrf.mxu0
      %v2681 = vadd.f32 0.0, %v2680
      %v2682 = vpop.f32.mrf.mxu0
      %2683 = vmatprep.mubr.f32.mxu0 0.0
      %2684 = vmatmul.mubr.f32.gmra.mxu0 %v2490
      %v2685 = vpop.f32.mrf.mxu0
      %v2686 = vadd.f32 0.0, %v2685
      %v2687 = vpop.f32.mrf.mxu0
      %2688 = vmatprep.mubr.f32.mxu0 0.0
      %2689 = vmatmul.mubr.f32.gmra.mxu0 %v2493
      %v2690 = vpop.f32.mrf.mxu0
      %v2691 = vadd.f32 0.0, %v2690
      %v2692 = vpop.f32.mrf.mxu0
      %2693 = vmatprep.mubr.f32.mxu0 0.0
      %2694 = vmatmul.mubr.f32.gmra.mxu0 %v2496
      %v2695 = vpop.f32.mrf.mxu0
      %v2696 = vadd.f32 0.0, %v2695
      %v2697 = vpop.f32.mrf.mxu0
      %2698 = vmatprep.mubr.f32.mxu0 0.0
      %2699 = vmatmul.mubr.f32.gmra.mxu0 %v2499
      %v2700 = vpop.f32.mrf.mxu0
      %v2701 = vadd.f32 0.0, %v2700
      %v2702 = vpop.f32.mrf.mxu0
      %2703 = vmatprep.mubr.f32.mxu0 0.0
      %2704 = vmatmul.mubr.f32.gmra.mxu0 %v2502
      %v2705 = vpop.f32.mrf.mxu0
      %v2706 = vadd.f32 0.0, %v2705
      %v2707 = vpop.f32.mrf.mxu0
      %2708 = vmatprep.mubr.f32.mxu0 0.0
      %2709 = vmatmul.mubr.f32.gmra.mxu0 %v2505
      %v2710 = vpop.f32.mrf.mxu0
      %v2711 = vadd.f32 0.0, %v2710
      %v2712 = vpop.f32.mrf.mxu0
      %2713 = vmatprep.mubr.f32.mxu0 0.0
      %2714 = vmatmul.mubr.f32.gmra.mxu0 %v2508
      %v2715 = vpop.f32.mrf.mxu0
      %v2716 = vadd.f32 0.0, %v2715
      %v2717 = vpop.f32.mrf.mxu0
      %2718 = vmatprep.mubr.f32.mxu0 0.0
      %2719 = vmatmul.mubr.f32.gmra.mxu0 %v2511
      %v2720 = vpop.f32.mrf.mxu0
      %v2721 = vadd.f32 0.0, %v2720
      %v2722 = vpop.f32.mrf.mxu0
      %2723 = vmatprep.mubr.f32.mxu0 0.0
      %2724 = vmatmul.mubr.f32.gmra.mxu0 %v2514
      %v2725 = vpop.f32.mrf.mxu0
      %v2726 = vadd.f32 0.0, %v2725
      %v2727 = vpop.f32.mrf.mxu0
      %2728 = vmatprep.mubr.f32.mxu0 0.0
      %2729 = vmatmul.mubr.f32.gmra.mxu0 %v2517
      %v2730 = vpop.f32.mrf.mxu0
      %v2731 = vadd.f32 0.0, %v2730
      %v2732 = vpop.f32.mrf.mxu0
      %2733 = vdwg.mxu0
      %v2734 = vadd.f32 %v2364, %v2586
      %v2735 = vadd.f32 %v2365, %v2591
      %v2736 = vadd.f32 %v2366, %v2596
      %v2737 = vadd.f32 %v2367, %v2601
      %v2738 = vadd.f32 %v2368, %v2606
      %v2739 = vadd.f32 %v2369, %v2611
      %v2740 = vadd.f32 %v2370, %v2616
      %v2741 = vadd.f32 %v2371, %v2621
      %v2742 = vadd.f32 %v2372, %v2626
      %v2743 = vadd.f32 %v2373, %v2631
      %v2744 = vadd.f32 %v2374, %v2636
      %v2745 = vadd.f32 %v2375, %v2641
      %v2746 = vadd.f32 %v2376, %v2646
      %v2747 = vadd.f32 %v2377, %v2651
      %v2748 = vadd.f32 %v2378, %v2656
      %v2749 = vadd.f32 %v2379, %v2661
      %v2750 = vadd.f32 %v2380, %v2666
      %v2751 = vadd.f32 %v2381, %v2671
      %v2752 = vadd.f32 %v2382, %v2676
      %v2753 = vadd.f32 %v2383, %v2681
      %v2754 = vadd.f32 %v2384, %v2686
      %v2755 = vadd.f32 %v2385, %v2691
      %v2756 = vadd.f32 %v2386, %v2696
      %v2757 = vadd.f32 %v2387, %v2701
      %v2758 = vadd.f32 %v2388, %v2706
      %v2759 = vadd.f32 %v2389, %v2711
      %v2760 = vadd.f32 %v2390, %v2716
      %v2761 = vadd.f32 %v2391, %v2721
      %v2762 = vadd.f32 %v2392, %v2726
      %v2763 = vadd.f32 %v2393, %v2731
      %v2764 = vld [vmem:[%s2396 + $0x1] sm:$0xff]
      %v2765 = vld [vmem:[%s2396 + $0x9] sm:$0xff]
      %v2766 = vld [vmem:[%s2396 + $0x11] sm:$0xff]
      %v2767 = vld [vmem:[%s2396 + $0x21] sm:$0xff]
      %v2768 = vld [vmem:[%s2396 + $0x29] sm:$0xff]
      %v2769 = vld [vmem:[%s2396 + $0x31] sm:$0xff]
      %v2770 = vld [vmem:[%s2396 + $0x41] sm:$0xff]
      %v2771 = vld [vmem:[%s2396 + $0x49] sm:$0xff]
      %v2772 = vld [vmem:[%s2396 + $0x51] sm:$0xff]
      %v2773 = vld [vmem:[%s2396 + $0x61] sm:$0xff]
      %v2774 = vld [vmem:[%s2396 + $0x69] sm:$0xff]
      %v2775 = vld [vmem:[%s2396 + $0x71] sm:$0xff]
      %v2776 = vld [vmem:[%s2396 + $0x81] sm:$0xff]
      %v2777 = vld [vmem:[%s2396 + $0x89] sm:$0xff]
      %v2778 = vld [vmem:[%s2396 + $0x91] sm:$0xff]
      %v2779 = vld [vmem:[%s2396 + $0xa1] sm:$0xff]
      %v2780 = vld [vmem:[%s2396 + $0xa9] sm:$0xff]
      %v2781 = vld [vmem:[%s2396 + $0xb1] sm:$0xff]
      %v2782 = vld [vmem:[%s2396 + $0xc1] sm:$0xff]
      %v2783 = vld [vmem:[%s2396 + $0xc9] sm:$0xff]
      %v2784 = vld [vmem:[%s2396 + $0xd1] sm:$0xff]
      %v2785 = vld [vmem:[%s2396 + $0xe1] sm:$0xff]
      %v2786 = vld [vmem:[%s2396 + $0xe9] sm:$0xff]
      %v2787 = vld [vmem:[%s2396 + $0xf1] sm:$0xff]
      %v2788 = vld [vmem:[%s2396 + $0x101] sm:$0xff]
      %v2789 = vld [vmem:[%s2396 + $0x109] sm:$0xff]
      %v2790 = vld [vmem:[%s2396 + $0x111] sm:$0xff]
      %v2791 = vld [vmem:[%s2396 + $0x121] sm:$0xff]
      %v2792 = vld [vmem:[%s2396 + $0x129] sm:$0xff]
      %v2793 = vld [vmem:[%s2396 + $0x131] sm:$0xff]
      %v2794 = vld [vmem:[%s2427 + $0x8] sm:$0xff]
      %v2796 = vsel %vm315, %v2764, 0
      %v2799 = vsel %vm315, %v2765, 0
      %v2802 = vsel %vm315, %v2766, 0
      %v2805 = vsel %vm315, %v2767, 0
      %v2808 = vsel %vm315, %v2768, 0
      %v2811 = vsel %vm315, %v2769, 0
      %v2814 = vsel %vm315, %v2770, 0
      %v2817 = vsel %vm315, %v2771, 0
      %v2820 = vsel %vm315, %v2772, 0
      %v2823 = vsel %vm315, %v2773, 0
      %v2826 = vsel %vm315, %v2774, 0
      %v2829 = vsel %vm315, %v2775, 0
      %v2832 = vsel %vm315, %v2776, 0
      %v2835 = vsel %vm315, %v2777, 0
      %v2838 = vsel %vm315, %v2778, 0
      %v2841 = vsel %vm315, %v2779, 0
      %v2844 = vsel %vm315, %v2780, 0
      %v2847 = vsel %vm315, %v2781, 0
      %v2850 = vsel %vm315, %v2782, 0
      %v2853 = vsel %vm315, %v2783, 0
      %v2856 = vsel %vm315, %v2784, 0
      %v2859 = vsel %vm315, %v2785, 0
      %v2862 = vsel %vm315, %v2786, 0
      %v2865 = vsel %vm315, %v2787, 0
      %v2868 = vsel %vm315, %v2788, 0
      %v2871 = vsel %vm315, %v2789, 0
      %v2874 = vsel %vm315, %v2790, 0
      %v2877 = vsel %vm315, %v2791, 0
      %v2880 = vsel %vm315, %v2792, 0
      %v2883 = vsel %vm315, %v2793, 0
      %2885 = vmatprep.subr.mxu0 0.0
      %2886 = vmatpush1.msra.mxu0 0.0
      %2887 = vmatprep.subr.mxu0 0.0
      %2888 = vmatpush1.msra.mxu0 0.0
      %2889 = vmatprep.subr.mxu0 0.0
      %2890 = vmatpush1.msra.mxu0 0.0
      %2891 = vmatprep.subr.mxu0 0.0
      %2892 = vmatpush1.msra.mxu0 0.0
      %2893 = vmatprep.subr.mxu0 0.0
      %2894 = vmatpush1.msra.mxu0 0.0
      %2895 = vmatprep.subr.mxu0 0.0
      %2896 = vmatpush1.msra.mxu0 0.0
      %2897 = vmatprep.subr.mxu0 0.0
      %2898 = vmatpush1.msra.mxu0 0.0
      %2899 = vmatprep.subr.mxu0 0.0
      %2900 = vmatpush1.msra.mxu0 0.0
      %2901 = vmatprep.subr.mxu0 0.0
      %2902 = vmatpush1.msra.mxu0 0.0
      %2903 = vmatprep.subr.mxu0 0.0
      %2904 = vmatpush1.msra.mxu0 0.0
      %2905 = vmatprep.subr.mxu0 0.0
      %2906 = vmatpush1.msra.mxu0 0.0
      %2907 = vmatprep.subr.mxu0 0.0
      %2908 = vmatpush1.msra.mxu0 0.0
      %2909 = vmatprep.subr.mxu0 0.0
      %2910 = vmatpush1.msra.mxu0 0.0
      %2911 = vmatprep.subr.mxu0 0.0
      %2912 = vmatpush1.msra.mxu0 0.0
      %2913 = vmatprep.subr.mxu0 0.0
      %2914 = vmatpush1.msra.mxu0 0.0
      %2915 = vmatprep.subr.mxu0 0.0
      %2916 = vmatpush1.msra.mxu0 %v2794
      %2917 = vmatprep.subr.mxu0 0.0
      %2918 = vmatpush2.msra.mxu0 0.0
      %2919 = vmatprep.subr.mxu0 0.0
      %2920 = vmatpush2.msra.mxu0 0.0
      %2921 = vmatprep.subr.mxu0 0.0
      %2922 = vmatpush2.msra.mxu0 0.0
      %2923 = vmatprep.subr.mxu0 0.0
      %2924 = vmatpush2.msra.mxu0 0.0
      %2925 = vmatprep.subr.mxu0 0.0
      %2926 = vmatpush2.msra.mxu0 0.0
      %2927 = vmatprep.subr.mxu0 0.0
      %2928 = vmatpush2.msra.mxu0 0.0
      %2929 = vmatprep.subr.mxu0 0.0
      %2930 = vmatpush2.msra.mxu0 0.0
      %2931 = vmatprep.subr.mxu0 0.0
      %2932 = vmatpush2.msra.mxu0 0.0
      %2933 = vmatprep.subr.mxu0 0.0
      %2934 = vmatpush2.msra.mxu0 0.0
      %2935 = vmatprep.subr.mxu0 0.0
      %2936 = vmatpush2.msra.mxu0 0.0
      %2937 = vmatprep.subr.mxu0 0.0
      %2938 = vmatpush2.msra.mxu0 0.0
      %2939 = vmatprep.subr.mxu0 0.0
      %2940 = vmatpush2.msra.mxu0 0.0
      %2941 = vmatprep.subr.mxu0 0.0
      %2942 = vmatpush2.msra.mxu0 0.0
      %2943 = vmatprep.subr.mxu0 0.0
      %2944 = vmatpush2.msra.mxu0 0.0
      %2945 = vmatprep.subr.mxu0 0.0
      %2946 = vmatpush2.msra.mxu0 0.0
      %2947 = vmatprep.subr.mxu0 0.0
      %2948 = vmatpush2.msra.mxu0 0.0
      %2949 = vmatprep.mubr.f32.mxu0 0.0
      %2950 = vmatmul.mubr.f32.gmra.mxu0 %v2796
      %v2951 = vpop.f32.mrf.mxu0
      %v2952 = vadd.f32 0.0, %v2951
      %v2953 = vpop.f32.mrf.mxu0
      %2954 = vmatprep.mubr.f32.mxu0 0.0
      %2955 = vmatmul.mubr.f32.gmra.mxu0 %v2799
      %v2956 = vpop.f32.mrf.mxu0
      %v2957 = vadd.f32 0.0, %v2956
      %v2958 = vpop.f32.mrf.mxu0
      %2959 = vmatprep.mubr.f32.mxu0 0.0
      %2960 = vmatmul.mubr.f32.gmra.mxu0 %v2802
      %v2961 = vpop.f32.mrf.mxu0
      %v2962 = vadd.f32 0.0, %v2961
      %v2963 = vpop.f32.mrf.mxu0
      %2964 = vmatprep.mubr.f32.mxu0 0.0
      %2965 = vmatmul.mubr.f32.gmra.mxu0 %v2805
      %v2966 = vpop.f32.mrf.mxu0
      %v2967 = vadd.f32 0.0, %v2966
      %v2968 = vpop.f32.mrf.mxu0
      %2969 = vmatprep.mubr.f32.mxu0 0.0
      %2970 = vmatmul.mubr.f32.gmra.mxu0 %v2808
      %v2971 = vpop.f32.mrf.mxu0
      %v2972 = vadd.f32 0.0, %v2971
      %v2973 = vpop.f32.mrf.mxu0
      %2974 = vmatprep.mubr.f32.mxu0 0.0
      %2975 = vmatmul.mubr.f32.gmra.mxu0 %v2811
      %v2976 = vpop.f32.mrf.mxu0
      %v2977 = vadd.f32 0.0, %v2976
      %v2978 = vpop.f32.mrf.mxu0
      %2979 = vmatprep.mubr.f32.mxu0 0.0
      %2980 = vmatmul.mubr.f32.gmra.mxu0 %v2814
      %v2981 = vpop.f32.mrf.mxu0
      %v2982 = vadd.f32 0.0, %v2981
      %v2983 = vpop.f32.mrf.mxu0
      %2984 = vmatprep.mubr.f32.mxu0 0.0
      %2985 = vmatmul.mubr.f32.gmra.mxu0 %v2817
      %v2986 = vpop.f32.mrf.mxu0
      %v2987 = vadd.f32 0.0, %v2986
      %v2988 = vpop.f32.mrf.mxu0
      %2989 = vmatprep.mubr.f32.mxu0 0.0
      %2990 = vmatmul.mubr.f32.gmra.mxu0 %v2820
      %v2991 = vpop.f32.mrf.mxu0
      %v2992 = vadd.f32 0.0, %v2991
      %v2993 = vpop.f32.mrf.mxu0
      %2994 = vmatprep.mubr.f32.mxu0 0.0
      %2995 = vmatmul.mubr.f32.gmra.mxu0 %v2823
      %v2996 = vpop.f32.mrf.mxu0
      %v2997 = vadd.f32 0.0, %v2996
      %v2998 = vpop.f32.mrf.mxu0
      %2999 = vmatprep.mubr.f32.mxu0 0.0
      %3000 = vmatmul.mubr.f32.gmra.mxu0 %v2826
      %v3001 = vpop.f32.mrf.mxu0
      %v3002 = vadd.f32 0.0, %v3001
      %v3003 = vpop.f32.mrf.mxu0
      %3004 = vmatprep.mubr.f32.mxu0 0.0
      %3005 = vmatmul.mubr.f32.gmra.mxu0 %v2829
      %v3006 = vpop.f32.mrf.mxu0
      %v3007 = vadd.f32 0.0, %v3006
      %v3008 = vpop.f32.mrf.mxu0
      %3009 = vmatprep.mubr.f32.mxu0 0.0
      %3010 = vmatmul.mubr.f32.gmra.mxu0 %v2832
      %v3011 = vpop.f32.mrf.mxu0
      %v3012 = vadd.f32 0.0, %v3011
      %v3013 = vpop.f32.mrf.mxu0
      %3014 = vmatprep.mubr.f32.mxu0 0.0
      %3015 = vmatmul.mubr.f32.gmra.mxu0 %v2835
      %v3016 = vpop.f32.mrf.mxu0
      %v3017 = vadd.f32 0.0, %v3016
      %v3018 = vpop.f32.mrf.mxu0
      %3019 = vmatprep.mubr.f32.mxu0 0.0
      %3020 = vmatmul.mubr.f32.gmra.mxu0 %v2838
      %v3021 = vpop.f32.mrf.mxu0
      %v3022 = vadd.f32 0.0, %v3021
      %v3023 = vpop.f32.mrf.mxu0
      %3024 = vmatprep.mubr.f32.mxu0 0.0
      %3025 = vmatmul.mubr.f32.gmra.mxu0 %v2841
      %v3026 = vpop.f32.mrf.mxu0
      %v3027 = vadd.f32 0.0, %v3026
      %v3028 = vpop.f32.mrf.mxu0
      %3029 = vmatprep.mubr.f32.mxu0 0.0
      %3030 = vmatmul.mubr.f32.gmra.mxu0 %v2844
      %v3031 = vpop.f32.mrf.mxu0
      %v3032 = vadd.f32 0.0, %v3031
      %v3033 = vpop.f32.mrf.mxu0
      %3034 = vmatprep.mubr.f32.mxu0 0.0
      %3035 = vmatmul.mubr.f32.gmra.mxu0 %v2847
      %v3036 = vpop.f32.mrf.mxu0
      %v3037 = vadd.f32 0.0, %v3036
      %v3038 = vpop.f32.mrf.mxu0
      %3039 = vmatprep.mubr.f32.mxu0 0.0
      %3040 = vmatmul.mubr.f32.gmra.mxu0 %v2850
      %v3041 = vpop.f32.mrf.mxu0
      %v3042 = vadd.f32 0.0, %v3041
      %v3043 = vpop.f32.mrf.mxu0
      %3044 = vmatprep.mubr.f32.mxu0 0.0
      %3045 = vmatmul.mubr.f32.gmra.mxu0 %v2853
      %v3046 = vpop.f32.mrf.mxu0
      %v3047 = vadd.f32 0.0, %v3046
      %v3048 = vpop.f32.mrf.mxu0
      %3049 = vmatprep.mubr.f32.mxu0 0.0
      %3050 = vmatmul.mubr.f32.gmra.mxu0 %v2856
      %v3051 = vpop.f32.mrf.mxu0
      %v3052 = vadd.f32 0.0, %v3051
      %v3053 = vpop.f32.mrf.mxu0
      %3054 = vmatprep.mubr.f32.mxu0 0.0
      %3055 = vmatmul.mubr.f32.gmra.mxu0 %v2859
      %v3056 = vpop.f32.mrf.mxu0
      %v3057 = vadd.f32 0.0, %v3056
      %v3058 = vpop.f32.mrf.mxu0
      %3059 = vmatprep.mubr.f32.mxu0 0.0
      %3060 = vmatmul.mubr.f32.gmra.mxu0 %v2862
      %v3061 = vpop.f32.mrf.mxu0
      %v3062 = vadd.f32 0.0, %v3061
      %v3063 = vpop.f32.mrf.mxu0
      %3064 = vmatprep.mubr.f32.mxu0 0.0
      %3065 = vmatmul.mubr.f32.gmra.mxu0 %v2865
      %v3066 = vpop.f32.mrf.mxu0
      %v3067 = vadd.f32 0.0, %v3066
      %v3068 = vpop.f32.mrf.mxu0
      %3069 = vmatprep.mubr.f32.mxu0 0.0
      %3070 = vmatmul.mubr.f32.gmra.mxu0 %v2868
      %v3071 = vpop.f32.mrf.mxu0
      %v3072 = vadd.f32 0.0, %v3071
      %v3073 = vpop.f32.mrf.mxu0
      %3074 = vmatprep.mubr.f32.mxu0 0.0
      %3075 = vmatmul.mubr.f32.gmra.mxu0 %v2871
      %v3076 = vpop.f32.mrf.mxu0
      %v3077 = vadd.f32 0.0, %v3076
      %v3078 = vpop.f32.mrf.mxu0
      %3079 = vmatprep.mubr.f32.mxu0 0.0
      %3080 = vmatmul.mubr.f32.gmra.mxu0 %v2874
      %v3081 = vpop.f32.mrf.mxu0
      %v3082 = vadd.f32 0.0, %v3081
      %v3083 = vpop.f32.mrf.mxu0
      %3084 = vmatprep.mubr.f32.mxu0 0.0
      %3085 = vmatmul.mubr.f32.gmra.mxu0 %v2877
      %v3086 = vpop.f32.mrf.mxu0
      %v3087 = vadd.f32 0.0, %v3086
      %v3088 = vpop.f32.mrf.mxu0
      %3089 = vmatprep.mubr.f32.mxu0 0.0
      %3090 = vmatmul.mubr.f32.gmra.mxu0 %v2880
      %v3091 = vpop.f32.mrf.mxu0
      %v3092 = vadd.f32 0.0, %v3091
      %v3093 = vpop.f32.mrf.mxu0
      %3094 = vmatprep.mubr.f32.mxu0 0.0
      %3095 = vmatmul.mubr.f32.gmra.mxu0 %v2883
      %v3096 = vpop.f32.mrf.mxu0
      %v3097 = vadd.f32 0.0, %v3096
      %v3098 = vpop.f32.mrf.mxu0
      %3099 = vdwg.mxu0
      %v3100 = vadd.f32 %v2734, %v2952
      %v3101 = vadd.f32 %v2735, %v2957
      %v3102 = vadd.f32 %v2736, %v2962
      %v3103 = vadd.f32 %v2737, %v2967
      %v3104 = vadd.f32 %v2738, %v2972
      %v3105 = vadd.f32 %v2739, %v2977
      %v3106 = vadd.f32 %v2740, %v2982
      %v3107 = vadd.f32 %v2741, %v2987
      %v3108 = vadd.f32 %v2742, %v2992
      %v3109 = vadd.f32 %v2743, %v2997
      %v3110 = vadd.f32 %v2744, %v3002
      %v3111 = vadd.f32 %v2745, %v3007
      %v3112 = vadd.f32 %v2746, %v3012
      %v3113 = vadd.f32 %v2747, %v3017
      %v3114 = vadd.f32 %v2748, %v3022
      %v3115 = vadd.f32 %v2749, %v3027
      %v3116 = vadd.f32 %v2750, %v3032
      %v3117 = vadd.f32 %v2751, %v3037
      %v3118 = vadd.f32 %v2752, %v3042
      %v3119 = vadd.f32 %v2753, %v3047
      %v3120 = vadd.f32 %v2754, %v3052
      %v3121 = vadd.f32 %v2755, %v3057
      %v3122 = vadd.f32 %v2756, %v3062
      %v3123 = vadd.f32 %v2757, %v3067
      %v3124 = vadd.f32 %v2758, %v3072
      %v3125 = vadd.f32 %v2759, %v3077
      %v3126 = vadd.f32 %v2760, %v3082
      %v3127 = vadd.f32 %v2761, %v3087
      %v3128 = vadd.f32 %v2762, %v3092
      %v3129 = vadd.f32 %v2763, %v3097
      %v3130 = vld [vmem:[%s2396 + $0x2] sm:$0xff]
      %v3131 = vld [vmem:[%s2396 + $0xa] sm:$0xff]
      %v3132 = vld [vmem:[%s2396 + $0x12] sm:$0xff]
      %v3133 = vld [vmem:[%s2396 + $0x22] sm:$0xff]
      %v3134 = vld [vmem:[%s2396 + $0x2a] sm:$0xff]
      %v3135 = vld [vmem:[%s2396 + $0x32] sm:$0xff]
      %v3136 = vld [vmem:[%s2396 + $0x42] sm:$0xff]
      %v3137 = vld [vmem:[%s2396 + $0x4a] sm:$0xff]
      %v3138 = vld [vmem:[%s2396 + $0x52] sm:$0xff]
      %v3139 = vld [vmem:[%s2396 + $0x62] sm:$0xff]
      %v3140 = vld [vmem:[%s2396 + $0x6a] sm:$0xff]
      %v3141 = vld [vmem:[%s2396 + $0x72] sm:$0xff]
      %v3142 = vld [vmem:[%s2396 + $0x82] sm:$0xff]
      %v3143 = vld [vmem:[%s2396 + $0x8a] sm:$0xff]
      %v3144 = vld [vmem:[%s2396 + $0x92] sm:$0xff]
      %v3145 = vld [vmem:[%s2396 + $0xa2] sm:$0xff]
      %v3146 = vld [vmem:[%s2396 + $0xaa] sm:$0xff]
      %v3147 = vld [vmem:[%s2396 + $0xb2] sm:$0xff]
      %v3148 = vld [vmem:[%s2396 + $0xc2] sm:$0xff]
      %v3149 = vld [vmem:[%s2396 + $0xca] sm:$0xff]
      %v3150 = vld [vmem:[%s2396 + $0xd2] sm:$0xff]
      %v3151 = vld [vmem:[%s2396 + $0xe2] sm:$0xff]
      %v3152 = vld [vmem:[%s2396 + $0xea] sm:$0xff]
      %v3153 = vld [vmem:[%s2396 + $0xf2] sm:$0xff]
      %v3154 = vld [vmem:[%s2396 + $0x102] sm:$0xff]
      %v3155 = vld [vmem:[%s2396 + $0x10a] sm:$0xff]
      %v3156 = vld [vmem:[%s2396 + $0x112] sm:$0xff]
      %v3157 = vld [vmem:[%s2396 + $0x122] sm:$0xff]
      %v3158 = vld [vmem:[%s2396 + $0x12a] sm:$0xff]
      %v3159 = vld [vmem:[%s2396 + $0x132] sm:$0xff]
      %v3160 = vld [vmem:[%s2427 + $0x10] sm:$0xff]
      %v3162 = vsel %vm315, %v3130, 0
      %v3165 = vsel %vm315, %v3131, 0
      %v3168 = vsel %vm315, %v3132, 0
      %v3171 = vsel %vm315, %v3133, 0
      %v3174 = vsel %vm315, %v3134, 0
      %v3177 = vsel %vm315, %v3135, 0
      %v3180 = vsel %vm315, %v3136, 0
      %v3183 = vsel %vm315, %v3137, 0
      %v3186 = vsel %vm315, %v3138, 0
      %v3189 = vsel %vm315, %v3139, 0
      %v3192 = vsel %vm315, %v3140, 0
      %v3195 = vsel %vm315, %v3141, 0
      %v3198 = vsel %vm315, %v3142, 0
      %v3201 = vsel %vm315, %v3143, 0
      %v3204 = vsel %vm315, %v3144, 0
      %v3207 = vsel %vm315, %v3145, 0
      %v3210 = vsel %vm315, %v3146, 0
      %v3213 = vsel %vm315, %v3147, 0
      %v3216 = vsel %vm315, %v3148, 0
      %v3219 = vsel %vm315, %v3149, 0
      %v3222 = vsel %vm315, %v3150, 0
      %v3225 = vsel %vm315, %v3151, 0
      %v3228 = vsel %vm315, %v3152, 0
      %v3231 = vsel %vm315, %v3153, 0
      %v3234 = vsel %vm315, %v3154, 0
      %v3237 = vsel %vm315, %v3155, 0
      %v3240 = vsel %vm315, %v3156, 0
      %v3243 = vsel %vm315, %v3157, 0
      %v3246 = vsel %vm315, %v3158, 0
      %v3249 = vsel %vm315, %v3159, 0
      %3251 = vmatprep.subr.mxu0 0.0
      %3252 = vmatpush1.msra.mxu0 0.0
      %3253 = vmatprep.subr.mxu0 0.0
      %3254 = vmatpush1.msra.mxu0 0.0
      %3255 = vmatprep.subr.mxu0 0.0
      %3256 = vmatpush1.msra.mxu0 0.0
      %3257 = vmatprep.subr.mxu0 0.0
      %3258 = vmatpush1.msra.mxu0 0.0
      %3259 = vmatprep.subr.mxu0 0.0
      %3260 = vmatpush1.msra.mxu0 0.0
      %3261 = vmatprep.subr.mxu0 0.0
      %3262 = vmatpush1.msra.mxu0 0.0
      %3263 = vmatprep.subr.mxu0 0.0
      %3264 = vmatpush1.msra.mxu0 0.0
      %3265 = vmatprep.subr.mxu0 0.0
      %3266 = vmatpush1.msra.mxu0 0.0
      %3267 = vmatprep.subr.mxu0 0.0
      %3268 = vmatpush1.msra.mxu0 0.0
      %3269 = vmatprep.subr.mxu0 0.0
      %3270 = vmatpush1.msra.mxu0 0.0
      %3271 = vmatprep.subr.mxu0 0.0
      %3272 = vmatpush1.msra.mxu0 0.0
      %3273 = vmatprep.subr.mxu0 0.0
      %3274 = vmatpush1.msra.mxu0 0.0
      %3275 = vmatprep.subr.mxu0 0.0
      %3276 = vmatpush1.msra.mxu0 0.0
      %3277 = vmatprep.subr.mxu0 0.0
      %3278 = vmatpush1.msra.mxu0 0.0
      %3279 = vmatprep.subr.mxu0 0.0
      %3280 = vmatpush1.msra.mxu0 0.0
      %3281 = vmatprep.subr.mxu0 0.0
      %3282 = vmatpush1.msra.mxu0 %v3160
      %3283 = vmatprep.subr.mxu0 0.0
      %3284 = vmatpush2.msra.mxu0 0.0
      %3285 = vmatprep.subr.mxu0 0.0
      %3286 = vmatpush2.msra.mxu0 0.0
      %3287 = vmatprep.subr.mxu0 0.0
      %3288 = vmatpush2.msra.mxu0 0.0
      %3289 = vmatprep.subr.mxu0 0.0
      %3290 = vmatpush2.msra.mxu0 0.0
      %3291 = vmatprep.subr.mxu0 0.0
      %3292 = vmatpush2.msra.mxu0 0.0
      %3293 = vmatprep.subr.mxu0 0.0
      %3294 = vmatpush2.msra.mxu0 0.0
      %3295 = vmatprep.subr.mxu0 0.0
      %3296 = vmatpush2.msra.mxu0 0.0
      %3297 = vmatprep.subr.mxu0 0.0
      %3298 = vmatpush2.msra.mxu0 0.0
      %3299 = vmatprep.subr.mxu0 0.0
      %3300 = vmatpush2.msra.mxu0 0.0
      %3301 = vmatprep.subr.mxu0 0.0
      %3302 = vmatpush2.msra.mxu0 0.0
      %3303 = vmatprep.subr.mxu0 0.0
      %3304 = vmatpush2.msra.mxu0 0.0
      %3305 = vmatprep.subr.mxu0 0.0
      %3306 = vmatpush2.msra.mxu0 0.0
      %3307 = vmatprep.subr.mxu0 0.0
      %3308 = vmatpush2.msra.mxu0 0.0
      %3309 = vmatprep.subr.mxu0 0.0
      %3310 = vmatpush2.msra.mxu0 0.0
      %3311 = vmatprep.subr.mxu0 0.0
      %3312 = vmatpush2.msra.mxu0 0.0
      %3313 = vmatprep.subr.mxu0 0.0
      %3314 = vmatpush2.msra.mxu0 0.0
      %3315 = vmatprep.mubr.f32.mxu0 0.0
      %3316 = vmatmul.mubr.f32.gmra.mxu0 %v3162
      %v3317 = vpop.f32.mrf.mxu0
      %v3318 = vadd.f32 0.0, %v3317
      %v3319 = vpop.f32.mrf.mxu0
      %3320 = vmatprep.mubr.f32.mxu0 0.0
      %3321 = vmatmul.mubr.f32.gmra.mxu0 %v3165
      %v3322 = vpop.f32.mrf.mxu0
      %v3323 = vadd.f32 0.0, %v3322
      %v3324 = vpop.f32.mrf.mxu0
      %3325 = vmatprep.mubr.f32.mxu0 0.0
      %3326 = vmatmul.mubr.f32.gmra.mxu0 %v3168
      %v3327 = vpop.f32.mrf.mxu0
      %v3328 = vadd.f32 0.0, %v3327
      %v3329 = vpop.f32.mrf.mxu0
      %3330 = vmatprep.mubr.f32.mxu0 0.0
      %3331 = vmatmul.mubr.f32.gmra.mxu0 %v3171
      %v3332 = vpop.f32.mrf.mxu0
      %v3333 = vadd.f32 0.0, %v3332
      %v3334 = vpop.f32.mrf.mxu0
      %3335 = vmatprep.mubr.f32.mxu0 0.0
      %3336 = vmatmul.mubr.f32.gmra.mxu0 %v3174
      %v3337 = vpop.f32.mrf.mxu0
      %v3338 = vadd.f32 0.0, %v3337
      %v3339 = vpop.f32.mrf.mxu0
      %3340 = vmatprep.mubr.f32.mxu0 0.0
      %3341 = vmatmul.mubr.f32.gmra.mxu0 %v3177
      %v3342 = vpop.f32.mrf.mxu0
      %v3343 = vadd.f32 0.0, %v3342
      %v3344 = vpop.f32.mrf.mxu0
      %3345 = vmatprep.mubr.f32.mxu0 0.0
      %3346 = vmatmul.mubr.f32.gmra.mxu0 %v3180
      %v3347 = vpop.f32.mrf.mxu0
      %v3348 = vadd.f32 0.0, %v3347
      %v3349 = vpop.f32.mrf.mxu0
      %3350 = vmatprep.mubr.f32.mxu0 0.0
      %3351 = vmatmul.mubr.f32.gmra.mxu0 %v3183
      %v3352 = vpop.f32.mrf.mxu0
      %v3353 = vadd.f32 0.0, %v3352
      %v3354 = vpop.f32.mrf.mxu0
      %3355 = vmatprep.mubr.f32.mxu0 0.0
      %3356 = vmatmul.mubr.f32.gmra.mxu0 %v3186
      %v3357 = vpop.f32.mrf.mxu0
      %v3358 = vadd.f32 0.0, %v3357
      %v3359 = vpop.f32.mrf.mxu0
      %3360 = vmatprep.mubr.f32.mxu0 0.0
      %3361 = vmatmul.mubr.f32.gmra.mxu0 %v3189
      %v3362 = vpop.f32.mrf.mxu0
      %v3363 = vadd.f32 0.0, %v3362
      %v3364 = vpop.f32.mrf.mxu0
      %3365 = vmatprep.mubr.f32.mxu0 0.0
      %3366 = vmatmul.mubr.f32.gmra.mxu0 %v3192
      %v3367 = vpop.f32.mrf.mxu0
      %v3368 = vadd.f32 0.0, %v3367
      %v3369 = vpop.f32.mrf.mxu0
      %3370 = vmatprep.mubr.f32.mxu0 0.0
      %3371 = vmatmul.mubr.f32.gmra.mxu0 %v3195
      %v3372 = vpop.f32.mrf.mxu0
      %v3373 = vadd.f32 0.0, %v3372
      %v3374 = vpop.f32.mrf.mxu0
      %3375 = vmatprep.mubr.f32.mxu0 0.0
      %3376 = vmatmul.mubr.f32.gmra.mxu0 %v3198
      %v3377 = vpop.f32.mrf.mxu0
      %v3378 = vadd.f32 0.0, %v3377
      %v3379 = vpop.f32.mrf.mxu0
      %3380 = vmatprep.mubr.f32.mxu0 0.0
      %3381 = vmatmul.mubr.f32.gmra.mxu0 %v3201
      %v3382 = vpop.f32.mrf.mxu0
      %v3383 = vadd.f32 0.0, %v3382
      %v3384 = vpop.f32.mrf.mxu0
      %3385 = vmatprep.mubr.f32.mxu0 0.0
      %3386 = vmatmul.mubr.f32.gmra.mxu0 %v3204
      %v3387 = vpop.f32.mrf.mxu0
      %v3388 = vadd.f32 0.0, %v3387
      %v3389 = vpop.f32.mrf.mxu0
      %3390 = vmatprep.mubr.f32.mxu0 0.0
      %3391 = vmatmul.mubr.f32.gmra.mxu0 %v3207
      %v3392 = vpop.f32.mrf.mxu0
      %v3393 = vadd.f32 0.0, %v3392
      %v3394 = vpop.f32.mrf.mxu0
      %3395 = vmatprep.mubr.f32.mxu0 0.0
      %3396 = vmatmul.mubr.f32.gmra.mxu0 %v3210
      %v3397 = vpop.f32.mrf.mxu0
      %v3398 = vadd.f32 0.0, %v3397
      %v3399 = vpop.f32.mrf.mxu0
      %3400 = vmatprep.mubr.f32.mxu0 0.0
      %3401 = vmatmul.mubr.f32.gmra.mxu0 %v3213
      %v3402 = vpop.f32.mrf.mxu0
      %v3403 = vadd.f32 0.0, %v3402
      %v3404 = vpop.f32.mrf.mxu0
      %3405 = vmatprep.mubr.f32.mxu0 0.0
      %3406 = vmatmul.mubr.f32.gmra.mxu0 %v3216
      %v3407 = vpop.f32.mrf.mxu0
      %v3408 = vadd.f32 0.0, %v3407
      %v3409 = vpop.f32.mrf.mxu0
      %3410 = vmatprep.mubr.f32.mxu0 0.0
      %3411 = vmatmul.mubr.f32.gmra.mxu0 %v3219
      %v3412 = vpop.f32.mrf.mxu0
      %v3413 = vadd.f32 0.0, %v3412
      %v3414 = vpop.f32.mrf.mxu0
      %3415 = vmatprep.mubr.f32.mxu0 0.0
      %3416 = vmatmul.mubr.f32.gmra.mxu0 %v3222
      %v3417 = vpop.f32.mrf.mxu0
      %v3418 = vadd.f32 0.0, %v3417
      %v3419 = vpop.f32.mrf.mxu0
      %3420 = vmatprep.mubr.f32.mxu0 0.0
      %3421 = vmatmul.mubr.f32.gmra.mxu0 %v3225
      %v3422 = vpop.f32.mrf.mxu0
      %v3423 = vadd.f32 0.0, %v3422
      %v3424 = vpop.f32.mrf.mxu0
      %3425 = vmatprep.mubr.f32.mxu0 0.0
      %3426 = vmatmul.mubr.f32.gmra.mxu0 %v3228
      %v3427 = vpop.f32.mrf.mxu0
      %v3428 = vadd.f32 0.0, %v3427
      %v3429 = vpop.f32.mrf.mxu0
      %3430 = vmatprep.mubr.f32.mxu0 0.0
      %3431 = vmatmul.mubr.f32.gmra.mxu0 %v3231
      %v3432 = vpop.f32.mrf.mxu0
      %v3433 = vadd.f32 0.0, %v3432
      %v3434 = vpop.f32.mrf.mxu0
      %3435 = vmatprep.mubr.f32.mxu0 0.0
      %3436 = vmatmul.mubr.f32.gmra.mxu0 %v3234
      %v3437 = vpop.f32.mrf.mxu0
      %v3438 = vadd.f32 0.0, %v3437
      %v3439 = vpop.f32.mrf.mxu0
      %3440 = vmatprep.mubr.f32.mxu0 0.0
      %3441 = vmatmul.mubr.f32.gmra.mxu0 %v3237
      %v3442 = vpop.f32.mrf.mxu0
      %v3443 = vadd.f32 0.0, %v3442
      %v3444 = vpop.f32.mrf.mxu0
      %3445 = vmatprep.mubr.f32.mxu0 0.0
      %3446 = vmatmul.mubr.f32.gmra.mxu0 %v3240
      %v3447 = vpop.f32.mrf.mxu0
      %v3448 = vadd.f32 0.0, %v3447
      %v3449 = vpop.f32.mrf.mxu0
      %3450 = vmatprep.mubr.f32.mxu0 0.0
      %3451 = vmatmul.mubr.f32.gmra.mxu0 %v3243
      %v3452 = vpop.f32.mrf.mxu0
      %v3453 = vadd.f32 0.0, %v3452
      %v3454 = vpop.f32.mrf.mxu0
      %3455 = vmatprep.mubr.f32.mxu0 0.0
      %3456 = vmatmul.mubr.f32.gmra.mxu0 %v3246
      %v3457 = vpop.f32.mrf.mxu0
      %v3458 = vadd.f32 0.0, %v3457
      %v3459 = vpop.f32.mrf.mxu0
      %3460 = vmatprep.mubr.f32.mxu0 0.0
      %3461 = vmatmul.mubr.f32.gmra.mxu0 %v3249
      %v3462 = vpop.f32.mrf.mxu0
      %v3463 = vadd.f32 0.0, %v3462
      %v3464 = vpop.f32.mrf.mxu0
      %3465 = vdwg.mxu0
      %v3466 = vadd.f32 %v3100, %v3318
      %v3467 = vadd.f32 %v3101, %v3323
      %v3468 = vadd.f32 %v3102, %v3328
      %v3469 = vadd.f32 %v3103, %v3333
      %v3470 = vadd.f32 %v3104, %v3338
      %v3471 = vadd.f32 %v3105, %v3343
      %v3472 = vadd.f32 %v3106, %v3348
      %v3473 = vadd.f32 %v3107, %v3353
      %v3474 = vadd.f32 %v3108, %v3358
      %v3475 = vadd.f32 %v3109, %v3363
      %v3476 = vadd.f32 %v3110, %v3368
      %v3477 = vadd.f32 %v3111, %v3373
      %v3478 = vadd.f32 %v3112, %v3378
      %v3479 = vadd.f32 %v3113, %v3383
      %v3480 = vadd.f32 %v3114, %v3388
      %v3481 = vadd.f32 %v3115, %v3393
      %v3482 = vadd.f32 %v3116, %v3398
      %v3483 = vadd.f32 %v3117, %v3403
      %v3484 = vadd.f32 %v3118, %v3408
      %v3485 = vadd.f32 %v3119, %v3413
      %v3486 = vadd.f32 %v3120, %v3418
      %v3487 = vadd.f32 %v3121, %v3423
      %v3488 = vadd.f32 %v3122, %v3428
      %v3489 = vadd.f32 %v3123, %v3433
      %v3490 = vadd.f32 %v3124, %v3438
      %v3491 = vadd.f32 %v3125, %v3443
      %v3492 = vadd.f32 %v3126, %v3448
      %v3493 = vadd.f32 %v3127, %v3453
      %v3494 = vadd.f32 %v3128, %v3458
      %v3495 = vadd.f32 %v3129, %v3463
      %v3496 = vld [vmem:[%s2] sm:$0x1]
      %v3498 = vlaneseq
      %v3499 = vshrl.u32 %v3498, 7
      %v3500 = vsub.s32 0, %v3499
      %v3501 = vrot.slane %v3496, %v3500
      %v3503 = vadd.f32 %v3466, %v3501
      %v3504 = vadd.f32 %v3467, %v3501
      %v3505 = vadd.f32 %v3468, %v3501
      %v3506 = vadd.f32 %v3469, %v3501
      %v3507 = vadd.f32 %v3470, %v3501
      %v3508 = vadd.f32 %v3471, %v3501
      %v3509 = vadd.f32 %v3472, %v3501
      %v3510 = vadd.f32 %v3473, %v3501
      %v3511 = vadd.f32 %v3474, %v3501
      %v3512 = vadd.f32 %v3475, %v3501
      %v3513 = vadd.f32 %v3476, %v3501
      %v3514 = vadd.f32 %v3477, %v3501
      %v3515 = vadd.f32 %v3478, %v3501
      %v3516 = vadd.f32 %v3479, %v3501
      %v3517 = vadd.f32 %v3480, %v3501
      %v3518 = vadd.f32 %v3481, %v3501
      %v3519 = vadd.f32 %v3482, %v3501
      %v3520 = vadd.f32 %v3483, %v3501
      %v3521 = vadd.f32 %v3484, %v3501
      %v3522 = vadd.f32 %v3485, %v3501
      %v3523 = vadd.f32 %v3486, %v3501
      %v3524 = vadd.f32 %v3487, %v3501
      %v3525 = vadd.f32 %v3488, %v3501
      %v3526 = vadd.f32 %v3489, %v3501
      %v3527 = vadd.f32 %v3490, %v3501
      %v3528 = vadd.f32 %v3491, %v3501
      %v3529 = vadd.f32 %v3492, %v3501
      %v3530 = vadd.f32 %v3493, %v3501
      %v3531 = vadd.f32 %v3494, %v3501
      %v3532 = vadd.f32 %v3495, %v3501
      %v3533 = vmax.f32 %v3503, 0.0
      %v3534 = vmax.f32 %v3504, 0.0
      %v3535 = vmax.f32 %v3505, 0.0
      %v3536 = vmax.f32 %v3506, 0.0
      %v3537 = vmax.f32 %v3507, 0.0
      %v3538 = vmax.f32 %v3508, 0.0
      %v3539 = vmax.f32 %v3509, 0.0
      %v3540 = vmax.f32 %v3510, 0.0
      %v3541 = vmax.f32 %v3511, 0.0
      %v3542 = vmax.f32 %v3512, 0.0
      %v3543 = vmax.f32 %v3513, 0.0
      %v3544 = vmax.f32 %v3514, 0.0
      %v3545 = vmax.f32 %v3515, 0.0
      %v3546 = vmax.f32 %v3516, 0.0
      %v3547 = vmax.f32 %v3517, 0.0
      %v3548 = vmax.f32 %v3518, 0.0
      %v3549 = vmax.f32 %v3519, 0.0
      %v3550 = vmax.f32 %v3520, 0.0
      %v3551 = vmax.f32 %v3521, 0.0
      %v3552 = vmax.f32 %v3522, 0.0
      %v3553 = vmax.f32 %v3523, 0.0
      %v3554 = vmax.f32 %v3524, 0.0
      %v3555 = vmax.f32 %v3525, 0.0
      %v3556 = vmax.f32 %v3526, 0.0
      %v3557 = vmax.f32 %v3527, 0.0
      %v3558 = vmax.f32 %v3528, 0.0
      %v3559 = vmax.f32 %v3529, 0.0
      %v3560 = vmax.f32 %v3530, 0.0
      %v3561 = vmax.f32 %v3531, 0.0
      %v3562 = vmax.f32 %v3532, 0.0
      %s3563 = ssub.s32 %s250, 1
      %v3564 = vstv %s3563
      %v3565 = vadd.s32 %v3564, 1
      %v3566 = vadd.s32 %v3564, 2
      %v3567 = vadd.s32 %v3564, 3
      %v3568 = vadd.s32 %v3564, 4
      %v3569 = vadd.s32 %v3564, 5
      %v3570 = vadd.s32 %v3564, 6
      %v3571 = vadd.s32 %v3564, 7
      %v3572 = vadd.s32 %v3564, 8
      %v3573 = vadd.s32 %v3564, 9
      %v3574 = vlaneseq
      %v3575 = vshrl.u32 %v3574, 7
      %v3576 = vadd.s32 %v3575, 8
      %v3577 = vadd.s32 %v3575, 16
      %v3578 = vsub.s32 %v3575, 1
      %v3579 = vsub.s32 %v3576, 1
      %v3580 = vsub.s32 %v3577, 1
      %vm3581 = vcmp.ge.s32.totalorder %v3564, 0
      %vm3582 = vcmp.ge.s32.totalorder %v3565, 0
      %vm3583 = vcmp.ge.s32.totalorder %v3566, 0
      %vm3584 = vcmp.ge.s32.totalorder %v3567, 0
      %vm3585 = vcmp.ge.s32.totalorder %v3568, 0
      %vm3586 = vcmp.ge.s32.totalorder %v3569, 0
      %vm3587 = vcmp.ge.s32.totalorder %v3570, 0
      %vm3588 = vcmp.ge.s32.totalorder %v3571, 0
      %vm3589 = vcmp.ge.s32.totalorder %v3572, 0
      %vm3590 = vcmp.ge.s32.totalorder %v3573, 0
      %vm3591 = vcmp.lt.s32.totalorder %v3564, 16
      %vm3592 = vcmp.lt.s32.totalorder %v3565, 16
      %vm3593 = vcmp.lt.s32.totalorder %v3566, 16
      %vm3594 = vcmp.lt.s32.totalorder %v3567, 16
      %vm3595 = vcmp.lt.s32.totalorder %v3568, 16
      %vm3596 = vcmp.lt.s32.totalorder %v3569, 16
      %vm3597 = vcmp.lt.s32.totalorder %v3570, 16
      %vm3598 = vcmp.lt.s32.totalorder %v3571, 16
      %vm3599 = vcmp.lt.s32.totalorder %v3572, 16
      %vm3600 = vcmp.lt.s32.totalorder %v3573, 16
      %vm3601 = vmand %vm3581, %vm3591
      %vm3602 = vmand %vm3582, %vm3592
      %vm3603 = vmand %vm3583, %vm3593
      %vm3604 = vmand %vm3584, %vm3594
      %vm3605 = vmand %vm3585, %vm3595
      %vm3606 = vmand %vm3586, %vm3596
      %vm3607 = vmand %vm3587, %vm3597
      %vm3608 = vmand %vm3588, %vm3598
      %vm3609 = vmand %vm3589, %vm3599
      %vm3610 = vmand %vm3590, %vm3600
      %vm3611 = vcmp.ge.s32.totalorder %v3578, 0
      %vm3612 = vcmp.ge.s32.totalorder %v3579, 0
      %vm3613 = vcmp.ge.s32.totalorder %v3580, 0
      %vm3614 = vmand %vm3601, %vm3611
      %vm3615 = vmand %vm3601, %vm3612
      %vm3616 = vmand %vm3601, %vm3613
      %vm3617 = vmand %vm3602, %vm3611
      %vm3618 = vmand %vm3602, %vm3612
      %vm3619 = vmand %vm3602, %vm3613
      %vm3620 = vmand %vm3603, %vm3611
      %vm3621 = vmand %vm3603, %vm3612
      %vm3622 = vmand %vm3603, %vm3613
      %vm3623 = vmand %vm3604, %vm3611
      %vm3624 = vmand %vm3604, %vm3612
      %vm3625 = vmand %vm3604, %vm3613
      %vm3626 = vmand %vm3605, %vm3611
      %vm3627 = vmand %vm3605, %vm3612
      %vm3628 = vmand %vm3605, %vm3613
      %vm3629 = vmand %vm3606, %vm3611
      %vm3630 = vmand %vm3606, %vm3612
      %vm3631 = vmand %vm3606, %vm3613
      %vm3632 = vmand %vm3607, %vm3611
      %vm3633 = vmand %vm3607, %vm3612
      %vm3634 = vmand %vm3607, %vm3613
      %vm3635 = vmand %vm3608, %vm3611
      %vm3636 = vmand %vm3608, %vm3612
      %vm3637 = vmand %vm3608, %vm3613
      %vm3638 = vmand %vm3609, %vm3611
      %vm3639 = vmand %vm3609, %vm3612
      %vm3640 = vmand %vm3609, %vm3613
      %vm3641 = vmand %vm3610, %vm3611
      %vm3642 = vmand %vm3610, %vm3612
      %vm3643 = vmand %vm3610, %vm3613
      %vm3644 = vcmp.lt.s32.totalorder %v3578, 16
      %vm3645 = vcmp.lt.s32.totalorder %v3579, 16
      %vm3646 = vcmp.lt.s32.totalorder %v3580, 16
      %vm3647 = vmand %vm3614, %vm3644
      %vm3648 = vmand %vm3615, %vm3645
      %vm3649 = vmand %vm3616, %vm3646
      %vm3650 = vmand %vm3617, %vm3644
      %vm3651 = vmand %vm3618, %vm3645
      %vm3652 = vmand %vm3619, %vm3646
      %vm3653 = vmand %vm3620, %vm3644
      %vm3654 = vmand %vm3621, %vm3645
      %vm3655 = vmand %vm3622, %vm3646
      %vm3656 = vmand %vm3623, %vm3644
      %vm3657 = vmand %vm3624, %vm3645
      %vm3658 = vmand %vm3625, %vm3646
      %vm3659 = vmand %vm3626, %vm3644
      %vm3660 = vmand %vm3627, %vm3645
      %vm3661 = vmand %vm3628, %vm3646
      %vm3662 = vmand %vm3629, %vm3644
      %vm3663 = vmand %vm3630, %vm3645
      %vm3664 = vmand %vm3631, %vm3646
      %vm3665 = vmand %vm3632, %vm3644
      %vm3666 = vmand %vm3633, %vm3645
      %vm3667 = vmand %vm3634, %vm3646
      %vm3668 = vmand %vm3635, %vm3644
      %vm3669 = vmand %vm3636, %vm3645
      %vm3670 = vmand %vm3637, %vm3646
      %vm3671 = vmand %vm3638, %vm3644
      %vm3672 = vmand %vm3639, %vm3645
      %vm3673 = vmand %vm3640, %vm3646
      %vm3674 = vmand %vm3641, %vm3644
      %vm3675 = vmand %vm3642, %vm3645
      %vm3676 = vmand %vm3643, %vm3646
      %v3677 = vsel %vm3647, 1, 0
      %v3678 = vsel %vm3648, 1, 0
      %v3679 = vsel %vm3649, 1, 0
      %v3680 = vsel %vm3650, 1, 0
      %v3681 = vsel %vm3651, 1, 0
      %v3682 = vsel %vm3652, 1, 0
      %v3683 = vsel %vm3653, 1, 0
      %v3684 = vsel %vm3654, 1, 0
      %v3685 = vsel %vm3655, 1, 0
      %v3686 = vsel %vm3656, 1, 0
      %v3687 = vsel %vm3657, 1, 0
      %v3688 = vsel %vm3658, 1, 0
      %v3689 = vsel %vm3659, 1, 0
      %v3690 = vsel %vm3660, 1, 0
      %v3691 = vsel %vm3661, 1, 0
      %v3692 = vsel %vm3662, 1, 0
      %v3693 = vsel %vm3663, 1, 0
      %v3694 = vsel %vm3664, 1, 0
      %v3695 = vsel %vm3665, 1, 0
      %v3696 = vsel %vm3666, 1, 0
      %v3697 = vsel %vm3667, 1, 0
      %v3698 = vsel %vm3668, 1, 0
      %v3699 = vsel %vm3669, 1, 0
      %v3700 = vsel %vm3670, 1, 0
      %v3701 = vsel %vm3671, 1, 0
      %v3702 = vsel %vm3672, 1, 0
      %v3703 = vsel %vm3673, 1, 0
      %v3704 = vsel %vm3674, 1, 0
      %v3705 = vsel %vm3675, 1, 0
      %v3706 = vsel %vm3676, 1, 0
      %vm3707 = vcmp.eq.s32.totalorder %v3677, 1
      %vm3708 = vcmp.eq.s32.totalorder %v3678, 1
      %vm3709 = vcmp.eq.s32.totalorder %v3679, 1
      %vm3710 = vcmp.eq.s32.totalorder %v3680, 1
      %vm3711 = vcmp.eq.s32.totalorder %v3681, 1
      %vm3712 = vcmp.eq.s32.totalorder %v3682, 1
      %vm3713 = vcmp.eq.s32.totalorder %v3683, 1
      %vm3714 = vcmp.eq.s32.totalorder %v3684, 1
      %vm3715 = vcmp.eq.s32.totalorder %v3685, 1
      %vm3716 = vcmp.eq.s32.totalorder %v3686, 1
      %vm3717 = vcmp.eq.s32.totalorder %v3687, 1
      %vm3718 = vcmp.eq.s32.totalorder %v3688, 1
      %vm3719 = vcmp.eq.s32.totalorder %v3689, 1
      %vm3720 = vcmp.eq.s32.totalorder %v3690, 1
      %vm3721 = vcmp.eq.s32.totalorder %v3691, 1
      %vm3722 = vcmp.eq.s32.totalorder %v3692, 1
      %vm3723 = vcmp.eq.s32.totalorder %v3693, 1
      %vm3724 = vcmp.eq.s32.totalorder %v3694, 1
      %vm3725 = vcmp.eq.s32.totalorder %v3695, 1
      %vm3726 = vcmp.eq.s32.totalorder %v3696, 1
      %vm3727 = vcmp.eq.s32.totalorder %v3697, 1
      %vm3728 = vcmp.eq.s32.totalorder %v3698, 1
      %vm3729 = vcmp.eq.s32.totalorder %v3699, 1
      %vm3730 = vcmp.eq.s32.totalorder %v3700, 1
      %vm3731 = vcmp.eq.s32.totalorder %v3701, 1
      %vm3732 = vcmp.eq.s32.totalorder %v3702, 1
      %vm3733 = vcmp.eq.s32.totalorder %v3703, 1
      %vm3734 = vcmp.eq.s32.totalorder %v3704, 1
      %vm3735 = vcmp.eq.s32.totalorder %v3705, 1
      %vm3736 = vcmp.eq.s32.totalorder %v3706, 1
      %v3737 = vsel %vm3707, %v3533, 0.0
      %v3738 = vsel %vm3708, %v3534, 0.0
      %v3739 = vsel %vm3709, %v3535, 0.0
      %v3740 = vsel %vm3710, %v3536, 0.0
      %v3741 = vsel %vm3711, %v3537, 0.0
      %v3742 = vsel %vm3712, %v3538, 0.0
      %v3743 = vsel %vm3713, %v3539, 0.0
      %v3744 = vsel %vm3714, %v3540, 0.0
      %v3745 = vsel %vm3715, %v3541, 0.0
      %v3746 = vsel %vm3716, %v3542, 0.0
      %v3747 = vsel %vm3717, %v3543, 0.0
      %v3748 = vsel %vm3718, %v3544, 0.0
      %v3749 = vsel %vm3719, %v3545, 0.0
      %v3750 = vsel %vm3720, %v3546, 0.0
      %v3751 = vsel %vm3721, %v3547, 0.0
      %v3752 = vsel %vm3722, %v3548, 0.0
      %v3753 = vsel %vm3723, %v3549, 0.0
      %v3754 = vsel %vm3724, %v3550, 0.0
      %v3755 = vsel %vm3725, %v3551, 0.0
      %v3756 = vsel %vm3726, %v3552, 0.0
      %v3757 = vsel %vm3727, %v3553, 0.0
      %v3758 = vsel %vm3728, %v3554, 0.0
      %v3759 = vsel %vm3729, %v3555, 0.0
      %v3760 = vsel %vm3730, %v3556, 0.0
      %v3761 = vsel %vm3731, %v3557, 0.0
      %v3762 = vsel %vm3732, %v3558, 0.0
      %v3763 = vsel %vm3733, %v3559, 0.0
      %v3764 = vsel %vm3734, %v3560, 0.0
      %v3765 = vsel %vm3735, %v3561, 0.0
      %v3766 = vsel %vm3736, %v3562, 0.0
      %v3767 = vld [vmem:[%s3] sm:$0xff]
      %vm3792 = vcmask 1046528
      %v3793 = vrot.slane %v3737, 1
      %v3794 = vrot.slane %v3738, 1
      %v3795 = vsel %vm3792, %v3793, %v3794
      %v3796 = vrot.slane %v3739, 1
      %v3797 = vsel %vm3792, %v3794, %v3796
      %v3798 = vrot.slane %v3740, 1
      %v3799 = vrot.slane %v3741, 1
      %v3800 = vsel %vm3792, %v3798, %v3799
      %v3801 = vrot.slane %v3742, 1
      %v3802 = vsel %vm3792, %v3799, %v3801
      %v3803 = vrot.slane %v3743, 1
      %v3804 = vrot.slane %v3744, 1
      %v3805 = vsel %vm3792, %v3803, %v3804
      %v3806 = vrot.slane %v3745, 1
      %v3807 = vsel %vm3792, %v3804, %v3806
      %v3808 = vrot.slane %v3746, 1
      %v3809 = vrot.slane %v3747, 1
      %v3810 = vsel %vm3792, %v3808, %v3809
      %v3811 = vrot.slane %v3748, 1
      %v3812 = vsel %vm3792, %v3809, %v3811
      %v3813 = vrot.slane %v3749, 1
      %v3814 = vrot.slane %v3750, 1
      %v3815 = vsel %vm3792, %v3813, %v3814
      %v3816 = vrot.slane %v3751, 1
      %v3817 = vsel %vm3792, %v3814, %v3816
      %v3818 = vrot.slane %v3752, 1
      %v3819 = vrot.slane %v3753, 1
      %v3820 = vsel %vm3792, %v3818, %v3819
      %v3821 = vrot.slane %v3754, 1
      %v3822 = vsel %vm3792, %v3819, %v3821
      %v3823 = vrot.slane %v3755, 1
      %v3824 = vrot.slane %v3756, 1
      %v3825 = vsel %vm3792, %v3823, %v3824
      %v3826 = vrot.slane %v3757, 1
      %v3827 = vsel %vm3792, %v3824, %v3826
      %v3828 = vrot.slane %v3758, 1
      %v3829 = vrot.slane %v3759, 1
      %v3830 = vsel %vm3792, %v3828, %v3829
      %v3831 = vrot.slane %v3760, 1
      %v3832 = vsel %vm3792, %v3829, %v3831
      %v3833 = vld [vmem:[%s3 + $0x8] sm:$0xff]
      %v3834 = vsel %vm315, %v3795, 0
      %v3836 = vsel %vm315, %v3797, 0
      %v3838 = vsel %vm315, %v3800, 0
      %v3840 = vsel %vm315, %v3802, 0
      %v3842 = vsel %vm315, %v3805, 0
      %v3844 = vsel %vm315, %v3807, 0
      %v3846 = vsel %vm315, %v3810, 0
      %v3848 = vsel %vm315, %v3812, 0
      %v3850 = vsel %vm315, %v3815, 0
      %v3852 = vsel %vm315, %v3817, 0
      %v3854 = vsel %vm315, %v3820, 0
      %v3856 = vsel %vm315, %v3822, 0
      %v3858 = vsel %vm315, %v3825, 0
      %v3860 = vsel %vm315, %v3827, 0
      %v3862 = vsel %vm315, %v3830, 0
      %v3864 = vsel %vm315, %v3832, 0
      %3866 = vmatprep.subr.mxu0 0.0
      %3867 = vmatpush1.msra.mxu0 0.0
      %3868 = vmatprep.subr.mxu0 0.0
      %3869 = vmatpush1.msra.mxu0 0.0
      %3870 = vmatprep.subr.mxu0 0.0
      %3871 = vmatpush1.msra.mxu0 0.0
      %3872 = vmatprep.subr.mxu0 0.0
      %3873 = vmatpush1.msra.mxu0 0.0
      %3874 = vmatprep.subr.mxu0 0.0
      %3875 = vmatpush1.msra.mxu0 0.0
      %3876 = vmatprep.subr.mxu0 0.0
      %3877 = vmatpush1.msra.mxu0 0.0
      %3878 = vmatprep.subr.mxu0 0.0
      %3879 = vmatpush1.msra.mxu0 0.0
      %3880 = vmatprep.subr.mxu0 0.0
      %3881 = vmatpush1.msra.mxu0 0.0
      %3882 = vmatprep.subr.mxu0 0.0
      %3883 = vmatpush1.msra.mxu0 0.0
      %3884 = vmatprep.subr.mxu0 0.0
      %3885 = vmatpush1.msra.mxu0 0.0
      %3886 = vmatprep.subr.mxu0 0.0
      %3887 = vmatpush1.msra.mxu0 0.0
      %3888 = vmatprep.subr.mxu0 0.0
      %3889 = vmatpush1.msra.mxu0 0.0
      %3890 = vmatprep.subr.mxu0 0.0
      %3891 = vmatpush1.msra.mxu0 0.0
      %3892 = vmatprep.subr.mxu0 0.0
      %3893 = vmatpush1.msra.mxu0 0.0
      %3894 = vmatprep.subr.mxu0 0.0
      %3895 = vmatpush1.msra.mxu0 0.0
      %3896 = vmatprep.subr.mxu0 0.0
      %3897 = vmatpush1.msra.mxu0 %v3833
      %3898 = vmatprep.subr.mxu0 0.0
      %3899 = vmatpush2.msra.mxu0 0.0
      %3900 = vmatprep.subr.mxu0 0.0
      %3901 = vmatpush2.msra.mxu0 0.0
      %3902 = vmatprep.subr.mxu0 0.0
      %3903 = vmatpush2.msra.mxu0 0.0
      %3904 = vmatprep.subr.mxu0 0.0
      %3905 = vmatpush2.msra.mxu0 0.0
      %3906 = vmatprep.subr.mxu0 0.0
      %3907 = vmatpush2.msra.mxu0 0.0
      %3908 = vmatprep.subr.mxu0 0.0
      %3909 = vmatpush2.msra.mxu0 0.0
      %3910 = vmatprep.subr.mxu0 0.0
      %3911 = vmatpush2.msra.mxu0 0.0
      %3912 = vmatprep.subr.mxu0 0.0
      %3913 = vmatpush2.msra.mxu0 0.0
      %3914 = vmatprep.subr.mxu0 0.0
      %3915 = vmatpush2.msra.mxu0 0.0
      %3916 = vmatprep.subr.mxu0 0.0
      %3917 = vmatpush2.msra.mxu0 0.0
      %3918 = vmatprep.subr.mxu0 0.0
      %3919 = vmatpush2.msra.mxu0 0.0
      %3920 = vmatprep.subr.mxu0 0.0
      %3921 = vmatpush2.msra.mxu0 0.0
      %3922 = vmatprep.subr.mxu0 0.0
      %3923 = vmatpush2.msra.mxu0 0.0
      %3924 = vmatprep.subr.mxu0 0.0
      %3925 = vmatpush2.msra.mxu0 0.0
      %3926 = vmatprep.subr.mxu0 0.0
      %3927 = vmatpush2.msra.mxu0 0.0
      %3928 = vmatprep.subr.mxu0 0.0
      %3929 = vmatpush2.msra.mxu0 0.0
      %3930 = vmatprep.mubr.f32.mxu0 0.0
      %3931 = vmatmul.mubr.f32.gmra.mxu0 %v3834
      %v3932 = vpop.f32.mrf.mxu0
      %v3933 = vadd.f32 0.0, %v3932
      %v3934 = vpop.f32.mrf.mxu0
      %3935 = vmatprep.mubr.f32.mxu0 0.0
      %3936 = vmatmul.mubr.f32.gmra.mxu0 %v3836
      %v3937 = vpop.f32.mrf.mxu0
      %v3938 = vadd.f32 0.0, %v3937
      %v3939 = vpop.f32.mrf.mxu0
      %3940 = vmatprep.mubr.f32.mxu0 0.0
      %3941 = vmatmul.mubr.f32.gmra.mxu0 %v3838
      %v3942 = vpop.f32.mrf.mxu0
      %v3943 = vadd.f32 0.0, %v3942
      %v3944 = vpop.f32.mrf.mxu0
      %3945 = vmatprep.mubr.f32.mxu0 0.0
      %3946 = vmatmul.mubr.f32.gmra.mxu0 %v3840
      %v3947 = vpop.f32.mrf.mxu0
      %v3948 = vadd.f32 0.0, %v3947
      %v3949 = vpop.f32.mrf.mxu0
      %3950 = vmatprep.mubr.f32.mxu0 0.0
      %3951 = vmatmul.mubr.f32.gmra.mxu0 %v3842
      %v3952 = vpop.f32.mrf.mxu0
      %v3953 = vadd.f32 0.0, %v3952
      %v3954 = vpop.f32.mrf.mxu0
      %3955 = vmatprep.mubr.f32.mxu0 0.0
      %3956 = vmatmul.mubr.f32.gmra.mxu0 %v3844
      %v3957 = vpop.f32.mrf.mxu0
      %v3958 = vadd.f32 0.0, %v3957
      %v3959 = vpop.f32.mrf.mxu0
      %3960 = vmatprep.mubr.f32.mxu0 0.0
      %3961 = vmatmul.mubr.f32.gmra.mxu0 %v3846
      %v3962 = vpop.f32.mrf.mxu0
      %v3963 = vadd.f32 0.0, %v3962
      %v3964 = vpop.f32.mrf.mxu0
      %3965 = vmatprep.mubr.f32.mxu0 0.0
      %3966 = vmatmul.mubr.f32.gmra.mxu0 %v3848
      %v3967 = vpop.f32.mrf.mxu0
      %v3968 = vadd.f32 0.0, %v3967
      %v3969 = vpop.f32.mrf.mxu0
      %3970 = vmatprep.mubr.f32.mxu0 0.0
      %3971 = vmatmul.mubr.f32.gmra.mxu0 %v3850
      %v3972 = vpop.f32.mrf.mxu0
      %v3973 = vadd.f32 0.0, %v3972
      %v3974 = vpop.f32.mrf.mxu0
      %3975 = vmatprep.mubr.f32.mxu0 0.0
      %3976 = vmatmul.mubr.f32.gmra.mxu0 %v3852
      %v3977 = vpop.f32.mrf.mxu0
      %v3978 = vadd.f32 0.0, %v3977
      %v3979 = vpop.f32.mrf.mxu0
      %3980 = vmatprep.mubr.f32.mxu0 0.0
      %3981 = vmatmul.mubr.f32.gmra.mxu0 %v3854
      %v3982 = vpop.f32.mrf.mxu0
      %v3983 = vadd.f32 0.0, %v3982
      %v3984 = vpop.f32.mrf.mxu0
      %3985 = vmatprep.mubr.f32.mxu0 0.0
      %3986 = vmatmul.mubr.f32.gmra.mxu0 %v3856
      %v3987 = vpop.f32.mrf.mxu0
      %v3988 = vadd.f32 0.0, %v3987
      %v3989 = vpop.f32.mrf.mxu0
      %3990 = vmatprep.mubr.f32.mxu0 0.0
      %3991 = vmatmul.mubr.f32.gmra.mxu0 %v3858
      %v3992 = vpop.f32.mrf.mxu0
      %v3993 = vadd.f32 0.0, %v3992
      %v3994 = vpop.f32.mrf.mxu0
      %3995 = vmatprep.mubr.f32.mxu0 0.0
      %3996 = vmatmul.mubr.f32.gmra.mxu0 %v3860
      %v3997 = vpop.f32.mrf.mxu0
      %v3998 = vadd.f32 0.0, %v3997
      %v3999 = vpop.f32.mrf.mxu0
      %4000 = vmatprep.mubr.f32.mxu0 0.0
      %4001 = vmatmul.mubr.f32.gmra.mxu0 %v3862
      %v4002 = vpop.f32.mrf.mxu0
      %v4003 = vadd.f32 0.0, %v4002
      %v4004 = vpop.f32.mrf.mxu0
      %4005 = vmatprep.mubr.f32.mxu0 0.0
      %4006 = vmatmul.mubr.f32.gmra.mxu0 %v3864
      %v4007 = vpop.f32.mrf.mxu0
      %v4008 = vadd.f32 0.0, %v4007
      %v4009 = vpop.f32.mrf.mxu0
      %4010 = vdwg.mxu0
      %v4011 = vsel %vm315, %v3737, 0
      %v4013 = vsel %vm315, %v3738, 0
      %v4015 = vsel %vm315, %v3740, 0
      %v4017 = vsel %vm315, %v3741, 0
      %v4019 = vsel %vm315, %v3743, 0
      %v4021 = vsel %vm315, %v3744, 0
      %v4023 = vsel %vm315, %v3746, 0
      %v4025 = vsel %vm315, %v3747, 0
      %v4027 = vsel %vm315, %v3749, 0
      %v4029 = vsel %vm315, %v3750, 0
      %v4031 = vsel %vm315, %v3752, 0
      %v4033 = vsel %vm315, %v3753, 0
      %v4035 = vsel %vm315, %v3755, 0
      %v4037 = vsel %vm315, %v3756, 0
      %v4039 = vsel %vm315, %v3758, 0
      %v4041 = vsel %vm315, %v3759, 0
      %4043 = vmatprep.subr.mxu0 0.0
      %4044 = vmatpush1.msra.mxu0 0.0
      %4045 = vmatprep.subr.mxu0 0.0
      %4046 = vmatpush1.msra.mxu0 0.0
      %4047 = vmatprep.subr.mxu0 0.0
      %4048 = vmatpush1.msra.mxu0 0.0
      %4049 = vmatprep.subr.mxu0 0.0
      %4050 = vmatpush1.msra.mxu0 0.0
      %4051 = vmatprep.subr.mxu0 0.0
      %4052 = vmatpush1.msra.mxu0 0.0
      %4053 = vmatprep.subr.mxu0 0.0
      %4054 = vmatpush1.msra.mxu0 0.0
      %4055 = vmatprep.subr.mxu0 0.0
      %4056 = vmatpush1.msra.mxu0 0.0
      %4057 = vmatprep.subr.mxu0 0.0
      %4058 = vmatpush1.msra.mxu0 0.0
      %4059 = vmatprep.subr.mxu0 0.0
      %4060 = vmatpush1.msra.mxu0 0.0
      %4061 = vmatprep.subr.mxu0 0.0
      %4062 = vmatpush1.msra.mxu0 0.0
      %4063 = vmatprep.subr.mxu0 0.0
      %4064 = vmatpush1.msra.mxu0 0.0
      %4065 = vmatprep.subr.mxu0 0.0
      %4066 = vmatpush1.msra.mxu0 0.0
      %4067 = vmatprep.subr.mxu0 0.0
      %4068 = vmatpush1.msra.mxu0 0.0
      %4069 = vmatprep.subr.mxu0 0.0
      %4070 = vmatpush1.msra.mxu0 0.0
      %4071 = vmatprep.subr.mxu0 0.0
      %4072 = vmatpush1.msra.mxu0 0.0
      %4073 = vmatprep.subr.mxu0 0.0
      %4074 = vmatpush1.msra.mxu0 %v3767
      %4075 = vmatprep.subr.mxu0 0.0
      %4076 = vmatpush2.msra.mxu0 0.0
      %4077 = vmatprep.subr.mxu0 0.0
      %4078 = vmatpush2.msra.mxu0 0.0
      %4079 = vmatprep.subr.mxu0 0.0
      %4080 = vmatpush2.msra.mxu0 0.0
      %4081 = vmatprep.subr.mxu0 0.0
      %4082 = vmatpush2.msra.mxu0 0.0
      %4083 = vmatprep.subr.mxu0 0.0
      %4084 = vmatpush2.msra.mxu0 0.0
      %4085 = vmatprep.subr.mxu0 0.0
      %4086 = vmatpush2.msra.mxu0 0.0
      %4087 = vmatprep.subr.mxu0 0.0
      %4088 = vmatpush2.msra.mxu0 0.0
      %4089 = vmatprep.subr.mxu0 0.0
      %4090 = vmatpush2.msra.mxu0 0.0
      %4091 = vmatprep.subr.mxu0 0.0
      %4092 = vmatpush2.msra.mxu0 0.0
      %4093 = vmatprep.subr.mxu0 0.0
      %4094 = vmatpush2.msra.mxu0 0.0
      %4095 = vmatprep.subr.mxu0 0.0
      %4096 = vmatpush2.msra.mxu0 0.0
      %4097 = vmatprep.subr.mxu0 0.0
      %4098 = vmatpush2.msra.mxu0 0.0
      %4099 = vmatprep.subr.mxu0 0.0
      %4100 = vmatpush2.msra.mxu0 0.0
      %4101 = vmatprep.subr.mxu0 0.0
      %4102 = vmatpush2.msra.mxu0 0.0
      %4103 = vmatprep.subr.mxu0 0.0
      %4104 = vmatpush2.msra.mxu0 0.0
      %4105 = vmatprep.subr.mxu0 0.0
      %4106 = vmatpush2.msra.mxu0 0.0
      %4107 = vmatprep.mubr.f32.mxu0 0.0
      %4108 = vmatmul.mubr.f32.gmra.mxu0 %v4011
      %v4109 = vpop.f32.mrf.mxu0
      %v4110 = vadd.f32 %v3933, %v4109
      %v4111 = vpop.f32.mrf.mxu0
      %4112 = vmatprep.mubr.f32.mxu0 0.0
      %4113 = vmatmul.mubr.f32.gmra.mxu0 %v4013
      %v4114 = vpop.f32.mrf.mxu0
      %v4115 = vadd.f32 %v3938, %v4114
      %v4116 = vpop.f32.mrf.mxu0
      %4117 = vmatprep.mubr.f32.mxu0 0.0
      %4118 = vmatmul.mubr.f32.gmra.mxu0 %v4015
      %v4119 = vpop.f32.mrf.mxu0
      %v4120 = vadd.f32 %v3943, %v4119
      %v4121 = vpop.f32.mrf.mxu0
      %4122 = vmatprep.mubr.f32.mxu0 0.0
      %4123 = vmatmul.mubr.f32.gmra.mxu0 %v4017
      %v4124 = vpop.f32.mrf.mxu0
      %v4125 = vadd.f32 %v3948, %v4124
      %v4126 = vpop.f32.mrf.mxu0
      %4127 = vmatprep.mubr.f32.mxu0 0.0
      %4128 = vmatmul.mubr.f32.gmra.mxu0 %v4019
      %v4129 = vpop.f32.mrf.mxu0
      %v4130 = vadd.f32 %v3953, %v4129
      %v4131 = vpop.f32.mrf.mxu0
      %4132 = vmatprep.mubr.f32.mxu0 0.0
      %4133 = vmatmul.mubr.f32.gmra.mxu0 %v4021
      %v4134 = vpop.f32.mrf.mxu0
      %v4135 = vadd.f32 %v3958, %v4134
      %v4136 = vpop.f32.mrf.mxu0
      %4137 = vmatprep.mubr.f32.mxu0 0.0
      %4138 = vmatmul.mubr.f32.gmra.mxu0 %v4023
      %v4139 = vpop.f32.mrf.mxu0
      %v4140 = vadd.f32 %v3963, %v4139
      %v4141 = vpop.f32.mrf.mxu0
      %4142 = vmatprep.mubr.f32.mxu0 0.0
      %4143 = vmatmul.mubr.f32.gmra.mxu0 %v4025
      %v4144 = vpop.f32.mrf.mxu0
      %v4145 = vadd.f32 %v3968, %v4144
      %v4146 = vpop.f32.mrf.mxu0
      %4147 = vmatprep.mubr.f32.mxu0 0.0
      %4148 = vmatmul.mubr.f32.gmra.mxu0 %v4027
      %v4149 = vpop.f32.mrf.mxu0
      %v4150 = vadd.f32 %v3973, %v4149
      %v4151 = vpop.f32.mrf.mxu0
      %4152 = vmatprep.mubr.f32.mxu0 0.0
      %4153 = vmatmul.mubr.f32.gmra.mxu0 %v4029
      %v4154 = vpop.f32.mrf.mxu0
      %v4155 = vadd.f32 %v3978, %v4154
      %v4156 = vpop.f32.mrf.mxu0
      %4157 = vmatprep.mubr.f32.mxu0 0.0
      %4158 = vmatmul.mubr.f32.gmra.mxu0 %v4031
      %v4159 = vpop.f32.mrf.mxu0
      %v4160 = vadd.f32 %v3983, %v4159
      %v4161 = vpop.f32.mrf.mxu0
      %4162 = vmatprep.mubr.f32.mxu0 0.0
      %4163 = vmatmul.mubr.f32.gmra.mxu0 %v4033
      %v4164 = vpop.f32.mrf.mxu0
      %v4165 = vadd.f32 %v3988, %v4164
      %v4166 = vpop.f32.mrf.mxu0
      %4167 = vmatprep.mubr.f32.mxu0 0.0
      %4168 = vmatmul.mubr.f32.gmra.mxu0 %v4035
      %v4169 = vpop.f32.mrf.mxu0
      %v4170 = vadd.f32 %v3993, %v4169
      %v4171 = vpop.f32.mrf.mxu0
      %4172 = vmatprep.mubr.f32.mxu0 0.0
      %4173 = vmatmul.mubr.f32.gmra.mxu0 %v4037
      %v4174 = vpop.f32.mrf.mxu0
      %v4175 = vadd.f32 %v3998, %v4174
      %v4176 = vpop.f32.mrf.mxu0
      %4177 = vmatprep.mubr.f32.mxu0 0.0
      %4178 = vmatmul.mubr.f32.gmra.mxu0 %v4039
      %v4179 = vpop.f32.mrf.mxu0
      %v4180 = vadd.f32 %v4003, %v4179
      %v4181 = vpop.f32.mrf.mxu0
      %4182 = vmatprep.mubr.f32.mxu0 0.0
      %4183 = vmatmul.mubr.f32.gmra.mxu0 %v4041
      %v4184 = vpop.f32.mrf.mxu0
      %v4185 = vadd.f32 %v4008, %v4184
      %v4186 = vpop.f32.mrf.mxu0
      %4187 = vdwg.mxu0
      %vm4188 = vcmask 1045504
      %v4189 = vrot.slane %v3737, 2
      %v4190 = vrot.slane %v3738, 2
      %v4191 = vsel %vm4188, %v4189, %v4190
      %v4192 = vrot.slane %v3739, 2
      %v4193 = vsel %vm4188, %v4190, %v4192
      %v4194 = vrot.slane %v3740, 2
      %v4195 = vrot.slane %v3741, 2
      %v4196 = vsel %vm4188, %v4194, %v4195
      %v4197 = vrot.slane %v3742, 2
      %v4198 = vsel %vm4188, %v4195, %v4197
      %v4199 = vrot.slane %v3743, 2
      %v4200 = vrot.slane %v3744, 2
      %v4201 = vsel %vm4188, %v4199, %v4200
      %v4202 = vrot.slane %v3745, 2
      %v4203 = vsel %vm4188, %v4200, %v4202
      %v4204 = vrot.slane %v3746, 2
      %v4205 = vrot.slane %v3747, 2
      %v4206 = vsel %vm4188, %v4204, %v4205
      %v4207 = vrot.slane %v3748, 2
      %v4208 = vsel %vm4188, %v4205, %v4207
      %v4209 = vrot.slane %v3749, 2
      %v4210 = vrot.slane %v3750, 2
      %v4211 = vsel %vm4188, %v4209, %v4210
      %v4212 = vrot.slane %v3751, 2
      %v4213 = vsel %vm4188, %v4210, %v4212
      %v4214 = vrot.slane %v3752, 2
      %v4215 = vrot.slane %v3753, 2
      %v4216 = vsel %vm4188, %v4214, %v4215
      %v4217 = vrot.slane %v3754, 2
      %v4218 = vsel %vm4188, %v4215, %v4217
      %v4219 = vrot.slane %v3755, 2
      %v4220 = vrot.slane %v3756, 2
      %v4221 = vsel %vm4188, %v4219, %v4220
      %v4222 = vrot.slane %v3757, 2
      %v4223 = vsel %vm4188, %v4220, %v4222
      %v4224 = vrot.slane %v3758, 2
      %v4225 = vrot.slane %v3759, 2
      %v4226 = vsel %vm4188, %v4224, %v4225
      %v4227 = vrot.slane %v3760, 2
      %v4228 = vsel %vm4188, %v4225, %v4227
      %v4229 = vld [vmem:[%s3 + $0x10] sm:$0xff]
      %v4230 = vsel %vm315, %v4191, 0
      %v4232 = vsel %vm315, %v4193, 0
      %v4234 = vsel %vm315, %v4196, 0
      %v4236 = vsel %vm315, %v4198, 0
      %v4238 = vsel %vm315, %v4201, 0
      %v4240 = vsel %vm315, %v4203, 0
      %v4242 = vsel %vm315, %v4206, 0
      %v4244 = vsel %vm315, %v4208, 0
      %v4246 = vsel %vm315, %v4211, 0
      %v4248 = vsel %vm315, %v4213, 0
      %v4250 = vsel %vm315, %v4216, 0
      %v4252 = vsel %vm315, %v4218, 0
      %v4254 = vsel %vm315, %v4221, 0
      %v4256 = vsel %vm315, %v4223, 0
      %v4258 = vsel %vm315, %v4226, 0
      %v4260 = vsel %vm315, %v4228, 0
      %4262 = vmatprep.subr.mxu0 0.0
      %4263 = vmatpush1.msra.mxu0 0.0
      %4264 = vmatprep.subr.mxu0 0.0
      %4265 = vmatpush1.msra.mxu0 0.0
      %4266 = vmatprep.subr.mxu0 0.0
      %4267 = vmatpush1.msra.mxu0 0.0
      %4268 = vmatprep.subr.mxu0 0.0
      %4269 = vmatpush1.msra.mxu0 0.0
      %4270 = vmatprep.subr.mxu0 0.0
      %4271 = vmatpush1.msra.mxu0 0.0
      %4272 = vmatprep.subr.mxu0 0.0
      %4273 = vmatpush1.msra.mxu0 0.0
      %4274 = vmatprep.subr.mxu0 0.0
      %4275 = vmatpush1.msra.mxu0 0.0
      %4276 = vmatprep.subr.mxu0 0.0
      %4277 = vmatpush1.msra.mxu0 0.0
      %4278 = vmatprep.subr.mxu0 0.0
      %4279 = vmatpush1.msra.mxu0 0.0
      %4280 = vmatprep.subr.mxu0 0.0
      %4281 = vmatpush1.msra.mxu0 0.0
      %4282 = vmatprep.subr.mxu0 0.0
      %4283 = vmatpush1.msra.mxu0 0.0
      %4284 = vmatprep.subr.mxu0 0.0
      %4285 = vmatpush1.msra.mxu0 0.0
      %4286 = vmatprep.subr.mxu0 0.0
      %4287 = vmatpush1.msra.mxu0 0.0
      %4288 = vmatprep.subr.mxu0 0.0
      %4289 = vmatpush1.msra.mxu0 0.0
      %4290 = vmatprep.subr.mxu0 0.0
      %4291 = vmatpush1.msra.mxu0 0.0
      %4292 = vmatprep.subr.mxu0 0.0
      %4293 = vmatpush1.msra.mxu0 %v4229
      %4294 = vmatprep.subr.mxu0 0.0
      %4295 = vmatpush2.msra.mxu0 0.0
      %4296 = vmatprep.subr.mxu0 0.0
      %4297 = vmatpush2.msra.mxu0 0.0
      %4298 = vmatprep.subr.mxu0 0.0
      %4299 = vmatpush2.msra.mxu0 0.0
      %4300 = vmatprep.subr.mxu0 0.0
      %4301 = vmatpush2.msra.mxu0 0.0
      %4302 = vmatprep.subr.mxu0 0.0
      %4303 = vmatpush2.msra.mxu0 0.0
      %4304 = vmatprep.subr.mxu0 0.0
      %4305 = vmatpush2.msra.mxu0 0.0
      %4306 = vmatprep.subr.mxu0 0.0
      %4307 = vmatpush2.msra.mxu0 0.0
      %4308 = vmatprep.subr.mxu0 0.0
      %4309 = vmatpush2.msra.mxu0 0.0
      %4310 = vmatprep.subr.mxu0 0.0
      %4311 = vmatpush2.msra.mxu0 0.0
      %4312 = vmatprep.subr.mxu0 0.0
      %4313 = vmatpush2.msra.mxu0 0.0
      %4314 = vmatprep.subr.mxu0 0.0
      %4315 = vmatpush2.msra.mxu0 0.0
      %4316 = vmatprep.subr.mxu0 0.0
      %4317 = vmatpush2.msra.mxu0 0.0
      %4318 = vmatprep.subr.mxu0 0.0
      %4319 = vmatpush2.msra.mxu0 0.0
      %4320 = vmatprep.subr.mxu0 0.0
      %4321 = vmatpush2.msra.mxu0 0.0
      %4322 = vmatprep.subr.mxu0 0.0
      %4323 = vmatpush2.msra.mxu0 0.0
      %4324 = vmatprep.subr.mxu0 0.0
      %4325 = vmatpush2.msra.mxu0 0.0
      %4326 = vmatprep.mubr.f32.mxu0 0.0
      %4327 = vmatmul.mubr.f32.gmra.mxu0 %v4230
      %v4328 = vpop.f32.mrf.mxu0
      %v4329 = vadd.f32 0.0, %v4328
      %v4330 = vpop.f32.mrf.mxu0
      %4331 = vmatprep.mubr.f32.mxu0 0.0
      %4332 = vmatmul.mubr.f32.gmra.mxu0 %v4232
      %v4333 = vpop.f32.mrf.mxu0
      %v4334 = vadd.f32 0.0, %v4333
      %v4335 = vpop.f32.mrf.mxu0
      %4336 = vmatprep.mubr.f32.mxu0 0.0
      %4337 = vmatmul.mubr.f32.gmra.mxu0 %v4234
      %v4338 = vpop.f32.mrf.mxu0
      %v4339 = vadd.f32 0.0, %v4338
      %v4340 = vpop.f32.mrf.mxu0
      %4341 = vmatprep.mubr.f32.mxu0 0.0
      %4342 = vmatmul.mubr.f32.gmra.mxu0 %v4236
      %v4343 = vpop.f32.mrf.mxu0
      %v4344 = vadd.f32 0.0, %v4343
      %v4345 = vpop.f32.mrf.mxu0
      %4346 = vmatprep.mubr.f32.mxu0 0.0
      %4347 = vmatmul.mubr.f32.gmra.mxu0 %v4238
      %v4348 = vpop.f32.mrf.mxu0
      %v4349 = vadd.f32 0.0, %v4348
      %v4350 = vpop.f32.mrf.mxu0
      %4351 = vmatprep.mubr.f32.mxu0 0.0
      %4352 = vmatmul.mubr.f32.gmra.mxu0 %v4240
      %v4353 = vpop.f32.mrf.mxu0
      %v4354 = vadd.f32 0.0, %v4353
      %v4355 = vpop.f32.mrf.mxu0
      %4356 = vmatprep.mubr.f32.mxu0 0.0
      %4357 = vmatmul.mubr.f32.gmra.mxu0 %v4242
      %v4358 = vpop.f32.mrf.mxu0
      %v4359 = vadd.f32 0.0, %v4358
      %v4360 = vpop.f32.mrf.mxu0
      %4361 = vmatprep.mubr.f32.mxu0 0.0
      %4362 = vmatmul.mubr.f32.gmra.mxu0 %v4244
      %v4363 = vpop.f32.mrf.mxu0
      %v4364 = vadd.f32 0.0, %v4363
      %v4365 = vpop.f32.mrf.mxu0
      %4366 = vmatprep.mubr.f32.mxu0 0.0
      %4367 = vmatmul.mubr.f32.gmra.mxu0 %v4246
      %v4368 = vpop.f32.mrf.mxu0
      %v4369 = vadd.f32 0.0, %v4368
      %v4370 = vpop.f32.mrf.mxu0
      %4371 = vmatprep.mubr.f32.mxu0 0.0
      %4372 = vmatmul.mubr.f32.gmra.mxu0 %v4248
      %v4373 = vpop.f32.mrf.mxu0
      %v4374 = vadd.f32 0.0, %v4373
      %v4375 = vpop.f32.mrf.mxu0
      %4376 = vmatprep.mubr.f32.mxu0 0.0
      %4377 = vmatmul.mubr.f32.gmra.mxu0 %v4250
      %v4378 = vpop.f32.mrf.mxu0
      %v4379 = vadd.f32 0.0, %v4378
      %v4380 = vpop.f32.mrf.mxu0
      %4381 = vmatprep.mubr.f32.mxu0 0.0
      %4382 = vmatmul.mubr.f32.gmra.mxu0 %v4252
      %v4383 = vpop.f32.mrf.mxu0
      %v4384 = vadd.f32 0.0, %v4383
      %v4385 = vpop.f32.mrf.mxu0
      %4386 = vmatprep.mubr.f32.mxu0 0.0
      %4387 = vmatmul.mubr.f32.gmra.mxu0 %v4254
      %v4388 = vpop.f32.mrf.mxu0
      %v4389 = vadd.f32 0.0, %v4388
      %v4390 = vpop.f32.mrf.mxu0
      %4391 = vmatprep.mubr.f32.mxu0 0.0
      %4392 = vmatmul.mubr.f32.gmra.mxu0 %v4256
      %v4393 = vpop.f32.mrf.mxu0
      %v4394 = vadd.f32 0.0, %v4393
      %v4395 = vpop.f32.mrf.mxu0
      %4396 = vmatprep.mubr.f32.mxu0 0.0
      %4397 = vmatmul.mubr.f32.gmra.mxu0 %v4258
      %v4398 = vpop.f32.mrf.mxu0
      %v4399 = vadd.f32 0.0, %v4398
      %v4400 = vpop.f32.mrf.mxu0
      %4401 = vmatprep.mubr.f32.mxu0 0.0
      %4402 = vmatmul.mubr.f32.gmra.mxu0 %v4260
      %v4403 = vpop.f32.mrf.mxu0
      %v4404 = vadd.f32 0.0, %v4403
      %v4405 = vpop.f32.mrf.mxu0
      %4406 = vdwg.mxu0
      %v4407 = vadd.f32 %v4110, %v4329
      %v4408 = vadd.f32 %v4115, %v4334
      %v4409 = vadd.f32 %v4120, %v4339
      %v4410 = vadd.f32 %v4125, %v4344
      %v4411 = vadd.f32 %v4130, %v4349
      %v4412 = vadd.f32 %v4135, %v4354
      %v4413 = vadd.f32 %v4140, %v4359
      %v4414 = vadd.f32 %v4145, %v4364
      %v4415 = vadd.f32 %v4150, %v4369
      %v4416 = vadd.f32 %v4155, %v4374
      %v4417 = vadd.f32 %v4160, %v4379
      %v4418 = vadd.f32 %v4165, %v4384
      %v4419 = vadd.f32 %v4170, %v4389
      %v4420 = vadd.f32 %v4175, %v4394
      %v4421 = vadd.f32 %v4180, %v4399
      %v4422 = vadd.f32 %v4185, %v4404
      %s4423 = scalar_lea.vmem %s3, 24
      %v4424 = vld [vmem:[%s4423] sm:$0xff]
      %v4426 = vsel %vm315, %v3761, 0
      %v4429 = vsel %vm315, %v3762, 0
      %4431 = vmatprep.subr.mxu0 0.0
      %4432 = vmatpush1.msra.mxu0 0.0
      %4433 = vmatprep.subr.mxu0 0.0
      %4434 = vmatpush1.msra.mxu0 0.0
      %4435 = vmatprep.subr.mxu0 0.0
      %4436 = vmatpush1.msra.mxu0 0.0
      %4437 = vmatprep.subr.mxu0 0.0
      %4438 = vmatpush1.msra.mxu0 0.0
      %4439 = vmatprep.subr.mxu0 0.0
      %4440 = vmatpush1.msra.mxu0 0.0
      %4441 = vmatprep.subr.mxu0 0.0
      %4442 = vmatpush1.msra.mxu0 0.0
      %4443 = vmatprep.subr.mxu0 0.0
      %4444 = vmatpush1.msra.mxu0 0.0
      %4445 = vmatprep.subr.mxu0 0.0
      %4446 = vmatpush1.msra.mxu0 0.0
      %4447 = vmatprep.subr.mxu0 0.0
      %4448 = vmatpush1.msra.mxu0 0.0
      %4449 = vmatprep.subr.mxu0 0.0
      %4450 = vmatpush1.msra.mxu0 0.0
      %4451 = vmatprep.subr.mxu0 0.0
      %4452 = vmatpush1.msra.mxu0 0.0
      %4453 = vmatprep.subr.mxu0 0.0
      %4454 = vmatpush1.msra.mxu0 0.0
      %4455 = vmatprep.subr.mxu0 0.0
      %4456 = vmatpush1.msra.mxu0 0.0
      %4457 = vmatprep.subr.mxu0 0.0
      %4458 = vmatpush1.msra.mxu0 0.0
      %4459 = vmatprep.subr.mxu0 0.0
      %4460 = vmatpush1.msra.mxu0 0.0
      %4461 = vmatprep.subr.mxu0 0.0
      %4462 = vmatpush1.msra.mxu0 %v4424
      %4463 = vmatprep.subr.mxu0 0.0
      %4464 = vmatpush2.msra.mxu0 0.0
      %4465 = vmatprep.subr.mxu0 0.0
      %4466 = vmatpush2.msra.mxu0 0.0
      %4467 = vmatprep.subr.mxu0 0.0
      %4468 = vmatpush2.msra.mxu0 0.0
      %4469 = vmatprep.subr.mxu0 0.0
      %4470 = vmatpush2.msra.mxu0 0.0
      %4471 = vmatprep.subr.mxu0 0.0
      %4472 = vmatpush2.msra.mxu0 0.0
      %4473 = vmatprep.subr.mxu0 0.0
      %4474 = vmatpush2.msra.mxu0 0.0
      %4475 = vmatprep.subr.mxu0 0.0
      %4476 = vmatpush2.msra.mxu0 0.0
      %4477 = vmatprep.subr.mxu0 0.0
      %4478 = vmatpush2.msra.mxu0 0.0
      %4479 = vmatprep.subr.mxu0 0.0
      %4480 = vmatpush2.msra.mxu0 0.0
      %4481 = vmatprep.subr.mxu0 0.0
      %4482 = vmatpush2.msra.mxu0 0.0
      %4483 = vmatprep.subr.mxu0 0.0
      %4484 = vmatpush2.msra.mxu0 0.0
      %4485 = vmatprep.subr.mxu0 0.0
      %4486 = vmatpush2.msra.mxu0 0.0
      %4487 = vmatprep.subr.mxu0 0.0
      %4488 = vmatpush2.msra.mxu0 0.0
      %4489 = vmatprep.subr.mxu0 0.0
      %4490 = vmatpush2.msra.mxu0 0.0
      %4491 = vmatprep.subr.mxu0 0.0
      %4492 = vmatpush2.msra.mxu0 0.0
      %4493 = vmatprep.subr.mxu0 0.0
      %4494 = vmatpush2.msra.mxu0 0.0
      %4495 = vmatprep.mubr.f32.mxu0 0.0
      %4496 = vmatmul.mubr.f32.gmra.mxu0 %v4015
      %v4497 = vpop.f32.mrf.mxu0
      %v4498 = vadd.f32 0.0, %v4497
      %v4499 = vpop.f32.mrf.mxu0
      %4500 = vmatprep.mubr.f32.mxu0 0.0
      %4501 = vmatmul.mubr.f32.gmra.mxu0 %v4017
      %v4502 = vpop.f32.mrf.mxu0
      %v4503 = vadd.f32 0.0, %v4502
      %v4504 = vpop.f32.mrf.mxu0
      %4505 = vmatprep.mubr.f32.mxu0 0.0
      %4506 = vmatmul.mubr.f32.gmra.mxu0 %v4019
      %v4507 = vpop.f32.mrf.mxu0
      %v4508 = vadd.f32 0.0, %v4507
      %v4509 = vpop.f32.mrf.mxu0
      %4510 = vmatprep.mubr.f32.mxu0 0.0
      %4511 = vmatmul.mubr.f32.gmra.mxu0 %v4021
      %v4512 = vpop.f32.mrf.mxu0
      %v4513 = vadd.f32 0.0, %v4512
      %v4514 = vpop.f32.mrf.mxu0
      %4515 = vmatprep.mubr.f32.mxu0 0.0
      %4516 = vmatmul.mubr.f32.gmra.mxu0 %v4023
      %v4517 = vpop.f32.mrf.mxu0
      %v4518 = vadd.f32 0.0, %v4517
      %v4519 = vpop.f32.mrf.mxu0
      %4520 = vmatprep.mubr.f32.mxu0 0.0
      %4521 = vmatmul.mubr.f32.gmra.mxu0 %v4025
      %v4522 = vpop.f32.mrf.mxu0
      %v4523 = vadd.f32 0.0, %v4522
      %v4524 = vpop.f32.mrf.mxu0
      %4525 = vmatprep.mubr.f32.mxu0 0.0
      %4526 = vmatmul.mubr.f32.gmra.mxu0 %v4027
      %v4527 = vpop.f32.mrf.mxu0
      %v4528 = vadd.f32 0.0, %v4527
      %v4529 = vpop.f32.mrf.mxu0
      %4530 = vmatprep.mubr.f32.mxu0 0.0
      %4531 = vmatmul.mubr.f32.gmra.mxu0 %v4029
      %v4532 = vpop.f32.mrf.mxu0
      %v4533 = vadd.f32 0.0, %v4532
      %v4534 = vpop.f32.mrf.mxu0
      %4535 = vmatprep.mubr.f32.mxu0 0.0
      %4536 = vmatmul.mubr.f32.gmra.mxu0 %v4031
      %v4537 = vpop.f32.mrf.mxu0
      %v4538 = vadd.f32 0.0, %v4537
      %v4539 = vpop.f32.mrf.mxu0
      %4540 = vmatprep.mubr.f32.mxu0 0.0
      %4541 = vmatmul.mubr.f32.gmra.mxu0 %v4033
      %v4542 = vpop.f32.mrf.mxu0
      %v4543 = vadd.f32 0.0, %v4542
      %v4544 = vpop.f32.mrf.mxu0
      %4545 = vmatprep.mubr.f32.mxu0 0.0
      %4546 = vmatmul.mubr.f32.gmra.mxu0 %v4035
      %v4547 = vpop.f32.mrf.mxu0
      %v4548 = vadd.f32 0.0, %v4547
      %v4549 = vpop.f32.mrf.mxu0
      %4550 = vmatprep.mubr.f32.mxu0 0.0
      %4551 = vmatmul.mubr.f32.gmra.mxu0 %v4037
      %v4552 = vpop.f32.mrf.mxu0
      %v4553 = vadd.f32 0.0, %v4552
      %v4554 = vpop.f32.mrf.mxu0
      %4555 = vmatprep.mubr.f32.mxu0 0.0
      %4556 = vmatmul.mubr.f32.gmra.mxu0 %v4039
      %v4557 = vpop.f32.mrf.mxu0
      %v4558 = vadd.f32 0.0, %v4557
      %v4559 = vpop.f32.mrf.mxu0
      %4560 = vmatprep.mubr.f32.mxu0 0.0
      %4561 = vmatmul.mubr.f32.gmra.mxu0 %v4041
      %v4562 = vpop.f32.mrf.mxu0
      %v4563 = vadd.f32 0.0, %v4562
      %v4564 = vpop.f32.mrf.mxu0
      %4565 = vmatprep.mubr.f32.mxu0 0.0
      %4566 = vmatmul.mubr.f32.gmra.mxu0 %v4426
      %v4567 = vpop.f32.mrf.mxu0
      %v4568 = vadd.f32 0.0, %v4567
      %v4569 = vpop.f32.mrf.mxu0
      %4570 = vmatprep.mubr.f32.mxu0 0.0
      %4571 = vmatmul.mubr.f32.gmra.mxu0 %v4429
      %v4572 = vpop.f32.mrf.mxu0
      %v4573 = vadd.f32 0.0, %v4572
      %v4574 = vpop.f32.mrf.mxu0
      %4575 = vdwg.mxu0
      %v4576 = vadd.f32 %v4407, %v4498
      %v4577 = vadd.f32 %v4408, %v4503
      %v4578 = vadd.f32 %v4409, %v4508
      %v4579 = vadd.f32 %v4410, %v4513
      %v4580 = vadd.f32 %v4411, %v4518
      %v4581 = vadd.f32 %v4412, %v4523
      %v4582 = vadd.f32 %v4413, %v4528
      %v4583 = vadd.f32 %v4414, %v4533
      %v4584 = vadd.f32 %v4415, %v4538
      %v4585 = vadd.f32 %v4416, %v4543
      %v4586 = vadd.f32 %v4417, %v4548
      %v4587 = vadd.f32 %v4418, %v4553
      %v4588 = vadd.f32 %v4419, %v4558
      %v4589 = vadd.f32 %v4420, %v4563
      %v4590 = vadd.f32 %v4421, %v4568
      %v4591 = vadd.f32 %v4422, %v4573
      %v4593 = vrot.slane %v3761, 1
      %v4594 = vrot.slane %v3762, 1
      %v4595 = vsel %vm3792, %v4593, %v4594
      %v4596 = vrot.slane %v3763, 1
      %v4597 = vsel %vm3792, %v4594, %v4596
      %v4598 = vld [vmem:[%s4423 + $0x8] sm:$0xff]
      %v4599 = vsel %vm315, %v4595, 0
      %v4601 = vsel %vm315, %v4597, 0
      %4603 = vmatprep.subr.mxu0 0.0
      %4604 = vmatpush1.msra.mxu0 0.0
      %4605 = vmatprep.subr.mxu0 0.0
      %4606 = vmatpush1.msra.mxu0 0.0
      %4607 = vmatprep.subr.mxu0 0.0
      %4608 = vmatpush1.msra.mxu0 0.0
      %4609 = vmatprep.subr.mxu0 0.0
      %4610 = vmatpush1.msra.mxu0 0.0
      %4611 = vmatprep.subr.mxu0 0.0
      %4612 = vmatpush1.msra.mxu0 0.0
      %4613 = vmatprep.subr.mxu0 0.0
      %4614 = vmatpush1.msra.mxu0 0.0
      %4615 = vmatprep.subr.mxu0 0.0
      %4616 = vmatpush1.msra.mxu0 0.0
      %4617 = vmatprep.subr.mxu0 0.0
      %4618 = vmatpush1.msra.mxu0 0.0
      %4619 = vmatprep.subr.mxu0 0.0
      %4620 = vmatpush1.msra.mxu0 0.0
      %4621 = vmatprep.subr.mxu0 0.0
      %4622 = vmatpush1.msra.mxu0 0.0
      %4623 = vmatprep.subr.mxu0 0.0
      %4624 = vmatpush1.msra.mxu0 0.0
      %4625 = vmatprep.subr.mxu0 0.0
      %4626 = vmatpush1.msra.mxu0 0.0
      %4627 = vmatprep.subr.mxu0 0.0
      %4628 = vmatpush1.msra.mxu0 0.0
      %4629 = vmatprep.subr.mxu0 0.0
      %4630 = vmatpush1.msra.mxu0 0.0
      %4631 = vmatprep.subr.mxu0 0.0
      %4632 = vmatpush1.msra.mxu0 0.0
      %4633 = vmatprep.subr.mxu0 0.0
      %4634 = vmatpush1.msra.mxu0 %v4598
      %4635 = vmatprep.subr.mxu0 0.0
      %4636 = vmatpush2.msra.mxu0 0.0
      %4637 = vmatprep.subr.mxu0 0.0
      %4638 = vmatpush2.msra.mxu0 0.0
      %4639 = vmatprep.subr.mxu0 0.0
      %4640 = vmatpush2.msra.mxu0 0.0
      %4641 = vmatprep.subr.mxu0 0.0
      %4642 = vmatpush2.msra.mxu0 0.0
      %4643 = vmatprep.subr.mxu0 0.0
      %4644 = vmatpush2.msra.mxu0 0.0
      %4645 = vmatprep.subr.mxu0 0.0
      %4646 = vmatpush2.msra.mxu0 0.0
      %4647 = vmatprep.subr.mxu0 0.0
      %4648 = vmatpush2.msra.mxu0 0.0
      %4649 = vmatprep.subr.mxu0 0.0
      %4650 = vmatpush2.msra.mxu0 0.0
      %4651 = vmatprep.subr.mxu0 0.0
      %4652 = vmatpush2.msra.mxu0 0.0
      %4653 = vmatprep.subr.mxu0 0.0
      %4654 = vmatpush2.msra.mxu0 0.0
      %4655 = vmatprep.subr.mxu0 0.0
      %4656 = vmatpush2.msra.mxu0 0.0
      %4657 = vmatprep.subr.mxu0 0.0
      %4658 = vmatpush2.msra.mxu0 0.0
      %4659 = vmatprep.subr.mxu0 0.0
      %4660 = vmatpush2.msra.mxu0 0.0
      %4661 = vmatprep.subr.mxu0 0.0
      %4662 = vmatpush2.msra.mxu0 0.0
      %4663 = vmatprep.subr.mxu0 0.0
      %4664 = vmatpush2.msra.mxu0 0.0
      %4665 = vmatprep.subr.mxu0 0.0
      %4666 = vmatpush2.msra.mxu0 0.0
      %4667 = vmatprep.mubr.f32.mxu0 0.0
      %4668 = vmatmul.mubr.f32.gmra.mxu0 %v3838
      %v4669 = vpop.f32.mrf.mxu0
      %v4670 = vadd.f32 0.0, %v4669
      %v4671 = vpop.f32.mrf.mxu0
      %4672 = vmatprep.mubr.f32.mxu0 0.0
      %4673 = vmatmul.mubr.f32.gmra.mxu0 %v3840
      %v4674 = vpop.f32.mrf.mxu0
      %v4675 = vadd.f32 0.0, %v4674
      %v4676 = vpop.f32.mrf.mxu0
      %4677 = vmatprep.mubr.f32.mxu0 0.0
      %4678 = vmatmul.mubr.f32.gmra.mxu0 %v3842
      %v4679 = vpop.f32.mrf.mxu0
      %v4680 = vadd.f32 0.0, %v4679
      %v4681 = vpop.f32.mrf.mxu0
      %4682 = vmatprep.mubr.f32.mxu0 0.0
      %4683 = vmatmul.mubr.f32.gmra.mxu0 %v3844
      %v4684 = vpop.f32.mrf.mxu0
      %v4685 = vadd.f32 0.0, %v4684
      %v4686 = vpop.f32.mrf.mxu0
      %4687 = vmatprep.mubr.f32.mxu0 0.0
      %4688 = vmatmul.mubr.f32.gmra.mxu0 %v3846
      %v4689 = vpop.f32.mrf.mxu0
      %v4690 = vadd.f32 0.0, %v4689
      %v4691 = vpop.f32.mrf.mxu0
      %4692 = vmatprep.mubr.f32.mxu0 0.0
      %4693 = vmatmul.mubr.f32.gmra.mxu0 %v3848
      %v4694 = vpop.f32.mrf.mxu0
      %v4695 = vadd.f32 0.0, %v4694
      %v4696 = vpop.f32.mrf.mxu0
      %4697 = vmatprep.mubr.f32.mxu0 0.0
      %4698 = vmatmul.mubr.f32.gmra.mxu0 %v3850
      %v4699 = vpop.f32.mrf.mxu0
      %v4700 = vadd.f32 0.0, %v4699
      %v4701 = vpop.f32.mrf.mxu0
      %4702 = vmatprep.mubr.f32.mxu0 0.0
      %4703 = vmatmul.mubr.f32.gmra.mxu0 %v3852
      %v4704 = vpop.f32.mrf.mxu0
      %v4705 = vadd.f32 0.0, %v4704
      %v4706 = vpop.f32.mrf.mxu0
      %4707 = vmatprep.mubr.f32.mxu0 0.0
      %4708 = vmatmul.mubr.f32.gmra.mxu0 %v3854
      %v4709 = vpop.f32.mrf.mxu0
      %v4710 = vadd.f32 0.0, %v4709
      %v4711 = vpop.f32.mrf.mxu0
      %4712 = vmatprep.mubr.f32.mxu0 0.0
      %4713 = vmatmul.mubr.f32.gmra.mxu0 %v3856
      %v4714 = vpop.f32.mrf.mxu0
      %v4715 = vadd.f32 0.0, %v4714
      %v4716 = vpop.f32.mrf.mxu0
      %4717 = vmatprep.mubr.f32.mxu0 0.0
      %4718 = vmatmul.mubr.f32.gmra.mxu0 %v3858
      %v4719 = vpop.f32.mrf.mxu0
      %v4720 = vadd.f32 0.0, %v4719
      %v4721 = vpop.f32.mrf.mxu0
      %4722 = vmatprep.mubr.f32.mxu0 0.0
      %4723 = vmatmul.mubr.f32.gmra.mxu0 %v3860
      %v4724 = vpop.f32.mrf.mxu0
      %v4725 = vadd.f32 0.0, %v4724
      %v4726 = vpop.f32.mrf.mxu0
      %4727 = vmatprep.mubr.f32.mxu0 0.0
      %4728 = vmatmul.mubr.f32.gmra.mxu0 %v3862
      %v4729 = vpop.f32.mrf.mxu0
      %v4730 = vadd.f32 0.0, %v4729
      %v4731 = vpop.f32.mrf.mxu0
      %4732 = vmatprep.mubr.f32.mxu0 0.0
      %4733 = vmatmul.mubr.f32.gmra.mxu0 %v3864
      %v4734 = vpop.f32.mrf.mxu0
      %v4735 = vadd.f32 0.0, %v4734
      %v4736 = vpop.f32.mrf.mxu0
      %4737 = vmatprep.mubr.f32.mxu0 0.0
      %4738 = vmatmul.mubr.f32.gmra.mxu0 %v4599
      %v4739 = vpop.f32.mrf.mxu0
      %v4740 = vadd.f32 0.0, %v4739
      %v4741 = vpop.f32.mrf.mxu0
      %4742 = vmatprep.mubr.f32.mxu0 0.0
      %4743 = vmatmul.mubr.f32.gmra.mxu0 %v4601
      %v4744 = vpop.f32.mrf.mxu0
      %v4745 = vadd.f32 0.0, %v4744
      %v4746 = vpop.f32.mrf.mxu0
      %4747 = vdwg.mxu0
      %v4748 = vadd.f32 %v4576, %v4670
      %v4749 = vadd.f32 %v4577, %v4675
      %v4750 = vadd.f32 %v4578, %v4680
      %v4751 = vadd.f32 %v4579, %v4685
      %v4752 = vadd.f32 %v4580, %v4690
      %v4753 = vadd.f32 %v4581, %v4695
      %v4754 = vadd.f32 %v4582, %v4700
      %v4755 = vadd.f32 %v4583, %v4705
      %v4756 = vadd.f32 %v4584, %v4710
      %v4757 = vadd.f32 %v4585, %v4715
      %v4758 = vadd.f32 %v4586, %v4720
      %v4759 = vadd.f32 %v4587, %v4725
      %v4760 = vadd.f32 %v4588, %v4730
      %v4761 = vadd.f32 %v4589, %v4735
      %v4762 = vadd.f32 %v4590, %v4740
      %v4763 = vadd.f32 %v4591, %v4745
      %v4764 = vrot.slane %v3761, 2
      %v4765 = vrot.slane %v3762, 2
      %v4766 = vsel %vm4188, %v4764, %v4765
      %v4767 = vrot.slane %v3763, 2
      %v4768 = vsel %vm4188, %v4765, %v4767
      %v4769 = vld [vmem:[%s4423 + $0x10] sm:$0xff]
      %v4770 = vsel %vm315, %v4766, 0
      %v4772 = vsel %vm315, %v4768, 0
      %4774 = vmatprep.subr.mxu0 0.0
      %4775 = vmatpush1.msra.mxu0 0.0
      %4776 = vmatprep.subr.mxu0 0.0
      %4777 = vmatpush1.msra.mxu0 0.0
      %4778 = vmatprep.subr.mxu0 0.0
      %4779 = vmatpush1.msra.mxu0 0.0
      %4780 = vmatprep.subr.mxu0 0.0
      %4781 = vmatpush1.msra.mxu0 0.0
      %4782 = vmatprep.subr.mxu0 0.0
      %4783 = vmatpush1.msra.mxu0 0.0
      %4784 = vmatprep.subr.mxu0 0.0
      %4785 = vmatpush1.msra.mxu0 0.0
      %4786 = vmatprep.subr.mxu0 0.0
      %4787 = vmatpush1.msra.mxu0 0.0
      %4788 = vmatprep.subr.mxu0 0.0
      %4789 = vmatpush1.msra.mxu0 0.0
      %4790 = vmatprep.subr.mxu0 0.0
      %4791 = vmatpush1.msra.mxu0 0.0
      %4792 = vmatprep.subr.mxu0 0.0
      %4793 = vmatpush1.msra.mxu0 0.0
      %4794 = vmatprep.subr.mxu0 0.0
      %4795 = vmatpush1.msra.mxu0 0.0
      %4796 = vmatprep.subr.mxu0 0.0
      %4797 = vmatpush1.msra.mxu0 0.0
      %4798 = vmatprep.subr.mxu0 0.0
      %4799 = vmatpush1.msra.mxu0 0.0
      %4800 = vmatprep.subr.mxu0 0.0
      %4801 = vmatpush1.msra.mxu0 0.0
      %4802 = vmatprep.subr.mxu0 0.0
      %4803 = vmatpush1.msra.mxu0 0.0
      %4804 = vmatprep.subr.mxu0 0.0
      %4805 = vmatpush1.msra.mxu0 %v4769
      %4806 = vmatprep.subr.mxu0 0.0
      %4807 = vmatpush2.msra.mxu0 0.0
      %4808 = vmatprep.subr.mxu0 0.0
      %4809 = vmatpush2.msra.mxu0 0.0
      %4810 = vmatprep.subr.mxu0 0.0
      %4811 = vmatpush2.msra.mxu0 0.0
      %4812 = vmatprep.subr.mxu0 0.0
      %4813 = vmatpush2.msra.mxu0 0.0
      %4814 = vmatprep.subr.mxu0 0.0
      %4815 = vmatpush2.msra.mxu0 0.0
      %4816 = vmatprep.subr.mxu0 0.0
      %4817 = vmatpush2.msra.mxu0 0.0
      %4818 = vmatprep.subr.mxu0 0.0
      %4819 = vmatpush2.msra.mxu0 0.0
      %4820 = vmatprep.subr.mxu0 0.0
      %4821 = vmatpush2.msra.mxu0 0.0
      %4822 = vmatprep.subr.mxu0 0.0
      %4823 = vmatpush2.msra.mxu0 0.0
      %4824 = vmatprep.subr.mxu0 0.0
      %4825 = vmatpush2.msra.mxu0 0.0
      %4826 = vmatprep.subr.mxu0 0.0
      %4827 = vmatpush2.msra.mxu0 0.0
      %4828 = vmatprep.subr.mxu0 0.0
      %4829 = vmatpush2.msra.mxu0 0.0
      %4830 = vmatprep.subr.mxu0 0.0
      %4831 = vmatpush2.msra.mxu0 0.0
      %4832 = vmatprep.subr.mxu0 0.0
      %4833 = vmatpush2.msra.mxu0 0.0
      %4834 = vmatprep.subr.mxu0 0.0
      %4835 = vmatpush2.msra.mxu0 0.0
      %4836 = vmatprep.subr.mxu0 0.0
      %4837 = vmatpush2.msra.mxu0 0.0
      %4838 = vmatprep.mubr.f32.mxu0 0.0
      %4839 = vmatmul.mubr.f32.gmra.mxu0 %v4234
      %v4840 = vpop.f32.mrf.mxu0
      %v4841 = vadd.f32 0.0, %v4840
      %v4842 = vpop.f32.mrf.mxu0
      %4843 = vmatprep.mubr.f32.mxu0 0.0
      %4844 = vmatmul.mubr.f32.gmra.mxu0 %v4236
      %v4845 = vpop.f32.mrf.mxu0
      %v4846 = vadd.f32 0.0, %v4845
      %v4847 = vpop.f32.mrf.mxu0
      %4848 = vmatprep.mubr.f32.mxu0 0.0
      %4849 = vmatmul.mubr.f32.gmra.mxu0 %v4238
      %v4850 = vpop.f32.mrf.mxu0
      %v4851 = vadd.f32 0.0, %v4850
      %v4852 = vpop.f32.mrf.mxu0
      %4853 = vmatprep.mubr.f32.mxu0 0.0
      %4854 = vmatmul.mubr.f32.gmra.mxu0 %v4240
      %v4855 = vpop.f32.mrf.mxu0
      %v4856 = vadd.f32 0.0, %v4855
      %v4857 = vpop.f32.mrf.mxu0
      %4858 = vmatprep.mubr.f32.mxu0 0.0
      %4859 = vmatmul.mubr.f32.gmra.mxu0 %v4242
      %v4860 = vpop.f32.mrf.mxu0
      %v4861 = vadd.f32 0.0, %v4860
      %v4862 = vpop.f32.mrf.mxu0
      %4863 = vmatprep.mubr.f32.mxu0 0.0
      %4864 = vmatmul.mubr.f32.gmra.mxu0 %v4244
      %v4865 = vpop.f32.mrf.mxu0
      %v4866 = vadd.f32 0.0, %v4865
      %v4867 = vpop.f32.mrf.mxu0
      %4868 = vmatprep.mubr.f32.mxu0 0.0
      %4869 = vmatmul.mubr.f32.gmra.mxu0 %v4246
      %v4870 = vpop.f32.mrf.mxu0
      %v4871 = vadd.f32 0.0, %v4870
      %v4872 = vpop.f32.mrf.mxu0
      %4873 = vmatprep.mubr.f32.mxu0 0.0
      %4874 = vmatmul.mubr.f32.gmra.mxu0 %v4248
      %v4875 = vpop.f32.mrf.mxu0
      %v4876 = vadd.f32 0.0, %v4875
      %v4877 = vpop.f32.mrf.mxu0
      %4878 = vmatprep.mubr.f32.mxu0 0.0
      %4879 = vmatmul.mubr.f32.gmra.mxu0 %v4250
      %v4880 = vpop.f32.mrf.mxu0
      %v4881 = vadd.f32 0.0, %v4880
      %v4882 = vpop.f32.mrf.mxu0
      %4883 = vmatprep.mubr.f32.mxu0 0.0
      %4884 = vmatmul.mubr.f32.gmra.mxu0 %v4252
      %v4885 = vpop.f32.mrf.mxu0
      %v4886 = vadd.f32 0.0, %v4885
      %v4887 = vpop.f32.mrf.mxu0
      %4888 = vmatprep.mubr.f32.mxu0 0.0
      %4889 = vmatmul.mubr.f32.gmra.mxu0 %v4254
      %v4890 = vpop.f32.mrf.mxu0
      %v4891 = vadd.f32 0.0, %v4890
      %v4892 = vpop.f32.mrf.mxu0
      %4893 = vmatprep.mubr.f32.mxu0 0.0
      %4894 = vmatmul.mubr.f32.gmra.mxu0 %v4256
      %v4895 = vpop.f32.mrf.mxu0
      %v4896 = vadd.f32 0.0, %v4895
      %v4897 = vpop.f32.mrf.mxu0
      %4898 = vmatprep.mubr.f32.mxu0 0.0
      %4899 = vmatmul.mubr.f32.gmra.mxu0 %v4258
      %v4900 = vpop.f32.mrf.mxu0
      %v4901 = vadd.f32 0.0, %v4900
      %v4902 = vpop.f32.mrf.mxu0
      %4903 = vmatprep.mubr.f32.mxu0 0.0
      %4904 = vmatmul.mubr.f32.gmra.mxu0 %v4260
      %v4905 = vpop.f32.mrf.mxu0
      %v4906 = vadd.f32 0.0, %v4905
      %v4907 = vpop.f32.mrf.mxu0
      %4908 = vmatprep.mubr.f32.mxu0 0.0
      %4909 = vmatmul.mubr.f32.gmra.mxu0 %v4770
      %v4910 = vpop.f32.mrf.mxu0
      %v4911 = vadd.f32 0.0, %v4910
      %v4912 = vpop.f32.mrf.mxu0
      %4913 = vmatprep.mubr.f32.mxu0 0.0
      %4914 = vmatmul.mubr.f32.gmra.mxu0 %v4772
      %v4915 = vpop.f32.mrf.mxu0
      %v4916 = vadd.f32 0.0, %v4915
      %v4917 = vpop.f32.mrf.mxu0
      %4918 = vdwg.mxu0
      %v4919 = vadd.f32 %v4748, %v4841
      %v4920 = vadd.f32 %v4749, %v4846
      %v4921 = vadd.f32 %v4750, %v4851
      %v4922 = vadd.f32 %v4751, %v4856
      %v4923 = vadd.f32 %v4752, %v4861
      %v4924 = vadd.f32 %v4753, %v4866
      %v4925 = vadd.f32 %v4754, %v4871
      %v4926 = vadd.f32 %v4755, %v4876
      %v4927 = vadd.f32 %v4756, %v4881
      %v4928 = vadd.f32 %v4757, %v4886
      %v4929 = vadd.f32 %v4758, %v4891
      %v4930 = vadd.f32 %v4759, %v4896
      %v4931 = vadd.f32 %v4760, %v4901
      %v4932 = vadd.f32 %v4761, %v4906
      %v4933 = vadd.f32 %v4762, %v4911
      %v4934 = vadd.f32 %v4763, %v4916
      %s4935 = scalar_lea.vmem %s3, 48
      %v4936 = vld [vmem:[%s4935] sm:$0xff]
      %v4938 = vsel %vm315, %v3764, 0
      %v4941 = vsel %vm315, %v3765, 0
      %4943 = vmatprep.subr.mxu0 0.0
      %4944 = vmatpush1.msra.mxu0 0.0
      %4945 = vmatprep.subr.mxu0 0.0
      %4946 = vmatpush1.msra.mxu0 0.0
      %4947 = vmatprep.subr.mxu0 0.0
      %4948 = vmatpush1.msra.mxu0 0.0
      %4949 = vmatprep.subr.mxu0 0.0
      %4950 = vmatpush1.msra.mxu0 0.0
      %4951 = vmatprep.subr.mxu0 0.0
      %4952 = vmatpush1.msra.mxu0 0.0
      %4953 = vmatprep.subr.mxu0 0.0
      %4954 = vmatpush1.msra.mxu0 0.0
      %4955 = vmatprep.subr.mxu0 0.0
      %4956 = vmatpush1.msra.mxu0 0.0
      %4957 = vmatprep.subr.mxu0 0.0
      %4958 = vmatpush1.msra.mxu0 0.0
      %4959 = vmatprep.subr.mxu0 0.0
      %4960 = vmatpush1.msra.mxu0 0.0
      %4961 = vmatprep.subr.mxu0 0.0
      %4962 = vmatpush1.msra.mxu0 0.0
      %4963 = vmatprep.subr.mxu0 0.0
      %4964 = vmatpush1.msra.mxu0 0.0
      %4965 = vmatprep.subr.mxu0 0.0
      %4966 = vmatpush1.msra.mxu0 0.0
      %4967 = vmatprep.subr.mxu0 0.0
      %4968 = vmatpush1.msra.mxu0 0.0
      %4969 = vmatprep.subr.mxu0 0.0
      %4970 = vmatpush1.msra.mxu0 0.0
      %4971 = vmatprep.subr.mxu0 0.0
      %4972 = vmatpush1.msra.mxu0 0.0
      %4973 = vmatprep.subr.mxu0 0.0
      %4974 = vmatpush1.msra.mxu0 %v4936
      %4975 = vmatprep.subr.mxu0 0.0
      %4976 = vmatpush2.msra.mxu0 0.0
      %4977 = vmatprep.subr.mxu0 0.0
      %4978 = vmatpush2.msra.mxu0 0.0
      %4979 = vmatprep.subr.mxu0 0.0
      %4980 = vmatpush2.msra.mxu0 0.0
      %4981 = vmatprep.subr.mxu0 0.0
      %4982 = vmatpush2.msra.mxu0 0.0
      %4983 = vmatprep.subr.mxu0 0.0
      %4984 = vmatpush2.msra.mxu0 0.0
      %4985 = vmatprep.subr.mxu0 0.0
      %4986 = vmatpush2.msra.mxu0 0.0
      %4987 = vmatprep.subr.mxu0 0.0
      %4988 = vmatpush2.msra.mxu0 0.0
      %4989 = vmatprep.subr.mxu0 0.0
      %4990 = vmatpush2.msra.mxu0 0.0
      %4991 = vmatprep.subr.mxu0 0.0
      %4992 = vmatpush2.msra.mxu0 0.0
      %4993 = vmatprep.subr.mxu0 0.0
      %4994 = vmatpush2.msra.mxu0 0.0
      %4995 = vmatprep.subr.mxu0 0.0
      %4996 = vmatpush2.msra.mxu0 0.0
      %4997 = vmatprep.subr.mxu0 0.0
      %4998 = vmatpush2.msra.mxu0 0.0
      %4999 = vmatprep.subr.mxu0 0.0
      %5000 = vmatpush2.msra.mxu0 0.0
      %5001 = vmatprep.subr.mxu0 0.0
      %5002 = vmatpush2.msra.mxu0 0.0
      %5003 = vmatprep.subr.mxu0 0.0
      %5004 = vmatpush2.msra.mxu0 0.0
      %5005 = vmatprep.subr.mxu0 0.0
      %5006 = vmatpush2.msra.mxu0 0.0
      %5007 = vmatprep.mubr.f32.mxu0 0.0
      %5008 = vmatmul.mubr.f32.gmra.mxu0 %v4019
      %v5009 = vpop.f32.mrf.mxu0
      %v5010 = vadd.f32 0.0, %v5009
      %v5011 = vpop.f32.mrf.mxu0
      %5012 = vmatprep.mubr.f32.mxu0 0.0
      %5013 = vmatmul.mubr.f32.gmra.mxu0 %v4021
      %v5014 = vpop.f32.mrf.mxu0
      %v5015 = vadd.f32 0.0, %v5014
      %v5016 = vpop.f32.mrf.mxu0
      %5017 = vmatprep.mubr.f32.mxu0 0.0
      %5018 = vmatmul.mubr.f32.gmra.mxu0 %v4023
      %v5019 = vpop.f32.mrf.mxu0
      %v5020 = vadd.f32 0.0, %v5019
      %v5021 = vpop.f32.mrf.mxu0
      %5022 = vmatprep.mubr.f32.mxu0 0.0
      %5023 = vmatmul.mubr.f32.gmra.mxu0 %v4025
      %v5024 = vpop.f32.mrf.mxu0
      %v5025 = vadd.f32 0.0, %v5024
      %v5026 = vpop.f32.mrf.mxu0
      %5027 = vmatprep.mubr.f32.mxu0 0.0
      %5028 = vmatmul.mubr.f32.gmra.mxu0 %v4027
      %v5029 = vpop.f32.mrf.mxu0
      %v5030 = vadd.f32 0.0, %v5029
      %v5031 = vpop.f32.mrf.mxu0
      %5032 = vmatprep.mubr.f32.mxu0 0.0
      %5033 = vmatmul.mubr.f32.gmra.mxu0 %v4029
      %v5034 = vpop.f32.mrf.mxu0
      %v5035 = vadd.f32 0.0, %v5034
      %v5036 = vpop.f32.mrf.mxu0
      %5037 = vmatprep.mubr.f32.mxu0 0.0
      %5038 = vmatmul.mubr.f32.gmra.mxu0 %v4031
      %v5039 = vpop.f32.mrf.mxu0
      %v5040 = vadd.f32 0.0, %v5039
      %v5041 = vpop.f32.mrf.mxu0
      %5042 = vmatprep.mubr.f32.mxu0 0.0
      %5043 = vmatmul.mubr.f32.gmra.mxu0 %v4033
      %v5044 = vpop.f32.mrf.mxu0
      %v5045 = vadd.f32 0.0, %v5044
      %v5046 = vpop.f32.mrf.mxu0
      %5047 = vmatprep.mubr.f32.mxu0 0.0
      %5048 = vmatmul.mubr.f32.gmra.mxu0 %v4035
      %v5049 = vpop.f32.mrf.mxu0
      %v5050 = vadd.f32 0.0, %v5049
      %v5051 = vpop.f32.mrf.mxu0
      %5052 = vmatprep.mubr.f32.mxu0 0.0
      %5053 = vmatmul.mubr.f32.gmra.mxu0 %v4037
      %v5054 = vpop.f32.mrf.mxu0
      %v5055 = vadd.f32 0.0, %v5054
      %v5056 = vpop.f32.mrf.mxu0
      %5057 = vmatprep.mubr.f32.mxu0 0.0
      %5058 = vmatmul.mubr.f32.gmra.mxu0 %v4039
      %v5059 = vpop.f32.mrf.mxu0
      %v5060 = vadd.f32 0.0, %v5059
      %v5061 = vpop.f32.mrf.mxu0
      %5062 = vmatprep.mubr.f32.mxu0 0.0
      %5063 = vmatmul.mubr.f32.gmra.mxu0 %v4041
      %v5064 = vpop.f32.mrf.mxu0
      %v5065 = vadd.f32 0.0, %v5064
      %v5066 = vpop.f32.mrf.mxu0
      %5067 = vmatprep.mubr.f32.mxu0 0.0
      %5068 = vmatmul.mubr.f32.gmra.mxu0 %v4426
      %v5069 = vpop.f32.mrf.mxu0
      %v5070 = vadd.f32 0.0, %v5069
      %v5071 = vpop.f32.mrf.mxu0
      %5072 = vmatprep.mubr.f32.mxu0 0.0
      %5073 = vmatmul.mubr.f32.gmra.mxu0 %v4429
      %v5074 = vpop.f32.mrf.mxu0
      %v5075 = vadd.f32 0.0, %v5074
      %v5076 = vpop.f32.mrf.mxu0
      %5077 = vmatprep.mubr.f32.mxu0 0.0
      %5078 = vmatmul.mubr.f32.gmra.mxu0 %v4938
      %v5079 = vpop.f32.mrf.mxu0
      %v5080 = vadd.f32 0.0, %v5079
      %v5081 = vpop.f32.mrf.mxu0
      %5082 = vmatprep.mubr.f32.mxu0 0.0
      %5083 = vmatmul.mubr.f32.gmra.mxu0 %v4941
      %v5084 = vpop.f32.mrf.mxu0
      %v5085 = vadd.f32 0.0, %v5084
      %v5086 = vpop.f32.mrf.mxu0
      %5087 = vdwg.mxu0
      %v5088 = vadd.f32 %v4919, %v5010
      %v5089 = vadd.f32 %v4920, %v5015
      %v5090 = vadd.f32 %v4921, %v5020
      %v5091 = vadd.f32 %v4922, %v5025
      %v5092 = vadd.f32 %v4923, %v5030
      %v5093 = vadd.f32 %v4924, %v5035
      %v5094 = vadd.f32 %v4925, %v5040
      %v5095 = vadd.f32 %v4926, %v5045
      %v5096 = vadd.f32 %v4927, %v5050
      %v5097 = vadd.f32 %v4928, %v5055
      %v5098 = vadd.f32 %v4929, %v5060
      %v5099 = vadd.f32 %v4930, %v5065
      %v5100 = vadd.f32 %v4931, %v5070
      %v5101 = vadd.f32 %v4932, %v5075
      %v5102 = vadd.f32 %v4933, %v5080
      %v5103 = vadd.f32 %v4934, %v5085
      %v5105 = vrot.slane %v3764, 1
      %v5106 = vrot.slane %v3765, 1
      %v5107 = vsel %vm3792, %v5105, %v5106
      %v5108 = vrot.slane %v3766, 1
      %v5109 = vsel %vm3792, %v5106, %v5108
      %v5110 = vld [vmem:[%s4935 + $0x8] sm:$0xff]
      %v5111 = vsel %vm315, %v5107, 0
      %v5113 = vsel %vm315, %v5109, 0
      %5115 = vmatprep.subr.mxu0 0.0
      %5116 = vmatpush1.msra.mxu0 0.0
      %5117 = vmatprep.subr.mxu0 0.0
      %5118 = vmatpush1.msra.mxu0 0.0
      %5119 = vmatprep.subr.mxu0 0.0
      %5120 = vmatpush1.msra.mxu0 0.0
      %5121 = vmatprep.subr.mxu0 0.0
      %5122 = vmatpush1.msra.mxu0 0.0
      %5123 = vmatprep.subr.mxu0 0.0
      %5124 = vmatpush1.msra.mxu0 0.0
      %5125 = vmatprep.subr.mxu0 0.0
      %5126 = vmatpush1.msra.mxu0 0.0
      %5127 = vmatprep.subr.mxu0 0.0
      %5128 = vmatpush1.msra.mxu0 0.0
      %5129 = vmatprep.subr.mxu0 0.0
      %5130 = vmatpush1.msra.mxu0 0.0
      %5131 = vmatprep.subr.mxu0 0.0
      %5132 = vmatpush1.msra.mxu0 0.0
      %5133 = vmatprep.subr.mxu0 0.0
      %5134 = vmatpush1.msra.mxu0 0.0
      %5135 = vmatprep.subr.mxu0 0.0
      %5136 = vmatpush1.msra.mxu0 0.0
      %5137 = vmatprep.subr.mxu0 0.0
      %5138 = vmatpush1.msra.mxu0 0.0
      %5139 = vmatprep.subr.mxu0 0.0
      %5140 = vmatpush1.msra.mxu0 0.0
      %5141 = vmatprep.subr.mxu0 0.0
      %5142 = vmatpush1.msra.mxu0 0.0
      %5143 = vmatprep.subr.mxu0 0.0
      %5144 = vmatpush1.msra.mxu0 0.0
      %5145 = vmatprep.subr.mxu0 0.0
      %5146 = vmatpush1.msra.mxu0 %v5110
      %5147 = vmatprep.subr.mxu0 0.0
      %5148 = vmatpush2.msra.mxu0 0.0
      %5149 = vmatprep.subr.mxu0 0.0
      %5150 = vmatpush2.msra.mxu0 0.0
      %5151 = vmatprep.subr.mxu0 0.0
      %5152 = vmatpush2.msra.mxu0 0.0
      %5153 = vmatprep.subr.mxu0 0.0
      %5154 = vmatpush2.msra.mxu0 0.0
      %5155 = vmatprep.subr.mxu0 0.0
      %5156 = vmatpush2.msra.mxu0 0.0
      %5157 = vmatprep.subr.mxu0 0.0
      %5158 = vmatpush2.msra.mxu0 0.0
      %5159 = vmatprep.subr.mxu0 0.0
      %5160 = vmatpush2.msra.mxu0 0.0
      %5161 = vmatprep.subr.mxu0 0.0
      %5162 = vmatpush2.msra.mxu0 0.0
      %5163 = vmatprep.subr.mxu0 0.0
      %5164 = vmatpush2.msra.mxu0 0.0
      %5165 = vmatprep.subr.mxu0 0.0
      %5166 = vmatpush2.msra.mxu0 0.0
      %5167 = vmatprep.subr.mxu0 0.0
      %5168 = vmatpush2.msra.mxu0 0.0
      %5169 = vmatprep.subr.mxu0 0.0
      %5170 = vmatpush2.msra.mxu0 0.0
      %5171 = vmatprep.subr.mxu0 0.0
      %5172 = vmatpush2.msra.mxu0 0.0
      %5173 = vmatprep.subr.mxu0 0.0
      %5174 = vmatpush2.msra.mxu0 0.0
      %5175 = vmatprep.subr.mxu0 0.0
      %5176 = vmatpush2.msra.mxu0 0.0
      %5177 = vmatprep.subr.mxu0 0.0
      %5178 = vmatpush2.msra.mxu0 0.0
      %5179 = vmatprep.mubr.f32.mxu0 0.0
      %5180 = vmatmul.mubr.f32.gmra.mxu0 %v3842
      %v5181 = vpop.f32.mrf.mxu0
      %v5182 = vadd.f32 0.0, %v5181
      %v5183 = vpop.f32.mrf.mxu0
      %5184 = vmatprep.mubr.f32.mxu0 0.0
      %5185 = vmatmul.mubr.f32.gmra.mxu0 %v3844
      %v5186 = vpop.f32.mrf.mxu0
      %v5187 = vadd.f32 0.0, %v5186
      %v5188 = vpop.f32.mrf.mxu0
      %5189 = vmatprep.mubr.f32.mxu0 0.0
      %5190 = vmatmul.mubr.f32.gmra.mxu0 %v3846
      %v5191 = vpop.f32.mrf.mxu0
      %v5192 = vadd.f32 0.0, %v5191
      %v5193 = vpop.f32.mrf.mxu0
      %5194 = vmatprep.mubr.f32.mxu0 0.0
      %5195 = vmatmul.mubr.f32.gmra.mxu0 %v3848
      %v5196 = vpop.f32.mrf.mxu0
      %v5197 = vadd.f32 0.0, %v5196
      %v5198 = vpop.f32.mrf.mxu0
      %5199 = vmatprep.mubr.f32.mxu0 0.0
      %5200 = vmatmul.mubr.f32.gmra.mxu0 %v3850
      %v5201 = vpop.f32.mrf.mxu0
      %v5202 = vadd.f32 0.0, %v5201
      %v5203 = vpop.f32.mrf.mxu0
      %5204 = vmatprep.mubr.f32.mxu0 0.0
      %5205 = vmatmul.mubr.f32.gmra.mxu0 %v3852
      %v5206 = vpop.f32.mrf.mxu0
      %v5207 = vadd.f32 0.0, %v5206
      %v5208 = vpop.f32.mrf.mxu0
      %5209 = vmatprep.mubr.f32.mxu0 0.0
      %5210 = vmatmul.mubr.f32.gmra.mxu0 %v3854
      %v5211 = vpop.f32.mrf.mxu0
      %v5212 = vadd.f32 0.0, %v5211
      %v5213 = vpop.f32.mrf.mxu0
      %5214 = vmatprep.mubr.f32.mxu0 0.0
      %5215 = vmatmul.mubr.f32.gmra.mxu0 %v3856
      %v5216 = vpop.f32.mrf.mxu0
      %v5217 = vadd.f32 0.0, %v5216
      %v5218 = vpop.f32.mrf.mxu0
      %5219 = vmatprep.mubr.f32.mxu0 0.0
      %5220 = vmatmul.mubr.f32.gmra.mxu0 %v3858
      %v5221 = vpop.f32.mrf.mxu0
      %v5222 = vadd.f32 0.0, %v5221
      %v5223 = vpop.f32.mrf.mxu0
      %5224 = vmatprep.mubr.f32.mxu0 0.0
      %5225 = vmatmul.mubr.f32.gmra.mxu0 %v3860
      %v5226 = vpop.f32.mrf.mxu0
      %v5227 = vadd.f32 0.0, %v5226
      %v5228 = vpop.f32.mrf.mxu0
      %5229 = vmatprep.mubr.f32.mxu0 0.0
      %5230 = vmatmul.mubr.f32.gmra.mxu0 %v3862
      %v5231 = vpop.f32.mrf.mxu0
      %v5232 = vadd.f32 0.0, %v5231
      %v5233 = vpop.f32.mrf.mxu0
      %5234 = vmatprep.mubr.f32.mxu0 0.0
      %5235 = vmatmul.mubr.f32.gmra.mxu0 %v3864
      %v5236 = vpop.f32.mrf.mxu0
      %v5237 = vadd.f32 0.0, %v5236
      %v5238 = vpop.f32.mrf.mxu0
      %5239 = vmatprep.mubr.f32.mxu0 0.0
      %5240 = vmatmul.mubr.f32.gmra.mxu0 %v4599
      %v5241 = vpop.f32.mrf.mxu0
      %v5242 = vadd.f32 0.0, %v5241
      %v5243 = vpop.f32.mrf.mxu0
      %5244 = vmatprep.mubr.f32.mxu0 0.0
      %5245 = vmatmul.mubr.f32.gmra.mxu0 %v4601
      %v5246 = vpop.f32.mrf.mxu0
      %v5247 = vadd.f32 0.0, %v5246
      %v5248 = vpop.f32.mrf.mxu0
      %5249 = vmatprep.mubr.f32.mxu0 0.0
      %5250 = vmatmul.mubr.f32.gmra.mxu0 %v5111
      %v5251 = vpop.f32.mrf.mxu0
      %v5252 = vadd.f32 0.0, %v5251
      %v5253 = vpop.f32.mrf.mxu0
      %5254 = vmatprep.mubr.f32.mxu0 0.0
      %5255 = vmatmul.mubr.f32.gmra.mxu0 %v5113
      %v5256 = vpop.f32.mrf.mxu0
      %v5257 = vadd.f32 0.0, %v5256
      %v5258 = vpop.f32.mrf.mxu0
      %5259 = vdwg.mxu0
      %v5260 = vadd.f32 %v5088, %v5182
      %v5261 = vadd.f32 %v5089, %v5187
      %v5262 = vadd.f32 %v5090, %v5192
      %v5263 = vadd.f32 %v5091, %v5197
      %v5264 = vadd.f32 %v5092, %v5202
      %v5265 = vadd.f32 %v5093, %v5207
      %v5266 = vadd.f32 %v5094, %v5212
      %v5267 = vadd.f32 %v5095, %v5217
      %v5268 = vadd.f32 %v5096, %v5222
      %v5269 = vadd.f32 %v5097, %v5227
      %v5270 = vadd.f32 %v5098, %v5232
      %v5271 = vadd.f32 %v5099, %v5237
      %v5272 = vadd.f32 %v5100, %v5242
      %v5273 = vadd.f32 %v5101, %v5247
      %v5274 = vadd.f32 %v5102, %v5252
      %v5275 = vadd.f32 %v5103, %v5257
      %v5276 = vrot.slane %v3764, 2
      %v5277 = vrot.slane %v3765, 2
      %v5278 = vsel %vm4188, %v5276, %v5277
      %v5279 = vrot.slane %v3766, 2
      %v5280 = vsel %vm4188, %v5277, %v5279
      %v5281 = vld [vmem:[%s4935 + $0x10] sm:$0xff]
      %v5282 = vsel %vm315, %v5278, 0
      %v5284 = vsel %vm315, %v5280, 0
      %5286 = vmatprep.subr.mxu0 0.0
      %5287 = vmatpush1.msra.mxu0 0.0
      %5288 = vmatprep.subr.mxu0 0.0
      %5289 = vmatpush1.msra.mxu0 0.0
      %5290 = vmatprep.subr.mxu0 0.0
      %5291 = vmatpush1.msra.mxu0 0.0
      %5292 = vmatprep.subr.mxu0 0.0
      %5293 = vmatpush1.msra.mxu0 0.0
      %5294 = vmatprep.subr.mxu0 0.0
      %5295 = vmatpush1.msra.mxu0 0.0
      %5296 = vmatprep.subr.mxu0 0.0
      %5297 = vmatpush1.msra.mxu0 0.0
      %5298 = vmatprep.subr.mxu0 0.0
      %5299 = vmatpush1.msra.mxu0 0.0
      %5300 = vmatprep.subr.mxu0 0.0
      %5301 = vmatpush1.msra.mxu0 0.0
      %5302 = vmatprep.subr.mxu0 0.0
      %5303 = vmatpush1.msra.mxu0 0.0
      %5304 = vmatprep.subr.mxu0 0.0
      %5305 = vmatpush1.msra.mxu0 0.0
      %5306 = vmatprep.subr.mxu0 0.0
      %5307 = vmatpush1.msra.mxu0 0.0
      %5308 = vmatprep.subr.mxu0 0.0
      %5309 = vmatpush1.msra.mxu0 0.0
      %5310 = vmatprep.subr.mxu0 0.0
      %5311 = vmatpush1.msra.mxu0 0.0
      %5312 = vmatprep.subr.mxu0 0.0
      %5313 = vmatpush1.msra.mxu0 0.0
      %5314 = vmatprep.subr.mxu0 0.0
      %5315 = vmatpush1.msra.mxu0 0.0
      %5316 = vmatprep.subr.mxu0 0.0
      %5317 = vmatpush1.msra.mxu0 %v5281
      %5318 = vmatprep.subr.mxu0 0.0
      %5319 = vmatpush2.msra.mxu0 0.0
      %5320 = vmatprep.subr.mxu0 0.0
      %5321 = vmatpush2.msra.mxu0 0.0
      %5322 = vmatprep.subr.mxu0 0.0
      %5323 = vmatpush2.msra.mxu0 0.0
      %5324 = vmatprep.subr.mxu0 0.0
      %5325 = vmatpush2.msra.mxu0 0.0
      %5326 = vmatprep.subr.mxu0 0.0
      %5327 = vmatpush2.msra.mxu0 0.0
      %5328 = vmatprep.subr.mxu0 0.0
      %5329 = vmatpush2.msra.mxu0 0.0
      %5330 = vmatprep.subr.mxu0 0.0
      %5331 = vmatpush2.msra.mxu0 0.0
      %5332 = vmatprep.subr.mxu0 0.0
      %5333 = vmatpush2.msra.mxu0 0.0
      %5334 = vmatprep.subr.mxu0 0.0
      %5335 = vmatpush2.msra.mxu0 0.0
      %5336 = vmatprep.subr.mxu0 0.0
      %5337 = vmatpush2.msra.mxu0 0.0
      %5338 = vmatprep.subr.mxu0 0.0
      %5339 = vmatpush2.msra.mxu0 0.0
      %5340 = vmatprep.subr.mxu0 0.0
      %5341 = vmatpush2.msra.mxu0 0.0
      %5342 = vmatprep.subr.mxu0 0.0
      %5343 = vmatpush2.msra.mxu0 0.0
      %5344 = vmatprep.subr.mxu0 0.0
      %5345 = vmatpush2.msra.mxu0 0.0
      %5346 = vmatprep.subr.mxu0 0.0
      %5347 = vmatpush2.msra.mxu0 0.0
      %5348 = vmatprep.subr.mxu0 0.0
      %5349 = vmatpush2.msra.mxu0 0.0
      %5350 = vmatprep.mubr.f32.mxu0 0.0
      %5351 = vmatmul.mubr.f32.gmra.mxu0 %v4238
      %v5352 = vpop.f32.mrf.mxu0
      %v5353 = vadd.f32 0.0, %v5352
      %v5354 = vpop.f32.mrf.mxu0
      %5355 = vmatprep.mubr.f32.mxu0 0.0
      %5356 = vmatmul.mubr.f32.gmra.mxu0 %v4240
      %v5357 = vpop.f32.mrf.mxu0
      %v5358 = vadd.f32 0.0, %v5357
      %v5359 = vpop.f32.mrf.mxu0
      %5360 = vmatprep.mubr.f32.mxu0 0.0
      %5361 = vmatmul.mubr.f32.gmra.mxu0 %v4242
      %v5362 = vpop.f32.mrf.mxu0
      %v5363 = vadd.f32 0.0, %v5362
      %v5364 = vpop.f32.mrf.mxu0
      %5365 = vmatprep.mubr.f32.mxu0 0.0
      %5366 = vmatmul.mubr.f32.gmra.mxu0 %v4244
      %v5367 = vpop.f32.mrf.mxu0
      %v5368 = vadd.f32 0.0, %v5367
      %v5369 = vpop.f32.mrf.mxu0
      %5370 = vmatprep.mubr.f32.mxu0 0.0
      %5371 = vmatmul.mubr.f32.gmra.mxu0 %v4246
      %v5372 = vpop.f32.mrf.mxu0
      %v5373 = vadd.f32 0.0, %v5372
      %v5374 = vpop.f32.mrf.mxu0
      %5375 = vmatprep.mubr.f32.mxu0 0.0
      %5376 = vmatmul.mubr.f32.gmra.mxu0 %v4248
      %v5377 = vpop.f32.mrf.mxu0
      %v5378 = vadd.f32 0.0, %v5377
      %v5379 = vpop.f32.mrf.mxu0
      %5380 = vmatprep.mubr.f32.mxu0 0.0
      %5381 = vmatmul.mubr.f32.gmra.mxu0 %v4250
      %v5382 = vpop.f32.mrf.mxu0
      %v5383 = vadd.f32 0.0, %v5382
      %v5384 = vpop.f32.mrf.mxu0
      %5385 = vmatprep.mubr.f32.mxu0 0.0
      %5386 = vmatmul.mubr.f32.gmra.mxu0 %v4252
      %v5387 = vpop.f32.mrf.mxu0
      %v5388 = vadd.f32 0.0, %v5387
      %v5389 = vpop.f32.mrf.mxu0
      %5390 = vmatprep.mubr.f32.mxu0 0.0
      %5391 = vmatmul.mubr.f32.gmra.mxu0 %v4254
      %v5392 = vpop.f32.mrf.mxu0
      %v5393 = vadd.f32 0.0, %v5392
      %v5394 = vpop.f32.mrf.mxu0
      %5395 = vmatprep.mubr.f32.mxu0 0.0
      %5396 = vmatmul.mubr.f32.gmra.mxu0 %v4256
      %v5397 = vpop.f32.mrf.mxu0
      %v5398 = vadd.f32 0.0, %v5397
      %v5399 = vpop.f32.mrf.mxu0
      %5400 = vmatprep.mubr.f32.mxu0 0.0
      %5401 = vmatmul.mubr.f32.gmra.mxu0 %v4258
      %v5402 = vpop.f32.mrf.mxu0
      %v5403 = vadd.f32 0.0, %v5402
      %v5404 = vpop.f32.mrf.mxu0
      %5405 = vmatprep.mubr.f32.mxu0 0.0
      %5406 = vmatmul.mubr.f32.gmra.mxu0 %v4260
      %v5407 = vpop.f32.mrf.mxu0
      %v5408 = vadd.f32 0.0, %v5407
      %v5409 = vpop.f32.mrf.mxu0
      %5410 = vmatprep.mubr.f32.mxu0 0.0
      %5411 = vmatmul.mubr.f32.gmra.mxu0 %v4770
      %v5412 = vpop.f32.mrf.mxu0
      %v5413 = vadd.f32 0.0, %v5412
      %v5414 = vpop.f32.mrf.mxu0
      %5415 = vmatprep.mubr.f32.mxu0 0.0
      %5416 = vmatmul.mubr.f32.gmra.mxu0 %v4772
      %v5417 = vpop.f32.mrf.mxu0
      %v5418 = vadd.f32 0.0, %v5417
      %v5419 = vpop.f32.mrf.mxu0
      %5420 = vmatprep.mubr.f32.mxu0 0.0
      %5421 = vmatmul.mubr.f32.gmra.mxu0 %v5282
      %v5422 = vpop.f32.mrf.mxu0
      %v5423 = vadd.f32 0.0, %v5422
      %v5424 = vpop.f32.mrf.mxu0
      %5425 = vmatprep.mubr.f32.mxu0 0.0
      %5426 = vmatmul.mubr.f32.gmra.mxu0 %v5284
      %v5427 = vpop.f32.mrf.mxu0
      %v5428 = vadd.f32 0.0, %v5427
      %v5429 = vpop.f32.mrf.mxu0
      %5430 = vdwg.mxu0
      %v5431 = vadd.f32 %v5260, %v5353
      %v5432 = vadd.f32 %v5261, %v5358
      %v5433 = vadd.f32 %v5262, %v5363
      %v5434 = vadd.f32 %v5263, %v5368
      %v5435 = vadd.f32 %v5264, %v5373
      %v5436 = vadd.f32 %v5265, %v5378
      %v5437 = vadd.f32 %v5266, %v5383
      %v5438 = vadd.f32 %v5267, %v5388
      %v5439 = vadd.f32 %v5268, %v5393
      %v5440 = vadd.f32 %v5269, %v5398
      %v5441 = vadd.f32 %v5270, %v5403
      %v5442 = vadd.f32 %v5271, %v5408
      %v5443 = vadd.f32 %v5272, %v5413
      %v5444 = vadd.f32 %v5273, %v5418
      %v5445 = vadd.f32 %v5274, %v5423
      %v5446 = vadd.f32 %v5275, %v5428
      %v5447 = vld [vmem:[%s4] sm:$0x1]
      %v5449 = vlaneseq
      %v5450 = vshrl.u32 %v5449, 7
      %v5451 = vsub.s32 0, %v5450
      %v5452 = vrot.slane %v5447, %v5451
      %v5454 = vadd.f32 %v5431, %v5452
      %v5455 = vadd.f32 %v5432, %v5452
      %v5456 = vadd.f32 %v5433, %v5452
      %v5457 = vadd.f32 %v5434, %v5452
      %v5458 = vadd.f32 %v5435, %v5452
      %v5459 = vadd.f32 %v5436, %v5452
      %v5460 = vadd.f32 %v5437, %v5452
      %v5461 = vadd.f32 %v5438, %v5452
      %v5462 = vadd.f32 %v5439, %v5452
      %v5463 = vadd.f32 %v5440, %v5452
      %v5464 = vadd.f32 %v5441, %v5452
      %v5465 = vadd.f32 %v5442, %v5452
      %v5466 = vadd.f32 %v5443, %v5452
      %v5467 = vadd.f32 %v5444, %v5452
      %v5468 = vadd.f32 %v5445, %v5452
      %v5469 = vadd.f32 %v5446, %v5452
      %v5470 = vmax.f32 %v5454, 0.0
      %v5471 = vmax.f32 %v5455, 0.0
      %v5472 = vmax.f32 %v5456, 0.0
      %v5473 = vmax.f32 %v5457, 0.0
      %v5474 = vmax.f32 %v5458, 0.0
      %v5475 = vmax.f32 %v5459, 0.0
      %v5476 = vmax.f32 %v5460, 0.0
      %v5477 = vmax.f32 %v5461, 0.0
      %v5478 = vmax.f32 %v5462, 0.0
      %v5479 = vmax.f32 %v5463, 0.0
      %v5480 = vmax.f32 %v5464, 0.0
      %v5481 = vmax.f32 %v5465, 0.0
      %v5482 = vmax.f32 %v5466, 0.0
      %v5483 = vmax.f32 %v5467, 0.0
      %v5484 = vmax.f32 %v5468, 0.0
      %v5485 = vmax.f32 %v5469, 0.0
      %5486 = vst.msk [vmem:[%s248] sm:$0xff] %vm315, %v5470
      %5487 = vst.msk [vmem:[%s248 + $0x8] sm:$0xff] %vm315, %v5471
      %5488 = vst.msk [vmem:[%s248 + $0x10] sm:$0xff] %vm315, %v5472
      %5489 = vst.msk [vmem:[%s248 + $0x18] sm:$0xff] %vm315, %v5473
      %5490 = vst.msk [vmem:[%s248 + $0x20] sm:$0xff] %vm315, %v5474
      %5491 = vst.msk [vmem:[%s248 + $0x28] sm:$0xff] %vm315, %v5475
      %5492 = vst.msk [vmem:[%s248 + $0x30] sm:$0xff] %vm315, %v5476
      %5493 = vst.msk [vmem:[%s248 + $0x38] sm:$0xff] %vm315, %v5477
      %5494 = vst.msk [vmem:[%s248 + $0x40] sm:$0xff] %vm315, %v5478
      %5495 = vst.msk [vmem:[%s248 + $0x48] sm:$0xff] %vm315, %v5479
      %5496 = vst.msk [vmem:[%s248 + $0x50] sm:$0xff] %vm315, %v5480
      %5497 = vst.msk [vmem:[%s248 + $0x58] sm:$0xff] %vm315, %v5481
      %5498 = vst.msk [vmem:[%s248 + $0x60] sm:$0xff] %vm315, %v5482
      %5499 = vst.msk [vmem:[%s248 + $0x68] sm:$0xff] %vm315, %v5483
      %5500 = vst.msk [vmem:[%s248 + $0x70] sm:$0xff] %vm315, %v5484
      %5501 = vst.msk [vmem:[%s248 + $0x78] sm:$0xff] %vm315, %v5485
      %s5502 = smul.u32 8, %s21
      %p5503 = scmp.lt.s32.totalorder %s20, 1
      %s5504 = scalar_select %p5503, %s20, 1
      %p5505 = scmp.lt.s32.totalorder %s5502, 15
      %s5506 = scalar_select %p5505, %s5502, 15
      %s5507 = smul.addr %s5506, 2
      %s5508 = smul.addr %s5504, 32
      %s5509 = sadd.s32 %s5507, %s5508
      %s5510 = smul.addr %s5509, 8
      %s5511 = scalar_lea.vmem %s5, %s5510
      // Predicated region
      $region41: #{tpu_custom_call.1} parent=39 // pred_check
        %p5512 = pneg %p158
      $region42: #{tpu_custom_call.1} parent=39 // pred_check_branch
        %5514 = sbr.rel (%p5512) target = $region44
      $region43: #{tpu_custom_call.1} parent=39 // pred_region
        %s5515 = smul.u32 8, %s21
      $region44: #{tpu_custom_call.1} parent=39 // pred_fallthru
        _
    $region40: #{tpu_custom_call.1} parent=5 // pred_fallthru
      _
    %p5516 = scmp.le.s32.totalorder 2, %s11
    // Predicated region
    $region45: #{tpu_custom_call.1} parent=5 // pred_check
      %p5517 = pneg %p5516
    $region46: #{tpu_custom_call.1} parent=5 // pred_check_branch
      %5519 = sbr.rel (%p5517) target = $region48
    $region47: #{tpu_custom_call.1} parent=5 // pred_region
      %s5520 = ssub.s32 %s11, 2
      // Predicated region
      $region49: #{tpu_custom_call.1} parent=47 // pred_check
        %p5521 = pneg %p164
      $region50: #{tpu_custom_call.1} parent=47 // pred_check_branch
        %5523 = sbr.rel (%p5521) target = $region52
      $region51: #{tpu_custom_call.1} parent=47 // pred_region
        %s5524 = smul.u32 8, %s23
        %p5525 = scmp.lt.s32.totalorder %s22, 1
        %s5526 = scalar_select %p5525, %s22, 1
        %p5527 = scmp.lt.s32.totalorder %s5524, 15
        %s5528 = scalar_select %p5527, %s5524, 15
        %s5529 = smul.addr %s5528, 2
        %s5530 = smul.addr %s5526, 32
        %s5531 = sadd.s32 %s5529, %s5530
        %s5532 = smul.addr %s5531, 8
        %s5533 = scalar_lea.vmem %s5, %s5532
      $region52: #{tpu_custom_call.1} parent=47 // pred_fallthru
        _
    $region48: #{tpu_custom_call.1} parent=5 // pred_fallthru
      _
  $region6: #{tpu_custom_call.1} parent=0 // loop_footer
    %s15 = sadd.s32 1, %s11
  $region7: #{tpu_custom_call.1} parent=0 // loop_footer_branch
    %10 = sbr.rel target = $region3
  $region8: #{tpu_custom_call.1} parent=0 // loop_exit
    _

</llo_original>
